<compile_context>
chip_gen: v7x
topology: tpu7x:2x2x1
jax: 0.10.0
libtpu: 0.0.40
codegen_flags: <defaults>
</compile_context>

<pallas_src>
import jax
import jax.numpy as jnp
from jax.experimental import pallas as pl
from jax.experimental.pallas import tpu as pltpu


_TM = 512        # node-row tile      (bump to 1024 on v7x: 3.2 TB/s HBM -> per-step overhead dominates)
_TK = 512        # contraction tile
_TP = 512        # decoder edge tile (lane axis)
_VMEM_LIMIT = 8 * 1024 * 1024   # actual need ~1.5 MiB at 512 tiles; small limit leaves scheduler slack


def _round_up(v, m):
    return ((v + m - 1) // m) * m


# ---------------------------------------------------------------------------
# Kernel 1:  acc = Adj @ (D^-1/2 X)          (int8 adjacency streamed, bf16 MXU, f32 acc)
#   finalize: h   = relu(D^-1/2 acc @ W1 + b1)
#             out = D^-1/2 (h @ W2)          (layer-2 pre-scale folded in)   -> [tm, E_pad] bf16
# ---------------------------------------------------------------------------
def _gcn_layer1_kernel(a_ref, x_ref, dsr_ref, w1_ref, b1_ref, w2_ref, out_ref, acc_ref):
    k = pl.program_id(1)

    @pl.when(k == 0)
    def _():
        acc_ref[...] = jnp.zeros_like(acc_ref)

    a = a_ref[...].astype(jnp.bfloat16)          # exact small-int counts -> bf16
    acc_ref[...] += jnp.dot(a, x_ref[...], preferred_element_type=jnp.float32)

    @pl.when(k == pl.num_programs(1) - 1)
    def _():
        d = dsr_ref[...]                                           # [tm, 1] f32
        agg = (acc_ref[...] * d).astype(jnp.bfloat16)              # = (A_hat @ X) row tile
        h = jnp.dot(agg, w1_ref[...], preferred_element_type=jnp.float32)
        h = jnp.maximum(h + b1_ref[...], 0.0)                      # ReLU; dropout = identity (eval)
        hw = jnp.dot(h.astype(jnp.bfloat16), w2_ref[...],
                     preferred_element_type=jnp.float32)
        out_ref[...] = (hw * d).astype(out_ref.dtype)              # pre-scale rows for layer 2


# ---------------------------------------------------------------------------
# Kernel 2:  acc = Adj @ hw_scaled ; finalize: emb = D^-1/2 acc + b2   -> [tm, E_pad]
# ---------------------------------------------------------------------------
def _gcn_layer2_kernel(a_ref, hw_ref, dsr_ref, b2_ref, out_ref, acc_ref):
    k = pl.program_id(1)

    @pl.when(k == 0)
    def _():
        acc_ref[...] = jnp.zeros_like(acc_ref)

    a = a_ref[...].astype(jnp.bfloat16)
    acc_ref[...] += jnp.dot(a, hw_ref[...], preferred_element_type=jnp.float32)

    @pl.when(k == pl.num_programs(1) - 1)
    def _():
        out_ref[...] = (acc_ref[...] * dsr_ref[...] + b2_ref[...]).astype(out_ref.dtype)


# ---------------------------------------------------------------------------
# Kernel 3: decoder MLP in transposed ([feat, edge]) orientation, gridded over the edge axis.
#   z^T    = W3_src^T @ src^T + W3_dst^T @ dst^T + b3^T   (W3 pre-split -> no in-kernel concat)
#   pred^T = W4^T @ relu(z^T) + b4                        -> lane-dense [1, TP] tile
# ---------------------------------------------------------------------------
def _decoder_kernel(srcT_ref, dstT_ref, w3s_ref, w3d_ref, b3_ref, w4_ref, b4_ref, out_ref):
    z = (jnp.dot(w3s_ref[...], srcT_ref[...], preferred_element_type=jnp.float32)
         + jnp.dot(w3d_ref[...], dstT_ref[...], preferred_element_type=jnp.float32)
         + b3_ref[...])
    z = jnp.maximum(z, 0.0).astype(jnp.bfloat16)         # ReLU; dropout = identity (eval)
    out_ref[...] = (jnp.dot(w4_ref[...], z, preferred_element_type=jnp.float32)
                    + b4_ref[...])


def link_prediction_forward(x, edge_index, edge_label_index, params):
    """x: [N, F] f32; edge_index: [2, E_msg] int32; edge_label_index: [2, P] int32."""
    w1, b1, w2, b2, w3, b3, w4, b4 = params
    n, f_in = x.shape
    hidden = w1.shape[1]
    emb_dim = w2.shape[1]
    p = edge_label_index.shape[1]

    f_pad = _round_up(f_in, 128)
    hid_pad = _round_up(hidden, 128)
    emb_pad = _round_up(emb_dim, 128)
    n_pad = _round_up(n, max(_TM, _TK))

    # ---- O(E) degree / normalization (GCNConv gcn_norm semantics, self loops added only
    #      where missing, duplicate edges counted) ----
    src_m, dst_m = edge_index[0], edge_index[1]
    e_msg = src_m.shape[0]
    deg_in = jnp.zeros((n,), jnp.float32).at[dst_m].add(jnp.ones((e_msg,), jnp.float32))
    self_cnt = jnp.zeros((n,), jnp.float32).at[dst_m].add((src_m == dst_m).astype(jnp.float32))
    needs_self = (self_cnt == 0).astype(jnp.float32)
    deg = deg_in + needs_self
    d_inv_sqrt = jnp.where(deg > 0, 1.0 / jnp.sqrt(deg), 0.0)

    # ---- single O(N^2) materialization: int8 edge-count scatter into the padded buffer ----
    # TODO(synk): for genuinely sparse graphs replace this with a CSR-like scalar-prefetch
    # gather-accumulate formulation; on v7x store as fp8 e4m3 instead of int8.
    adj = jnp.zeros((n_pad, n_pad), jnp.int8)
    adj = adj.at[dst_m, src_m].add(jnp.ones((e_msg,), jnp.int8))          # duplicates sum
    idx_n = jnp.arange(n)
    adj = adj.at[idx_n, idx_n].add(needs_self.astype(jnp.int8))           # remaining self loops

    dsr = jnp.zeros((n_pad, 1), jnp.float32).at[:n, 0].set(d_inv_sqrt)

    # pre-scaled, padded node features (bf16, lane-dense)
    x_pad = jnp.zeros((n_pad, f_pad), jnp.bfloat16).at[:n, :f_in].set(
        (x * d_inv_sqrt[:, None]).astype(jnp.bfloat16))

    # ---- zero-padded, bf16 weights (lane-dense blocks; padding is exact -> no numeric change) ----
    w1p = jnp.zeros((f_pad, hid_pad), jnp.bfloat16).at[:f_in, :hidden].set(w1.astype(jnp.bfloat16))
    b1p = jnp.zeros((1, hid_pad), jnp.float32).at[:, :hidden].set(b1)
    w2p = jnp.zeros((hid_pad, emb_pad), jnp.bfloat16).at[:hidden, :emb_dim].set(w2.astype(jnp.bfloat16))
    b2p = jnp.zeros((1, emb_pad), jnp.float32).at[:, :emb_dim].set(b2)

    grid = (n_pad // _TM, n_pad // _TK)
    gcn_cparams = pltpu.CompilerParams(
        dimension_semantics=("parallel", "arbitrary"),
        vmem_limit_bytes=_VMEM_LIMIT)

    # ---- layer 1 fused with (h @ W2) and layer-2 row pre-scale ----
    hw = pl.pallas_call(
        _gcn_layer1_kernel,
        out_shape=jax.ShapeDtypeStruct((n_pad, emb_pad), jnp.bfloat16),
        grid_spec=pltpu.PrefetchScalarGridSpec(
            num_scalar_prefetch=0, grid=grid,
            in_specs=[
                pl.BlockSpec((_TM, _TK), lambda i, k: (i, k)),          # adjacency tile (int8)
                pl.BlockSpec((_TK, f_pad), lambda i, k: (k, 0)),        # pre-scaled X tile
                pl.BlockSpec((_TM, 1), lambda i, k: (i, 0)),            # d_inv_sqrt row tile
                pl.BlockSpec((f_pad, hid_pad), lambda i, k: (0, 0)),    # W1
                pl.BlockSpec((1, hid_pad), lambda i, k: (0, 0)),        # b1
                pl.BlockSpec((hid_pad, emb_pad), lambda i, k: (0, 0)),  # W2
            ],
            out_specs=pl.BlockSpec((_TM, emb_pad), lambda i, k: (i, 0)),
            scratch_shapes=[pltpu.VMEM((_TM, f_pad), jnp.float32)]),
        compiler_params=gcn_cparams,
    )(adj, x_pad, dsr, w1p, b1p, w2p)

    # ---- layer 2: emb = D^-1/2 (Adj @ hw_scaled) + b2 ----
    emb = pl.pallas_call(
        _gcn_layer2_kernel,
        out_shape=jax.ShapeDtypeStruct((n_pad, emb_pad), jnp.bfloat16),
        grid_spec=pltpu.PrefetchScalarGridSpec(
            num_scalar_prefetch=0, grid=grid,
            in_specs=[
                pl.BlockSpec((_TM, _TK), lambda i, k: (i, k)),          # adjacency tile (int8)
                pl.BlockSpec((_TK, emb_pad), lambda i, k: (k, 0)),      # hw_scaled tile
                pl.BlockSpec((_TM, 1), lambda i, k: (i, 0)),            # d_inv_sqrt row tile
                pl.BlockSpec((1, emb_pad), lambda i, k: (0, 0)),        # b2
            ],
            out_specs=pl.BlockSpec((_TM, emb_pad), lambda i, k: (i, 0)),
            scratch_shapes=[pltpu.VMEM((_TM, emb_pad), jnp.float32)]),
        compiler_params=gcn_cparams,
    )(adj, hw, dsr, b2p)

    # ---- edge endpoint gather (P x E elements) + transpose to lane-dense [E_pad, P_pad] ----
    # TODO(synk): move this gather into the decoder kernel (scalar-prefetch indices + DMA gather)
    # to avoid materializing the two gathered/transposed copies in HBM.
    p_pad = _round_up(max(p, _TP), _TP)
    src_idx = jnp.zeros((p_pad,), jnp.int32).at[:p].set(edge_label_index[0])
    dst_idx = jnp.zeros((p_pad,), jnp.int32).at[:p].set(edge_label_index[1])
    src_t = emb[src_idx].T                              # [E_pad, P_pad] bf16
    dst_t = emb[dst_idx].T                              # [E_pad, P_pad] bf16

    # split W3 into src/dst halves (no in-kernel concat), transpose for [feat, edge] math
    w3s_t = jnp.zeros((hid_pad, emb_pad), jnp.bfloat16).at[:hidden, :emb_dim].set(
        w3[:emb_dim, :].T.astype(jnp.bfloat16))
    w3d_t = jnp.zeros((hid_pad, emb_pad), jnp.bfloat16).at[:hidden, :emb_dim].set(
        w3[emb_dim:, :].T.astype(jnp.bfloat16))
    b3_t = jnp.zeros((hid_pad, 1), jnp.float32).at[:hidden, 0].set(b3[0, :])
    w4_t = jnp.zeros((1, hid_pad), jnp.bfloat16).at[:, :hidden].set(w4.T.astype(jnp.bfloat16))

    pred_t = pl.pallas_call(
        _decoder_kernel,
        out_shape=jax.ShapeDtypeStruct((1, p_pad), jnp.float32),
        grid_spec=pltpu.PrefetchScalarGridSpec(
            num_scalar_prefetch=0, grid=(p_pad // _TP,),
            in_specs=[
                pl.BlockSpec((emb_pad, _TP), lambda j: (0, j)),     # src^T tile
                pl.BlockSpec((emb_pad, _TP), lambda j: (0, j)),     # dst^T tile
                pl.BlockSpec((hid_pad, emb_pad), lambda j: (0, 0)),  # W3_src^T
                pl.BlockSpec((hid_pad, emb_pad), lambda j: (0, 0)),  # W3_dst^T
                pl.BlockSpec((hid_pad, 1), lambda j: (0, 0)),        # b3^T
                pl.BlockSpec((1, hid_pad), lambda j: (0, 0)),        # W4^T
                pl.BlockSpec((1, 1), lambda j: (0, 0)),              # b4
            ],
            out_specs=pl.BlockSpec((1, _TP), lambda j: (0, j))),
        compiler_params=pltpu.CompilerParams(
            dimension_semantics=("parallel",),
            vmem_limit_bytes=_VMEM_LIMIT),
    )(src_t, dst_t, w3s_t, w3d_t, b3_t, w4_t, b4)

    return pred_t[0, :p]          # squeeze -> [P]


def init_params(key, input_dim, hidden_dim, embedding_dim):
    """Deterministic parameter init (uniform, scaled by fan-in) — shapes match the PyTorch module."""
    ks = jax.random.split(key, 8)

    def lin(kw, kb, fan_in, fan_out):
        lim = 1.0 / jnp.sqrt(jnp.float32(fan_in))
        w = jax.random.uniform(kw, (fan_in, fan_out), jnp.float32, -lim, lim)
        b = jax.random.uniform(kb, (1, fan_out), jnp.float32, -lim, lim)
        return w, b

    w1, b1 = lin(ks[0], ks[1], input_dim, hidden_dim)          # GCNConv 1
    w2, b2 = lin(ks[2], ks[3], hidden_dim, embedding_dim)      # GCNConv 2
    w3, b3 = lin(ks[4], ks[5], embedding_dim * 2, hidden_dim)  # decoder Linear 1
    w4, b4 = lin(ks[6], ks[7], hidden_dim, 1)                  # decoder Linear 2
    return (w1, b1, w2, b2, w3, b3, w4, b4)


if __name__ == "__main__":
    key = jax.random.PRNGKey(0)
    k_x, k_e, k_lbl, k_p = jax.random.split(key, 4)

    num_nodes = 16
    input_dim = 8
    hidden_dim = 32
    embedding_dim = 16
    num_edges = 32
    num_pred_edges = 8

    x = jax.random.normal(k_x, (num_nodes, input_dim), dtype=jnp.float32)
    edge_index = jax.random.randint(k_e, (2, num_edges), 0, num_nodes, dtype=jnp.int32)
    edge_label_index = jax.random.randint(k_lbl, (2, num_pred_edges), 0, num_nodes, dtype=jnp.int32)

    params = init_params(k_p, input_dim, hidden_dim, embedding_dim)

    pred = link_prediction_forward(x, edge_index, edge_label_index, params)
    pred = jax.block_until_ready(pred)

    assert pred.shape == (num_pred_edges,)
    assert bool(jnp.all(jnp.isfinite(pred)))
    print("KERNEL_OK")
</pallas_src>

<mosaic_0001>
module attributes {stable_mosaic.version = 11 : i64} {
  func.func @_gcn_layer1_kernel(%arg0: i32, %arg1: i32, %arg2: memref<512x512xi8, #tpu.memory_space<vmem>>, %arg3: memref<512x128xbf16, #tpu.memory_space<vmem>>, %arg4: memref<512x1xf32, #tpu.memory_space<vmem>>, %arg5: memref<128x128xbf16, #tpu.memory_space<vmem>>, %arg6: memref<1x128xf32, #tpu.memory_space<vmem>>, %arg7: memref<128x128xbf16, #tpu.memory_space<vmem>>, %arg8: memref<512x128xbf16, #tpu.memory_space<vmem>>, %arg9: memref<512x128xf32, #tpu.memory_space<vmem>>) attributes {dimension_semantics = [#tpu.dimension_semantics<parallel>, #tpu.dimension_semantics<arbitrary>], iteration_bounds = array<i64: 1, 1>, scalar_prefetch = 0 : i64, scratch_operands = 1 : i64, tpu.core_type = #tpu.core_type<tc>, window_params = [{transform_indices = @transform_0, window_bounds = array<i64: 512, 512>}, {transform_indices = @transform_1, window_bounds = array<i64: 512, 128>}, {transform_indices = @transform_2, window_bounds = array<i64: 512, 1>}, {pipeline_mode = #tpu.pipeline_mode<synchronous>, transform_indices = @transform_3, window_bounds = array<i64: 128, 128>}, {pipeline_mode = #tpu.pipeline_mode<synchronous>, transform_indices = @transform_4, window_bounds = array<i64: 1, 128>}, {pipeline_mode = #tpu.pipeline_mode<synchronous>, transform_indices = @transform_5, window_bounds = array<i64: 128, 128>}, {transform_indices = @transform_6, window_bounds = array<i64: 512, 128>}]} {
    %c0_i32 = arith.constant 0 : i32
    %0 = arith.cmpi eq, %arg1, %c0_i32 : i32
    %1 = arith.extui %0 : i1 to i32
    %c0_i32_0 = arith.constant 0 : i32
    %2 = arith.cmpi ne, %1, %c0_i32_0 : i32
    scf.if %2 {
      %cst_10 = arith.constant 0.000000e+00 : f32
      %13 = vector.broadcast %cst_10 : f32 to vector<512x128xf32>
      %c0_11 = arith.constant 0 : index
      %c0_12 = arith.constant 0 : index
      %14 = vector.load %arg9[%c0_11, %c0_12] : memref<512x128xf32, #tpu.memory_space<vmem>>, vector<512x128xf32>
      tpu.vector_store %arg9[%c0_11, %c0_12], %13 {strides = array<i32>} : memref<512x128xf32, #tpu.memory_space<vmem>>, vector<512x128xf32>,
    } else {
    }
    %c0 = arith.constant 0 : index
    %c0_1 = arith.constant 0 : index
    %3 = vector.load %arg2[%c0, %c0_1] : memref<512x512xi8, #tpu.memory_space<vmem>>, vector<512x512xi8>
    %4 = arith.sitofp %3 : vector<512x512xi8> to vector<512x512xbf16>
    %c0_2 = arith.constant 0 : index
    %c0_3 = arith.constant 0 : index
    %5 = vector.load %arg9[%c0_2, %c0_3] : memref<512x128xf32, #tpu.memory_space<vmem>>, vector<512x128xf32>
    %c0_4 = arith.constant 0 : index
    %c0_5 = arith.constant 0 : index
    %6 = vector.load %arg3[%c0_4, %c0_5] : memref<512x128xbf16, #tpu.memory_space<vmem>>, vector<512x128xbf16>
    %cst = arith.constant dense<0.000000e+00> : vector<512x128xf32>
    %7 = tpu.matmul %4, %6, %cst {dimension_numbers = #tpu.dot_dimension_numbers<[1], [0], [0], [1], [0, 0, 1, 1], [], []>} : vector<512x512xbf16>, vector<512x128xbf16>, vector<512x128xf32> -> vector<512x128xf32>
    %8 = arith.addf %5, %7 : vector<512x128xf32>
    %c0_6 = arith.constant 0 : index
    %c0_7 = arith.constant 0 : index
    %9 = vector.load %arg9[%c0_6, %c0_7] : memref<512x128xf32, #tpu.memory_space<vmem>>, vector<512x128xf32>
    tpu.vector_store %arg9[%c0_6, %c0_7], %8 {strides = array<i32>} : memref<512x128xf32, #tpu.memory_space<vmem>>, vector<512x128xf32>,
    %c0_i32_8 = arith.constant 0 : i32
    %10 = arith.cmpi eq, %arg1, %c0_i32_8 : i32
    %11 = arith.extui %10 : i1 to i32
    %c0_i32_9 = arith.constant 0 : i32
    %12 = arith.cmpi ne, %11, %c0_i32_9 : i32
    scf.if %12 {
      %c0_10 = arith.constant 0 : index
      %c0_11 = arith.constant 0 : index
      %13 = vector.load %arg4[%c0_10, %c0_11] : memref<512x1xf32, #tpu.memory_space<vmem>>, vector<512x1xf32>
      %c0_12 = arith.constant 0 : index
      %c0_13 = arith.constant 0 : index
      %14 = vector.load %arg9[%c0_12, %c0_13] : memref<512x128xf32, #tpu.memory_space<vmem>>, vector<512x128xf32>
      %15 = vector.broadcast %13 : vector<512x1xf32> to vector<512x128xf32>
      %16 = arith.mulf %14, %15 : vector<512x128xf32>
      %17 = arith.truncf %16 : vector<512x128xf32> to vector<512x128xbf16>
      %c0_14 = arith.constant 0 : index
      %c0_15 = arith.constant 0 : index
      %18 = vector.load %arg5[%c0_14, %c0_15] : memref<128x128xbf16, #tpu.memory_space<vmem>>, vector<128x128xbf16>
      %cst_16 = arith.constant dense<0.000000e+00> : vector<512x128xf32>
      %19 = tpu.matmul %17, %18, %cst_16 {dimension_numbers = #tpu.dot_dimension_numbers<[1], [0], [0], [1], [0, 0, 1, 1], [], []>} : vector<512x128xbf16>, vector<128x128xbf16>, vector<512x128xf32> -> vector<512x128xf32>
      %c0_17 = arith.constant 0 : index
      %c0_18 = arith.constant 0 : index
      %20 = vector.load %arg6[%c0_17, %c0_18] : memref<1x128xf32, #tpu.memory_space<vmem>>, vector<1x128xf32>
      %21 = vector.broadcast %20 : vector<1x128xf32> to vector<512x128xf32>
      %22 = arith.addf %19, %21 : vector<512x128xf32>
      %cst_19 = arith.constant 0.000000e+00 : f32
      %23 = vector.broadcast %cst_19 : f32 to vector<512x128xf32>
      %24 = arith.maximumf %22, %23 : vector<512x128xf32>
      %25 = arith.truncf %24 : vector<512x128xf32> to vector<512x128xbf16>
      %c0_20 = arith.constant 0 : index
      %c0_21 = arith.constant 0 : index
      %26 = vector.load %arg7[%c0_20, %c0_21] : memref<128x128xbf16, #tpu.memory_space<vmem>>, vector<128x128xbf16>
      %cst_22 = arith.constant dense<0.000000e+00> : vector<512x128xf32>
      %27 = tpu.matmul %25, %26, %cst_22 {dimension_numbers = #tpu.dot_dimension_numbers<[1], [0], [0], [1], [0, 0, 1, 1], [], []>} : vector<512x128xbf16>, vector<128x128xbf16>, vector<512x128xf32> -> vector<512x128xf32>
      %28 = vector.broadcast %13 : vector<512x1xf32> to vector<512x128xf32>
      %29 = arith.mulf %27, %28 : vector<512x128xf32>
      %30 = arith.truncf %29 : vector<512x128xf32> to vector<512x128xbf16>
      %c0_23 = arith.constant 0 : index
      %c0_24 = arith.constant 0 : index
      %31 = vector.load %arg8[%c0_23, %c0_24] : memref<512x128xbf16, #tpu.memory_space<vmem>>, vector<512x128xbf16>
      tpu.vector_store %arg8[%c0_23, %c0_24], %30 {strides = array<i32>} : memref<512x128xbf16, #tpu.memory_space<vmem>>, vector<512x128xbf16>,
    } else {
    }
    return
  }
  func.func @transform_0(%arg0: i32, %arg1: i32) -> (i32, i32) {
    %c0_i32 = arith.constant 0 : i32
    return %arg0, %arg1 : i32, i32
  }
  func.func @transform_1(%arg0: i32, %arg1: i32) -> (i32, i32) {
    %c0_i32 = arith.constant 0 : i32
    %c0_i32_0 = arith.constant 0 : i32
    return %arg1, %c0_i32 : i32, i32
  }
  func.func @transform_2(%arg0: i32, %arg1: i32) -> (i32, i32) {
    %c0_i32 = arith.constant 0 : i32
    %c0_i32_0 = arith.constant 0 : i32
    return %arg0, %c0_i32 : i32, i32
  }
  func.func @transform_3(%arg0: i32, %arg1: i32) -> (i32, i32) {
    %c0_i32 = arith.constant 0 : i32
    %c0_i32_0 = arith.constant 0 : i32
    %c0_i32_1 = arith.constant 0 : i32
    return %c0_i32, %c0_i32_0 : i32, i32
  }
  func.func @transform_4(%arg0: i32, %arg1: i32) -> (i32, i32) {
    %c0_i32 = arith.constant 0 : i32
    %c0_i32_0 = arith.constant 0 : i32
    %c0_i32_1 = arith.constant 0 : i32
    return %c0_i32, %c0_i32_0 : i32, i32
  }
  func.func @transform_5(%arg0: i32, %arg1: i32) -> (i32, i32) {
    %c0_i32 = arith.constant 0 : i32
    %c0_i32_0 = arith.constant 0 : i32
    %c0_i32_1 = arith.constant 0 : i32
    return %c0_i32, %c0_i32_0 : i32, i32
  }
  func.func @transform_6(%arg0: i32, %arg1: i32) -> (i32, i32) {
    %c0_i32 = arith.constant 0 : i32
    %c0_i32_0 = arith.constant 0 : i32
    return %arg0, %c0_i32 : i32, i32
  }
}

</mosaic_0001>

<llo_original>
// kernel: tpu_custom_call.1
$region0: #{tpu_custom_call.1}
  #allocation0 [shape = 'u32[]', space=smem, size = 0x4, offset = 0x4, fixed_abs, tag = 'smem constant byte address 0x4 - core index']
  #allocation1 [shape = 'u32[144,128]{1,0:T(1,128)}', space=vmem, size = 0x12000, scoped, tag = 'internal scratch']
  #allocation2 [shape = 'f32[512,128]{1,0:T(8,128)}', space=vmem, size = 0x40000, scoped, tag = 'scratch operand']
  %s0 = inlined_call_operand.vmem [shape: s8[512,512], index: 0, kind: input, shape index: {}]
  %s1 = inlined_call_operand.hbm [shape: bf16[512,128], index: 1, kind: input, shape index: {}]
  %s2 = inlined_call_operand.vmem [shape: f32[512,1], index: 2, kind: input, shape index: {}]
  %s3 = inlined_call_operand.hbm [shape: bf16[128,128], index: 3, kind: input, shape index: {}]
  %s4 = inlined_call_operand.vmem [shape: f32[1,128], index: 4, kind: input, shape index: {}]
  %s5 = inlined_call_operand.hbm [shape: bf16[128,128], index: 5, kind: input, shape index: {}]
  %s6 = inlined_call_operand.hbm [shape: bf16[512,128], index: 6, kind: output, shape index: {}]
  %s7 = sld [smem:[#allocation0]]
  $region54: #{tpu_custom_call.1} parent=0
    _
  %s9 = ssub.s32 1, %s7
  %s10 = scalar_select 0, %s9, %s7
  $region1: #{tpu_custom_call.1} parent=0
    #allocation3 [shape = 'u8[131072]{0}', space=vmem, size = 0x20000, scoped, tag = 'input window, operand 1, single buffered']
    #allocation4 [shape = 's32[1]{0}', space=sflag, size = 0x4, scoped, tag = 'scoped memory for tpu_custom_call.1']
    #allocation5 [shape = 's32[1]{0}', space=sflag, size = 0x4, scoped, tag = 'scoped memory for tpu_custom_call.1']
    #allocation6 [shape = 'u8[32768]{0}', space=vmem, size = 0x8000, scoped, tag = 'input window, operand 3, single buffered']
    #allocation7 [shape = 's32[1]{0}', space=sflag, size = 0x4, scoped, tag = 'scoped memory for tpu_custom_call.1']
    #allocation8 [shape = 'u8[32768]{0}', space=vmem, size = 0x8000, scoped, tag = 'input window, operand 5, single buffered']
    #allocation9 [shape = 'u8[131072]{0}', space=vmem, size = 0x20000, scoped, tag = 'output window, operand 0, single buffered']
    %11 = vsyncpa [#allocation4], 0
    %12 = vsyncpa [#allocation7], 0
    %13 = vsyncpa [#allocation5], 0
    // Predicated region
    $region2: #{tpu_custom_call.1} parent=1 // pred_check
      _
    $region3: #{tpu_custom_call.1} parent=1 // pred_check_branch
      %15 = sbr.rel (0) target = $region5
    $region4: #{tpu_custom_call.1} parent=1 // pred_region
      _
    $region5: #{tpu_custom_call.1} parent=1 // pred_fallthru
      _
    // Predicated region
    $region6: #{tpu_custom_call.1} parent=1 // pred_check
      _
    $region7: #{tpu_custom_call.1} parent=1 // pred_check_branch
      %17 = sbr.rel (0) target = $region9
    $region8: #{tpu_custom_call.1} parent=1 // pred_region
      %s19 = ssub.s32 4096, 4096
      %20 = vsyncadd [#allocation4], %s19
      %s21 = sshll.u32 [#allocation3], 4
      %s22 = int_to_ptr.vmem [resolvable:$true] %s21
      %27 = dma.hbm_to_vmem [thread:$0]  %s1, 4096, %s22, [#allocation4], 64, 64, 4
    $region9: #{tpu_custom_call.1} parent=1 // pred_fallthru
      _
    // Predicated region
    $region10: #{tpu_custom_call.1} parent=1 // pred_check
      _
    $region11: #{tpu_custom_call.1} parent=1 // pred_check_branch
      %29 = sbr.rel (0) target = $region13
    $region12: #{tpu_custom_call.1} parent=1 // pred_region
      _
    $region13: #{tpu_custom_call.1} parent=1 // pred_fallthru
      _
    // Predicated region
    $region14: #{tpu_custom_call.1} parent=1 // pred_check
      _
    $region15: #{tpu_custom_call.1} parent=1 // pred_check_branch
      %31 = sbr.rel (0) target = $region17
    $region16: #{tpu_custom_call.1} parent=1 // pred_region
      %s33 = ssub.s32 1024, 1024
      %34 = vsyncadd [#allocation7], %s33
      %s35 = sshll.u32 [#allocation6], 4
      %s36 = int_to_ptr.vmem [resolvable:$true] %s35
      %41 = dma.hbm_to_vmem [thread:$0]  %s3, 1024, %s36, [#allocation7], 64, 64, 4
    $region17: #{tpu_custom_call.1} parent=1 // pred_fallthru
      _
    // Predicated region
    $region18: #{tpu_custom_call.1} parent=1 // pred_check
      _
    $region19: #{tpu_custom_call.1} parent=1 // pred_check_branch
      %43 = sbr.rel (0) target = $region21
    $region20: #{tpu_custom_call.1} parent=1 // pred_region
      _
    $region21: #{tpu_custom_call.1} parent=1 // pred_fallthru
      _
    // Predicated region
    $region22: #{tpu_custom_call.1} parent=1 // pred_check
      _
    $region23: #{tpu_custom_call.1} parent=1 // pred_check_branch
      %45 = sbr.rel (0) target = $region25
    $region24: #{tpu_custom_call.1} parent=1 // pred_region
      %s47 = ssub.s32 1024, 1024
      %48 = vsyncadd [#allocation7], %s47
      %s49 = sshll.u32 [#allocation8], 4
      %s50 = int_to_ptr.vmem [resolvable:$true] %s49
      %55 = dma.hbm_to_vmem [thread:$0]  %s5, 1024, %s50, [#allocation7], 64, 64, 4
    $region25: #{tpu_custom_call.1} parent=1 // pred_fallthru
      _
    // Predicated region
    $region26: #{tpu_custom_call.1} parent=1 // pred_check
      _
    $region27: #{tpu_custom_call.1} parent=1 // pred_check_branch
      %57 = sbr.rel (0) target = $region29
    $region28: #{tpu_custom_call.1} parent=1 // pred_region
      %58 = dma.done [#allocation4], 4096
    $region29: #{tpu_custom_call.1} parent=1 // pred_fallthru
      _
    // Predicated region
    $region30: #{tpu_custom_call.1} parent=1 // pred_check
      _
    $region31: #{tpu_custom_call.1} parent=1 // pred_check_branch
      %60 = sbr.rel (0) target = $region33
    $region32: #{tpu_custom_call.1} parent=1 // pred_region
      %61 = dma.done [#allocation7], 1024
    $region33: #{tpu_custom_call.1} parent=1 // pred_fallthru
      _
    // Predicated region
    $region34: #{tpu_custom_call.1} parent=1 // pred_check
      _
    $region35: #{tpu_custom_call.1} parent=1 // pred_check_branch
      %63 = sbr.rel (0) target = $region37
    $region36: #{tpu_custom_call.1} parent=1 // pred_region
      %64 = dma.done [#allocation7], 1024
    $region37: #{tpu_custom_call.1} parent=1 // pred_fallthru
      _
    %p66 = scmp.eq.s32.totalorder 0, 0
    // Predicated region
    $region38: #{tpu_custom_call.1} parent=1 // pred_check
      %p67 = pneg %p66
    $region39: #{tpu_custom_call.1} parent=1 // pred_check_branch
      %69 = sbr.rel (%p67) target = $region41
    $region40: #{tpu_custom_call.1} parent=1 // pred_region
      %70 = vst [vmem:[#allocation2] sm:$0xff] 0.0
      %71 = vst [vmem:[#allocation2 + $0x8] sm:$0xff] 0.0
      %72 = vst [vmem:[#allocation2 + $0x10] sm:$0xff] 0.0
      %73 = vst [vmem:[#allocation2 + $0x18] sm:$0xff] 0.0
      %74 = vst [vmem:[#allocation2 + $0x20] sm:$0xff] 0.0
      %75 = vst [vmem:[#allocation2 + $0x28] sm:$0xff] 0.0
      %76 = vst [vmem:[#allocation2 + $0x30] sm:$0xff] 0.0
      %77 = vst [vmem:[#allocation2 + $0x38] sm:$0xff] 0.0
      %78 = vst [vmem:[#allocation2 + $0x40] sm:$0xff] 0.0
      %79 = vst [vmem:[#allocation2 + $0x48] sm:$0xff] 0.0
      %80 = vst [vmem:[#allocation2 + $0x50] sm:$0xff] 0.0
      %81 = vst [vmem:[#allocation2 + $0x58] sm:$0xff] 0.0
      %82 = vst [vmem:[#allocation2 + $0x60] sm:$0xff] 0.0
      %83 = vst [vmem:[#allocation2 + $0x68] sm:$0xff] 0.0
      %84 = vst [vmem:[#allocation2 + $0x70] sm:$0xff] 0.0
      %85 = vst [vmem:[#allocation2 + $0x78] sm:$0xff] 0.0
      %86 = vst [vmem:[#allocation2 + $0x80] sm:$0xff] 0.0
      %87 = vst [vmem:[#allocation2 + $0x88] sm:$0xff] 0.0
      %88 = vst [vmem:[#allocation2 + $0x90] sm:$0xff] 0.0
      %89 = vst [vmem:[#allocation2 + $0x98] sm:$0xff] 0.0
      %90 = vst [vmem:[#allocation2 + $0xa0] sm:$0xff] 0.0
      %91 = vst [vmem:[#allocation2 + $0xa8] sm:$0xff] 0.0
      %92 = vst [vmem:[#allocation2 + $0xb0] sm:$0xff] 0.0
      %93 = vst [vmem:[#allocation2 + $0xb8] sm:$0xff] 0.0
      %94 = vst [vmem:[#allocation2 + $0xc0] sm:$0xff] 0.0
      %95 = vst [vmem:[#allocation2 + $0xc8] sm:$0xff] 0.0
      %96 = vst [vmem:[#allocation2 + $0xd0] sm:$0xff] 0.0
      %97 = vst [vmem:[#allocation2 + $0xd8] sm:$0xff] 0.0
      %98 = vst [vmem:[#allocation2 + $0xe0] sm:$0xff] 0.0
      %99 = vst [vmem:[#allocation2 + $0xe8] sm:$0xff] 0.0
      %100 = vst [vmem:[#allocation2 + $0xf0] sm:$0xff] 0.0
      %101 = vst [vmem:[#allocation2 + $0xf8] sm:$0xff] 0.0
      %102 = vst [vmem:[#allocation2 + $0x100] sm:$0xff] 0.0
      %103 = vst [vmem:[#allocation2 + $0x108] sm:$0xff] 0.0
      %104 = vst [vmem:[#allocation2 + $0x110] sm:$0xff] 0.0
      %105 = vst [vmem:[#allocation2 + $0x118] sm:$0xff] 0.0
      %106 = vst [vmem:[#allocation2 + $0x120] sm:$0xff] 0.0
      %107 = vst [vmem:[#allocation2 + $0x128] sm:$0xff] 0.0
      %108 = vst [vmem:[#allocation2 + $0x130] sm:$0xff] 0.0
      %109 = vst [vmem:[#allocation2 + $0x138] sm:$0xff] 0.0
      %110 = vst [vmem:[#allocation2 + $0x140] sm:$0xff] 0.0
      %111 = vst [vmem:[#allocation2 + $0x148] sm:$0xff] 0.0
      %112 = vst [vmem:[#allocation2 + $0x150] sm:$0xff] 0.0
      %113 = vst [vmem:[#allocation2 + $0x158] sm:$0xff] 0.0
      %114 = vst [vmem:[#allocation2 + $0x160] sm:$0xff] 0.0
      %115 = vst [vmem:[#allocation2 + $0x168] sm:$0xff] 0.0
      %116 = vst [vmem:[#allocation2 + $0x170] sm:$0xff] 0.0
      %117 = vst [vmem:[#allocation2 + $0x178] sm:$0xff] 0.0
      %118 = vst [vmem:[#allocation2 + $0x180] sm:$0xff] 0.0
      %119 = vst [vmem:[#allocation2 + $0x188] sm:$0xff] 0.0
      %120 = vst [vmem:[#allocation2 + $0x190] sm:$0xff] 0.0
      %121 = vst [vmem:[#allocation2 + $0x198] sm:$0xff] 0.0
      %122 = vst [vmem:[#allocation2 + $0x1a0] sm:$0xff] 0.0
      %123 = vst [vmem:[#allocation2 + $0x1a8] sm:$0xff] 0.0
      %124 = vst [vmem:[#allocation2 + $0x1b0] sm:$0xff] 0.0
      %125 = vst [vmem:[#allocation2 + $0x1b8] sm:$0xff] 0.0
      %126 = vst [vmem:[#allocation2 + $0x1c0] sm:$0xff] 0.0
      %127 = vst [vmem:[#allocation2 + $0x1c8] sm:$0xff] 0.0
      %128 = vst [vmem:[#allocation2 + $0x1d0] sm:$0xff] 0.0
      %129 = vst [vmem:[#allocation2 + $0x1d8] sm:$0xff] 0.0
      %130 = vst [vmem:[#allocation2 + $0x1e0] sm:$0xff] 0.0
      %131 = vst [vmem:[#allocation2 + $0x1e8] sm:$0xff] 0.0
      %132 = vst [vmem:[#allocation2 + $0x1f0] sm:$0xff] 0.0
      %133 = vst [vmem:[#allocation2 + $0x1f8] sm:$0xff] 0.0
    $region41: #{tpu_custom_call.1} parent=1 // pred_fallthru
      _
    %v134 = vld [vmem:[%s0] sm:$0xff]
    %v135 = vld [vmem:[%s0 + $0x8] sm:$0xff]
    %v136 = vld [vmem:[%s0 + $0x10] sm:$0xff]
    %v137 = vld [vmem:[%s0 + $0x18] sm:$0xff]
    %v138 = vld [vmem:[%s0 + $0x20] sm:$0xff]
    %v139 = vld [vmem:[%s0 + $0x28] sm:$0xff]
    %v140 = vld [vmem:[%s0 + $0x30] sm:$0xff]
    %v141 = vld [vmem:[%s0 + $0x38] sm:$0xff]
    %v142 = vld [vmem:[%s0 + $0x40] sm:$0xff]
    %v143 = vld [vmem:[%s0 + $0x48] sm:$0xff]
    %v144 = vld [vmem:[%s0 + $0x50] sm:$0xff]
    %v145 = vld [vmem:[%s0 + $0x58] sm:$0xff]
    %v146 = vld [vmem:[%s0 + $0x60] sm:$0xff]
    %v147 = vld [vmem:[%s0 + $0x68] sm:$0xff]
    %v148 = vld [vmem:[%s0 + $0x70] sm:$0xff]
    %v149 = vld [vmem:[%s0 + $0x78] sm:$0xff]
    %v150 = vld [vmem:[%s0 + $0x80] sm:$0xff]
    %v151 = vld [vmem:[%s0 + $0x88] sm:$0xff]
    %v152 = vld [vmem:[%s0 + $0x90] sm:$0xff]
    %v153 = vld [vmem:[%s0 + $0x98] sm:$0xff]
    %v154 = vld [vmem:[%s0 + $0xa0] sm:$0xff]
    %v155 = vld [vmem:[%s0 + $0xa8] sm:$0xff]
    %v156 = vld [vmem:[%s0 + $0xb0] sm:$0xff]
    %v157 = vld [vmem:[%s0 + $0xb8] sm:$0xff]
    %v158 = vld [vmem:[%s0 + $0xc0] sm:$0xff]
    %v159 = vld [vmem:[%s0 + $0xc8] sm:$0xff]
    %v160 = vld [vmem:[%s0 + $0xd0] sm:$0xff]
    %v161 = vld [vmem:[%s0 + $0xd8] sm:$0xff]
    %v162 = vld [vmem:[%s0 + $0xe0] sm:$0xff]
    %v163 = vld [vmem:[%s0 + $0xe8] sm:$0xff]
    %v164 = vld [vmem:[%s0 + $0xf0] sm:$0xff]
    %v165 = vld [vmem:[%s0 + $0xf8] sm:$0xff]
    %v166 = vld [vmem:[%s0 + $0x100] sm:$0xff]
    %v167 = vld [vmem:[%s0 + $0x108] sm:$0xff]
    %v168 = vld [vmem:[%s0 + $0x110] sm:$0xff]
    %v169 = vld [vmem:[%s0 + $0x118] sm:$0xff]
    %v170 = vld [vmem:[%s0 + $0x120] sm:$0xff]
    %v171 = vld [vmem:[%s0 + $0x128] sm:$0xff]
    %v172 = vld [vmem:[%s0 + $0x130] sm:$0xff]
    %v173 = vld [vmem:[%s0 + $0x138] sm:$0xff]
    %v174 = vld [vmem:[%s0 + $0x140] sm:$0xff]
    %v175 = vld [vmem:[%s0 + $0x148] sm:$0xff]
    %v176 = vld [vmem:[%s0 + $0x150] sm:$0xff]
    %v177 = vld [vmem:[%s0 + $0x158] sm:$0xff]
    %v178 = vld [vmem:[%s0 + $0x160] sm:$0xff]
    %v179 = vld [vmem:[%s0 + $0x168] sm:$0xff]
    %v180 = vld [vmem:[%s0 + $0x170] sm:$0xff]
    %v181 = vld [vmem:[%s0 + $0x178] sm:$0xff]
    %v182 = vld [vmem:[%s0 + $0x180] sm:$0xff]
    %v183 = vld [vmem:[%s0 + $0x188] sm:$0xff]
    %v184 = vld [vmem:[%s0 + $0x190] sm:$0xff]
    %v185 = vld [vmem:[%s0 + $0x198] sm:$0xff]
    %v186 = vld [vmem:[%s0 + $0x1a0] sm:$0xff]
    %v187 = vld [vmem:[%s0 + $0x1a8] sm:$0xff]
    %v188 = vld [vmem:[%s0 + $0x1b0] sm:$0xff]
    %v189 = vld [vmem:[%s0 + $0x1b8] sm:$0xff]
    %v190 = vld [vmem:[%s0 + $0x1c0] sm:$0xff]
    %v191 = vld [vmem:[%s0 + $0x1c8] sm:$0xff]
    %v192 = vld [vmem:[%s0 + $0x1d0] sm:$0xff]
    %v193 = vld [vmem:[%s0 + $0x1d8] sm:$0xff]
    %v194 = vld [vmem:[%s0 + $0x1e0] sm:$0xff]
    %v195 = vld [vmem:[%s0 + $0x1e8] sm:$0xff]
    %v196 = vld [vmem:[%s0 + $0x1f0] sm:$0xff]
    %v197 = vld [vmem:[%s0 + $0x1f8] sm:$0xff]
    %v198 = vunpack.c.l.s8.bf16 %v134
    %v199 = vunpack.c.l.s8.bf16 %v135
    %v200 = vunpack.c.l.s8.bf16 %v136
    %v201 = vunpack.c.l.s8.bf16 %v137
    %v202 = vunpack.c.h.s8.bf16 %v134
    %v203 = vunpack.c.h.s8.bf16 %v135
    %v204 = vunpack.c.h.s8.bf16 %v136
    %v205 = vunpack.c.h.s8.bf16 %v137
    %v206 = vunpack.c.l.s8.bf16 %v138
    %v207 = vunpack.c.l.s8.bf16 %v139
    %v208 = vunpack.c.l.s8.bf16 %v140
    %v209 = vunpack.c.l.s8.bf16 %v141
    %v210 = vunpack.c.h.s8.bf16 %v138
    %v211 = vunpack.c.h.s8.bf16 %v139
    %v212 = vunpack.c.h.s8.bf16 %v140
    %v213 = vunpack.c.h.s8.bf16 %v141
    %v214 = vunpack.c.l.s8.bf16 %v142
    %v215 = vunpack.c.l.s8.bf16 %v143
    %v216 = vunpack.c.l.s8.bf16 %v144
    %v217 = vunpack.c.l.s8.bf16 %v145
    %v218 = vunpack.c.h.s8.bf16 %v142
    %v219 = vunpack.c.h.s8.bf16 %v143
    %v220 = vunpack.c.h.s8.bf16 %v144
    %v221 = vunpack.c.h.s8.bf16 %v145
    %v222 = vunpack.c.l.s8.bf16 %v146
    %v223 = vunpack.c.l.s8.bf16 %v147
    %v224 = vunpack.c.l.s8.bf16 %v148
    %v225 = vunpack.c.l.s8.bf16 %v149
    %v226 = vunpack.c.h.s8.bf16 %v146
    %v227 = vunpack.c.h.s8.bf16 %v147
    %v228 = vunpack.c.h.s8.bf16 %v148
    %v229 = vunpack.c.h.s8.bf16 %v149
    %v230 = vunpack.c.l.s8.bf16 %v150
    %v231 = vunpack.c.l.s8.bf16 %v151
    %v232 = vunpack.c.l.s8.bf16 %v152
    %v233 = vunpack.c.l.s8.bf16 %v153
    %v234 = vunpack.c.h.s8.bf16 %v150
    %v235 = vunpack.c.h.s8.bf16 %v151
    %v236 = vunpack.c.h.s8.bf16 %v152
    %v237 = vunpack.c.h.s8.bf16 %v153
    %v238 = vunpack.c.l.s8.bf16 %v154
    %v239 = vunpack.c.l.s8.bf16 %v155
    %v240 = vunpack.c.l.s8.bf16 %v156
    %v241 = vunpack.c.l.s8.bf16 %v157
    %v242 = vunpack.c.h.s8.bf16 %v154
    %v243 = vunpack.c.h.s8.bf16 %v155
    %v244 = vunpack.c.h.s8.bf16 %v156
    %v245 = vunpack.c.h.s8.bf16 %v157
    %v246 = vunpack.c.l.s8.bf16 %v158
    %v247 = vunpack.c.l.s8.bf16 %v159
    %v248 = vunpack.c.l.s8.bf16 %v160
    %v249 = vunpack.c.l.s8.bf16 %v161
    %v250 = vunpack.c.h.s8.bf16 %v158
    %v251 = vunpack.c.h.s8.bf16 %v159
    %v252 = vunpack.c.h.s8.bf16 %v160
    %v253 = vunpack.c.h.s8.bf16 %v161
    %v254 = vunpack.c.l.s8.bf16 %v162
    %v255 = vunpack.c.l.s8.bf16 %v163
    %v256 = vunpack.c.l.s8.bf16 %v164
    %v257 = vunpack.c.l.s8.bf16 %v165
    %v258 = vunpack.c.h.s8.bf16 %v162
    %v259 = vunpack.c.h.s8.bf16 %v163
    %v260 = vunpack.c.h.s8.bf16 %v164
    %v261 = vunpack.c.h.s8.bf16 %v165
    %v262 = vunpack.c.l.s8.bf16 %v166
    %v263 = vunpack.c.l.s8.bf16 %v167
    %v264 = vunpack.c.l.s8.bf16 %v168
    %v265 = vunpack.c.l.s8.bf16 %v169
    %v266 = vunpack.c.h.s8.bf16 %v166
    %v267 = vunpack.c.h.s8.bf16 %v167
    %v268 = vunpack.c.h.s8.bf16 %v168
    %v269 = vunpack.c.h.s8.bf16 %v169
    %v270 = vunpack.c.l.s8.bf16 %v170
    %v271 = vunpack.c.l.s8.bf16 %v171
    %v272 = vunpack.c.l.s8.bf16 %v172
    %v273 = vunpack.c.l.s8.bf16 %v173
    %v274 = vunpack.c.h.s8.bf16 %v170
    %v275 = vunpack.c.h.s8.bf16 %v171
    %v276 = vunpack.c.h.s8.bf16 %v172
    %v277 = vunpack.c.h.s8.bf16 %v173
    %v278 = vunpack.c.l.s8.bf16 %v174
    %v279 = vunpack.c.l.s8.bf16 %v175
    %v280 = vunpack.c.l.s8.bf16 %v176
    %v281 = vunpack.c.l.s8.bf16 %v177
    %v282 = vunpack.c.h.s8.bf16 %v174
    %v283 = vunpack.c.h.s8.bf16 %v175
    %v284 = vunpack.c.h.s8.bf16 %v176
    %v285 = vunpack.c.h.s8.bf16 %v177
    %v286 = vunpack.c.l.s8.bf16 %v178
    %v287 = vunpack.c.l.s8.bf16 %v179
    %v288 = vunpack.c.l.s8.bf16 %v180
    %v289 = vunpack.c.l.s8.bf16 %v181
    %v290 = vunpack.c.h.s8.bf16 %v178
    %v291 = vunpack.c.h.s8.bf16 %v179
    %v292 = vunpack.c.h.s8.bf16 %v180
    %v293 = vunpack.c.h.s8.bf16 %v181
    %v294 = vunpack.c.l.s8.bf16 %v182
    %v295 = vunpack.c.l.s8.bf16 %v183
    %v296 = vunpack.c.l.s8.bf16 %v184
    %v297 = vunpack.c.l.s8.bf16 %v185
    %v298 = vunpack.c.h.s8.bf16 %v182
    %v299 = vunpack.c.h.s8.bf16 %v183
    %v300 = vunpack.c.h.s8.bf16 %v184
    %v301 = vunpack.c.h.s8.bf16 %v185
    %v302 = vunpack.c.l.s8.bf16 %v186
    %v303 = vunpack.c.l.s8.bf16 %v187
    %v304 = vunpack.c.l.s8.bf16 %v188
    %v305 = vunpack.c.l.s8.bf16 %v189
    %v306 = vunpack.c.h.s8.bf16 %v186
    %v307 = vunpack.c.h.s8.bf16 %v187
    %v308 = vunpack.c.h.s8.bf16 %v188
    %v309 = vunpack.c.h.s8.bf16 %v189
    %v310 = vunpack.c.l.s8.bf16 %v190
    %v311 = vunpack.c.l.s8.bf16 %v191
    %v312 = vunpack.c.l.s8.bf16 %v192
    %v313 = vunpack.c.l.s8.bf16 %v193
    %v314 = vunpack.c.h.s8.bf16 %v190
    %v315 = vunpack.c.h.s8.bf16 %v191
    %v316 = vunpack.c.h.s8.bf16 %v192
    %v317 = vunpack.c.h.s8.bf16 %v193
    %v318 = vunpack.c.l.s8.bf16 %v194
    %v319 = vunpack.c.l.s8.bf16 %v195
    %v320 = vunpack.c.l.s8.bf16 %v196
    %v321 = vunpack.c.l.s8.bf16 %v197
    %v322 = vunpack.c.h.s8.bf16 %v194
    %v323 = vunpack.c.h.s8.bf16 %v195
    %v324 = vunpack.c.h.s8.bf16 %v196
    %v325 = vunpack.c.h.s8.bf16 %v197
    %v326 = vld [vmem:[#allocation2] sm:$0xff]
    %v327 = vld [vmem:[#allocation2 + $0x8] sm:$0xff]
    %v328 = vld [vmem:[#allocation2 + $0x10] sm:$0xff]
    %v329 = vld [vmem:[#allocation2 + $0x18] sm:$0xff]
    %v330 = vld [vmem:[#allocation2 + $0x20] sm:$0xff]
    %v331 = vld [vmem:[#allocation2 + $0x28] sm:$0xff]
    %v332 = vld [vmem:[#allocation2 + $0x30] sm:$0xff]
    %v333 = vld [vmem:[#allocation2 + $0x38] sm:$0xff]
    %v334 = vld [vmem:[#allocation2 + $0x40] sm:$0xff]
    %v335 = vld [vmem:[#allocation2 + $0x48] sm:$0xff]
    %v336 = vld [vmem:[#allocation2 + $0x50] sm:$0xff]
    %v337 = vld [vmem:[#allocation2 + $0x58] sm:$0xff]
    %v338 = vld [vmem:[#allocation2 + $0x60] sm:$0xff]
    %v339 = vld [vmem:[#allocation2 + $0x68] sm:$0xff]
    %v340 = vld [vmem:[#allocation2 + $0x70] sm:$0xff]
    %v341 = vld [vmem:[#allocation2 + $0x78] sm:$0xff]
    %v342 = vld [vmem:[#allocation2 + $0x80] sm:$0xff]
    %v343 = vld [vmem:[#allocation2 + $0x88] sm:$0xff]
    %v344 = vld [vmem:[#allocation2 + $0x90] sm:$0xff]
    %v345 = vld [vmem:[#allocation2 + $0x98] sm:$0xff]
    %v346 = vld [vmem:[#allocation2 + $0xa0] sm:$0xff]
    %v347 = vld [vmem:[#allocation2 + $0xa8] sm:$0xff]
    %v348 = vld [vmem:[#allocation2 + $0xb0] sm:$0xff]
    %v349 = vld [vmem:[#allocation2 + $0xb8] sm:$0xff]
    %v350 = vld [vmem:[#allocation2 + $0xc0] sm:$0xff]
    %v351 = vld [vmem:[#allocation2 + $0xc8] sm:$0xff]
    %v352 = vld [vmem:[#allocation2 + $0xd0] sm:$0xff]
    %v353 = vld [vmem:[#allocation2 + $0xd8] sm:$0xff]
    %v354 = vld [vmem:[#allocation2 + $0xe0] sm:$0xff]
    %v355 = vld [vmem:[#allocation2 + $0xe8] sm:$0xff]
    %v356 = vld [vmem:[#allocation2 + $0xf0] sm:$0xff]
    %v357 = vld [vmem:[#allocation2 + $0xf8] sm:$0xff]
    %v358 = vld [vmem:[#allocation2 + $0x100] sm:$0xff]
    %v359 = vld [vmem:[#allocation2 + $0x108] sm:$0xff]
    %v360 = vld [vmem:[#allocation2 + $0x110] sm:$0xff]
    %v361 = vld [vmem:[#allocation2 + $0x118] sm:$0xff]
    %v362 = vld [vmem:[#allocation2 + $0x120] sm:$0xff]
    %v363 = vld [vmem:[#allocation2 + $0x128] sm:$0xff]
    %v364 = vld [vmem:[#allocation2 + $0x130] sm:$0xff]
    %v365 = vld [vmem:[#allocation2 + $0x138] sm:$0xff]
    %v366 = vld [vmem:[#allocation2 + $0x140] sm:$0xff]
    %v367 = vld [vmem:[#allocation2 + $0x148] sm:$0xff]
    %v368 = vld [vmem:[#allocation2 + $0x150] sm:$0xff]
    %v369 = vld [vmem:[#allocation2 + $0x158] sm:$0xff]
    %v370 = vld [vmem:[#allocation2 + $0x160] sm:$0xff]
    %v371 = vld [vmem:[#allocation2 + $0x168] sm:$0xff]
    %v372 = vld [vmem:[#allocation2 + $0x170] sm:$0xff]
    %v373 = vld [vmem:[#allocation2 + $0x178] sm:$0xff]
    %v374 = vld [vmem:[#allocation2 + $0x180] sm:$0xff]
    %v375 = vld [vmem:[#allocation2 + $0x188] sm:$0xff]
    %v376 = vld [vmem:[#allocation2 + $0x190] sm:$0xff]
    %v377 = vld [vmem:[#allocation2 + $0x198] sm:$0xff]
    %v378 = vld [vmem:[#allocation2 + $0x1a0] sm:$0xff]
    %v379 = vld [vmem:[#allocation2 + $0x1a8] sm:$0xff]
    %v380 = vld [vmem:[#allocation2 + $0x1b0] sm:$0xff]
    %v381 = vld [vmem:[#allocation2 + $0x1b8] sm:$0xff]
    %v382 = vld [vmem:[#allocation2 + $0x1c0] sm:$0xff]
    %v383 = vld [vmem:[#allocation2 + $0x1c8] sm:$0xff]
    %v384 = vld [vmem:[#allocation2 + $0x1d0] sm:$0xff]
    %v385 = vld [vmem:[#allocation2 + $0x1d8] sm:$0xff]
    %v386 = vld [vmem:[#allocation2 + $0x1e0] sm:$0xff]
    %v387 = vld [vmem:[#allocation2 + $0x1e8] sm:$0xff]
    %v388 = vld [vmem:[#allocation2 + $0x1f0] sm:$0xff]
    %v389 = vld [vmem:[#allocation2 + $0x1f8] sm:$0xff]
    %v390 = vld [vmem:[#allocation3] sm:$0xf]
    %v391 = vld [vmem:[#allocation3 + $0x4] sm:$0xf]
    %v392 = vld [vmem:[#allocation3 + $0x8] sm:$0xf]
    %v393 = vld [vmem:[#allocation3 + $0xc] sm:$0xf]
    %v394 = vld [vmem:[#allocation3 + $0x10] sm:$0xf]
    %v395 = vld [vmem:[#allocation3 + $0x14] sm:$0xf]
    %v396 = vld [vmem:[#allocation3 + $0x18] sm:$0xf]
    %v397 = vld [vmem:[#allocation3 + $0x1c] sm:$0xf]
    %v398 = vld [vmem:[#allocation3 + $0x20] sm:$0xf]
    %v399 = vld [vmem:[#allocation3 + $0x24] sm:$0xf]
    %v400 = vld [vmem:[#allocation3 + $0x28] sm:$0xf]
    %v401 = vld [vmem:[#allocation3 + $0x2c] sm:$0xf]
    %v402 = vld [vmem:[#allocation3 + $0x30] sm:$0xf]
    %v403 = vld [vmem:[#allocation3 + $0x34] sm:$0xf]
    %v404 = vld [vmem:[#allocation3 + $0x38] sm:$0xf]
    %v405 = vld [vmem:[#allocation3 + $0x3c] sm:$0xf]
    %v406 = vld [vmem:[#allocation3 + $0x40] sm:$0xf]
    %v407 = vld [vmem:[#allocation3 + $0x44] sm:$0xf]
    %v408 = vld [vmem:[#allocation3 + $0x48] sm:$0xf]
    %v409 = vld [vmem:[#allocation3 + $0x4c] sm:$0xf]
    %v410 = vld [vmem:[#allocation3 + $0x50] sm:$0xf]
    %v411 = vld [vmem:[#allocation3 + $0x54] sm:$0xf]
    %v412 = vld [vmem:[#allocation3 + $0x58] sm:$0xf]
    %v413 = vld [vmem:[#allocation3 + $0x5c] sm:$0xf]
    %v414 = vld [vmem:[#allocation3 + $0x60] sm:$0xf]
    %v415 = vld [vmem:[#allocation3 + $0x64] sm:$0xf]
    %v416 = vld [vmem:[#allocation3 + $0x68] sm:$0xf]
    %v417 = vld [vmem:[#allocation3 + $0x6c] sm:$0xf]
    %v418 = vld [vmem:[#allocation3 + $0x70] sm:$0xf]
    %v419 = vld [vmem:[#allocation3 + $0x74] sm:$0xf]
    %v420 = vld [vmem:[#allocation3 + $0x78] sm:$0xf]
    %v421 = vld [vmem:[#allocation3 + $0x7c] sm:$0xf]
    %v422 = vld [vmem:[#allocation3 + $0x80] sm:$0xf]
    %v423 = vld [vmem:[#allocation3 + $0x84] sm:$0xf]
    %v424 = vld [vmem:[#allocation3 + $0x88] sm:$0xf]
    %v425 = vld [vmem:[#allocation3 + $0x8c] sm:$0xf]
    %v426 = vld [vmem:[#allocation3 + $0x90] sm:$0xf]
    %v427 = vld [vmem:[#allocation3 + $0x94] sm:$0xf]
    %v428 = vld [vmem:[#allocation3 + $0x98] sm:$0xf]
    %v429 = vld [vmem:[#allocation3 + $0x9c] sm:$0xf]
    %v430 = vld [vmem:[#allocation3 + $0xa0] sm:$0xf]
    %v431 = vld [vmem:[#allocation3 + $0xa4] sm:$0xf]
    %v432 = vld [vmem:[#allocation3 + $0xa8] sm:$0xf]
    %v433 = vld [vmem:[#allocation3 + $0xac] sm:$0xf]
    %v434 = vld [vmem:[#allocation3 + $0xb0] sm:$0xf]
    %v435 = vld [vmem:[#allocation3 + $0xb4] sm:$0xf]
    %v436 = vld [vmem:[#allocation3 + $0xb8] sm:$0xf]
    %v437 = vld [vmem:[#allocation3 + $0xbc] sm:$0xf]
    %v438 = vld [vmem:[#allocation3 + $0xc0] sm:$0xf]
    %v439 = vld [vmem:[#allocation3 + $0xc4] sm:$0xf]
    %v440 = vld [vmem:[#allocation3 + $0xc8] sm:$0xf]
    %v441 = vld [vmem:[#allocation3 + $0xcc] sm:$0xf]
    %v442 = vld [vmem:[#allocation3 + $0xd0] sm:$0xf]
    %v443 = vld [vmem:[#allocation3 + $0xd4] sm:$0xf]
    %v444 = vld [vmem:[#allocation3 + $0xd8] sm:$0xf]
    %v445 = vld [vmem:[#allocation3 + $0xdc] sm:$0xf]
    %v446 = vld [vmem:[#allocation3 + $0xe0] sm:$0xf]
    %v447 = vld [vmem:[#allocation3 + $0xe4] sm:$0xf]
    %v448 = vld [vmem:[#allocation3 + $0xe8] sm:$0xf]
    %v449 = vld [vmem:[#allocation3 + $0xec] sm:$0xf]
    %v450 = vld [vmem:[#allocation3 + $0xf0] sm:$0xf]
    %v451 = vld [vmem:[#allocation3 + $0xf4] sm:$0xf]
    %v452 = vld [vmem:[#allocation3 + $0xf8] sm:$0xf]
    %v453 = vld [vmem:[#allocation3 + $0xfc] sm:$0xf]
    %v518 = vunpack.c.l.b16 %v390
    %v519 = vunpack.c.l.b16 %v391
    %v520 = vunpack.c.l.b16 %v392
    %v521 = vunpack.c.l.b16 %v393
    %v522 = vunpack.c.l.b16 %v394
    %v523 = vunpack.c.l.b16 %v395
    %v524 = vunpack.c.l.b16 %v396
    %v525 = vunpack.c.l.b16 %v397
    %v526 = vunpack.c.l.b16 %v398
    %v527 = vunpack.c.l.b16 %v399
    %v528 = vunpack.c.l.b16 %v400
    %v529 = vunpack.c.l.b16 %v401
    %v530 = vunpack.c.l.b16 %v402
    %v531 = vunpack.c.l.b16 %v403
    %v532 = vunpack.c.l.b16 %v404
    %v533 = vunpack.c.l.b16 %v405
    %v534 = vunpack.c.l.b16 %v406
    %v535 = vunpack.c.l.b16 %v407
    %v536 = vunpack.c.l.b16 %v408
    %v537 = vunpack.c.l.b16 %v409
    %v538 = vunpack.c.l.b16 %v410
    %v539 = vunpack.c.l.b16 %v411
    %v540 = vunpack.c.l.b16 %v412
    %v541 = vunpack.c.l.b16 %v413
    %v542 = vunpack.c.l.b16 %v414
    %v543 = vunpack.c.l.b16 %v415
    %v544 = vunpack.c.l.b16 %v416
    %v545 = vunpack.c.l.b16 %v417
    %v546 = vunpack.c.l.b16 %v418
    %v547 = vunpack.c.l.b16 %v419
    %v548 = vunpack.c.l.b16 %v420
    %v549 = vunpack.c.l.b16 %v421
    %v550 = vunpack.c.l.b16 %v422
    %v551 = vunpack.c.l.b16 %v423
    %v552 = vunpack.c.l.b16 %v424
    %v553 = vunpack.c.l.b16 %v425
    %v554 = vunpack.c.l.b16 %v426
    %v555 = vunpack.c.l.b16 %v427
    %v556 = vunpack.c.l.b16 %v428
    %v557 = vunpack.c.l.b16 %v429
    %v558 = vunpack.c.l.b16 %v430
    %v559 = vunpack.c.l.b16 %v431
    %v560 = vunpack.c.l.b16 %v432
    %v561 = vunpack.c.l.b16 %v433
    %v562 = vunpack.c.l.b16 %v434
    %v563 = vunpack.c.l.b16 %v435
    %v564 = vunpack.c.l.b16 %v436
    %v565 = vunpack.c.l.b16 %v437
    %v566 = vunpack.c.l.b16 %v438
    %v567 = vunpack.c.l.b16 %v439
    %v568 = vunpack.c.l.b16 %v440
    %v569 = vunpack.c.l.b16 %v441
    %v570 = vunpack.c.l.b16 %v442
    %v571 = vunpack.c.l.b16 %v443
    %v572 = vunpack.c.l.b16 %v444
    %v573 = vunpack.c.l.b16 %v445
    %v574 = vunpack.c.l.b16 %v446
    %v575 = vunpack.c.l.b16 %v447
    %v576 = vunpack.c.l.b16 %v448
    %v577 = vunpack.c.l.b16 %v449
    %v578 = vunpack.c.l.b16 %v450
    %v579 = vunpack.c.l.b16 %v451
    %v580 = vunpack.c.l.b16 %v452
    %v581 = vunpack.c.l.b16 %v453
    %v582 = vpack.c.b16 %v519, %v518
    %v583 = vpack.c.b16 %v521, %v520
    %v584 = vpack.c.b16 %v523, %v522
    %v585 = vpack.c.b16 %v525, %v524
    %v586 = vpack.c.b16 %v527, %v526
    %v587 = vpack.c.b16 %v529, %v528
    %v588 = vpack.c.b16 %v531, %v530
    %v589 = vpack.c.b16 %v533, %v532
    %v590 = vpack.c.b16 %v535, %v534
    %v591 = vpack.c.b16 %v537, %v536
    %v592 = vpack.c.b16 %v539, %v538
    %v593 = vpack.c.b16 %v541, %v540
    %v594 = vpack.c.b16 %v543, %v542
    %v595 = vpack.c.b16 %v545, %v544
    %v596 = vpack.c.b16 %v547, %v546
    %v597 = vpack.c.b16 %v549, %v548
    %v598 = vpack.c.b16 %v551, %v550
    %v599 = vpack.c.b16 %v553, %v552
    %v600 = vpack.c.b16 %v555, %v554
    %v601 = vpack.c.b16 %v557, %v556
    %v602 = vpack.c.b16 %v559, %v558
    %v603 = vpack.c.b16 %v561, %v560
    %v604 = vpack.c.b16 %v563, %v562
    %v605 = vpack.c.b16 %v565, %v564
    %v606 = vpack.c.b16 %v567, %v566
    %v607 = vpack.c.b16 %v569, %v568
    %v608 = vpack.c.b16 %v571, %v570
    %v609 = vpack.c.b16 %v573, %v572
    %v610 = vpack.c.b16 %v575, %v574
    %v611 = vpack.c.b16 %v577, %v576
    %v612 = vpack.c.b16 %v579, %v578
    %v613 = vpack.c.b16 %v581, %v580
    %646 = vmatprep.subr.bf16.mxu0 0
    %647 = vmatpush1.bf16.msra.mxu0 %v582
    %648 = vmatprep.subr.bf16.mxu0 0
    %649 = vmatpush1.bf16.msra.mxu0 %v583
    %650 = vmatprep.subr.bf16.mxu0 0
    %651 = vmatpush1.bf16.msra.mxu0 %v584
    %652 = vmatprep.subr.bf16.mxu0 0
    %653 = vmatpush1.bf16.msra.mxu0 %v585
    %654 = vmatprep.subr.bf16.mxu0 0
    %655 = vmatpush1.bf16.msra.mxu0 %v586
    %656 = vmatprep.subr.bf16.mxu0 0
    %657 = vmatpush1.bf16.msra.mxu0 %v587
    %658 = vmatprep.subr.bf16.mxu0 0
    %659 = vmatpush1.bf16.msra.mxu0 %v588
    %660 = vmatprep.subr.bf16.mxu0 0
    %661 = vmatpush1.bf16.msra.mxu0 %v589
    %662 = vmatprep.subr.bf16.mxu0 0
    %663 = vmatpush1.bf16.msra.mxu0 %v590
    %664 = vmatprep.subr.bf16.mxu0 0
    %665 = vmatpush1.bf16.msra.mxu0 %v591
    %666 = vmatprep.subr.bf16.mxu0 0
    %667 = vmatpush1.bf16.msra.mxu0 %v592
    %668 = vmatprep.subr.bf16.mxu0 0
    %669 = vmatpush1.bf16.msra.mxu0 %v593
    %670 = vmatprep.subr.bf16.mxu0 0
    %671 = vmatpush1.bf16.msra.mxu0 %v594
    %672 = vmatprep.subr.bf16.mxu0 0
    %673 = vmatpush1.bf16.msra.mxu0 %v595
    %674 = vmatprep.subr.bf16.mxu0 0
    %675 = vmatpush1.bf16.msra.mxu0 %v596
    %676 = vmatprep.subr.bf16.mxu0 0
    %677 = vmatpush1.bf16.msra.mxu0 %v597
    %678 = vmatprep.mubr.bf16.mxu0 %v199
    %679 = vmatmul.mubr.bf16.gmra.mrb[0].mxu0 %v198
    %v680 = vpop.f32.mrb[0].mxu0
    %v681 = vadd.f32 0.0, %v680
    %v682 = vpop.f32.mrb[0].mxu0
    %v683 = vpop.f32.mrb[0].mxu0
    %v684 = vadd.f32 0.0, %v683
    %v685 = vpop.f32.mrb[0].mxu0
    %686 = vmatprep.mubr.bf16.mxu0 %v203
    %687 = vmatmul.mubr.bf16.gmra.mrb[0].mxu0 %v202
    %v688 = vpop.f32.mrb[0].mxu0
    %v689 = vadd.f32 0.0, %v688
    %v690 = vpop.f32.mrb[0].mxu0
    %v691 = vpop.f32.mrb[0].mxu0
    %v692 = vadd.f32 0.0, %v691
    %v693 = vpop.f32.mrb[0].mxu0
    %694 = vmatprep.mubr.bf16.mxu0 %v207
    %695 = vmatmul.mubr.bf16.gmra.mrb[0].mxu0 %v206
    %v696 = vpop.f32.mrb[0].mxu0
    %v697 = vadd.f32 0.0, %v696
    %v698 = vpop.f32.mrb[0].mxu0
    %v699 = vpop.f32.mrb[0].mxu0
    %v700 = vadd.f32 0.0, %v699
    %v701 = vpop.f32.mrb[0].mxu0
    %702 = vmatprep.mubr.bf16.mxu0 %v211
    %703 = vmatmul.mubr.bf16.gmra.mrb[0].mxu0 %v210
    %v704 = vpop.f32.mrb[0].mxu0
    %v705 = vadd.f32 0.0, %v704
    %v706 = vpop.f32.mrb[0].mxu0
    %v707 = vpop.f32.mrb[0].mxu0
    %v708 = vadd.f32 0.0, %v707
    %v709 = vpop.f32.mrb[0].mxu0
    %710 = vmatprep.mubr.bf16.mxu0 %v215
    %711 = vmatmul.mubr.bf16.gmra.mrb[0].mxu0 %v214
    %v712 = vpop.f32.mrb[0].mxu0
    %v713 = vadd.f32 0.0, %v712
    %v714 = vpop.f32.mrb[0].mxu0
    %v715 = vpop.f32.mrb[0].mxu0
    %v716 = vadd.f32 0.0, %v715
    %v717 = vpop.f32.mrb[0].mxu0
    %718 = vmatprep.mubr.bf16.mxu0 %v219
    %719 = vmatmul.mubr.bf16.gmra.mrb[0].mxu0 %v218
    %v720 = vpop.f32.mrb[0].mxu0
    %v721 = vadd.f32 0.0, %v720
    %v722 = vpop.f32.mrb[0].mxu0
    %v723 = vpop.f32.mrb[0].mxu0
    %v724 = vadd.f32 0.0, %v723
    %v725 = vpop.f32.mrb[0].mxu0
    %726 = vmatprep.mubr.bf16.mxu0 %v223
    %727 = vmatmul.mubr.bf16.gmra.mrb[0].mxu0 %v222
    %v728 = vpop.f32.mrb[0].mxu0
    %v729 = vadd.f32 0.0, %v728
    %v730 = vpop.f32.mrb[0].mxu0
    %v731 = vpop.f32.mrb[0].mxu0
    %v732 = vadd.f32 0.0, %v731
    %v733 = vpop.f32.mrb[0].mxu0
    %734 = vmatprep.mubr.bf16.mxu0 %v227
    %735 = vmatmul.mubr.bf16.gmra.mrb[0].mxu0 %v226
    %v736 = vpop.f32.mrb[0].mxu0
    %v737 = vadd.f32 0.0, %v736
    %v738 = vpop.f32.mrb[0].mxu0
    %v739 = vpop.f32.mrb[0].mxu0
    %v740 = vadd.f32 0.0, %v739
    %v741 = vpop.f32.mrb[0].mxu0
    %742 = vmatprep.mubr.bf16.mxu0 %v231
    %743 = vmatmul.mubr.bf16.gmra.mrb[0].mxu0 %v230
    %v744 = vpop.f32.mrb[0].mxu0
    %v745 = vadd.f32 0.0, %v744
    %v746 = vpop.f32.mrb[0].mxu0
    %v747 = vpop.f32.mrb[0].mxu0
    %v748 = vadd.f32 0.0, %v747
    %v749 = vpop.f32.mrb[0].mxu0
    %750 = vmatprep.mubr.bf16.mxu0 %v235
    %751 = vmatmul.mubr.bf16.gmra.mrb[0].mxu0 %v234
    %v752 = vpop.f32.mrb[0].mxu0
    %v753 = vadd.f32 0.0, %v752
    %v754 = vpop.f32.mrb[0].mxu0
    %v755 = vpop.f32.mrb[0].mxu0
    %v756 = vadd.f32 0.0, %v755
    %v757 = vpop.f32.mrb[0].mxu0
    %758 = vmatprep.mubr.bf16.mxu0 %v239
    %759 = vmatmul.mubr.bf16.gmra.mrb[0].mxu0 %v238
    %v760 = vpop.f32.mrb[0].mxu0
    %v761 = vadd.f32 0.0, %v760
    %v762 = vpop.f32.mrb[0].mxu0
    %v763 = vpop.f32.mrb[0].mxu0
    %v764 = vadd.f32 0.0, %v763
    %v765 = vpop.f32.mrb[0].mxu0
    %766 = vmatprep.mubr.bf16.mxu0 %v243
    %767 = vmatmul.mubr.bf16.gmra.mrb[0].mxu0 %v242
    %v768 = vpop.f32.mrb[0].mxu0
    %v769 = vadd.f32 0.0, %v768
    %v770 = vpop.f32.mrb[0].mxu0
    %v771 = vpop.f32.mrb[0].mxu0
    %v772 = vadd.f32 0.0, %v771
    %v773 = vpop.f32.mrb[0].mxu0
    %774 = vmatprep.mubr.bf16.mxu0 %v247
    %775 = vmatmul.mubr.bf16.gmra.mrb[0].mxu0 %v246
    %v776 = vpop.f32.mrb[0].mxu0
    %v777 = vadd.f32 0.0, %v776
    %v778 = vpop.f32.mrb[0].mxu0
    %v779 = vpop.f32.mrb[0].mxu0
    %v780 = vadd.f32 0.0, %v779
    %v781 = vpop.f32.mrb[0].mxu0
    %782 = vmatprep.mubr.bf16.mxu0 %v251
    %783 = vmatmul.mubr.bf16.gmra.mrb[0].mxu0 %v250
    %v784 = vpop.f32.mrb[0].mxu0
    %v785 = vadd.f32 0.0, %v784
    %v786 = vpop.f32.mrb[0].mxu0
    %v787 = vpop.f32.mrb[0].mxu0
    %v788 = vadd.f32 0.0, %v787
    %v789 = vpop.f32.mrb[0].mxu0
    %790 = vmatprep.mubr.bf16.mxu0 %v255
    %791 = vmatmul.mubr.bf16.gmra.mrb[0].mxu0 %v254
    %v792 = vpop.f32.mrb[0].mxu0
    %v793 = vadd.f32 0.0, %v792
    %v794 = vpop.f32.mrb[0].mxu0
    %v795 = vpop.f32.mrb[0].mxu0
    %v796 = vadd.f32 0.0, %v795
    %v797 = vpop.f32.mrb[0].mxu0
    %798 = vmatprep.mubr.bf16.mxu0 %v259
    %799 = vmatmul.mubr.bf16.gmra.mrb[0].mxu0 %v258
    %v800 = vpop.f32.mrb[0].mxu0
    %v801 = vadd.f32 0.0, %v800
    %v802 = vpop.f32.mrb[0].mxu0
    %v803 = vpop.f32.mrb[0].mxu0
    %v804 = vadd.f32 0.0, %v803
    %v805 = vpop.f32.mrb[0].mxu0
    %806 = vmatprep.mubr.bf16.mxu0 %v263
    %807 = vmatmul.mubr.bf16.gmra.mrb[0].mxu0 %v262
    %v808 = vpop.f32.mrb[0].mxu0
    %v809 = vadd.f32 0.0, %v808
    %v810 = vpop.f32.mrb[0].mxu0
    %v811 = vpop.f32.mrb[0].mxu0
    %v812 = vadd.f32 0.0, %v811
    %v813 = vpop.f32.mrb[0].mxu0
    %814 = vmatprep.mubr.bf16.mxu0 %v267
    %815 = vmatmul.mubr.bf16.gmra.mrb[0].mxu0 %v266
    %v816 = vpop.f32.mrb[0].mxu0
    %v817 = vadd.f32 0.0, %v816
    %v818 = vpop.f32.mrb[0].mxu0
    %v819 = vpop.f32.mrb[0].mxu0
    %v820 = vadd.f32 0.0, %v819
    %v821 = vpop.f32.mrb[0].mxu0
    %822 = vmatprep.mubr.bf16.mxu0 %v271
    %823 = vmatmul.mubr.bf16.gmra.mrb[0].mxu0 %v270
    %v824 = vpop.f32.mrb[0].mxu0
    %v825 = vadd.f32 0.0, %v824
    %v826 = vpop.f32.mrb[0].mxu0
    %v827 = vpop.f32.mrb[0].mxu0
    %v828 = vadd.f32 0.0, %v827
    %v829 = vpop.f32.mrb[0].mxu0
    %830 = vmatprep.mubr.bf16.mxu0 %v275
    %831 = vmatmul.mubr.bf16.gmra.mrb[0].mxu0 %v274
    %v832 = vpop.f32.mrb[0].mxu0
    %v833 = vadd.f32 0.0, %v832
    %v834 = vpop.f32.mrb[0].mxu0
    %v835 = vpop.f32.mrb[0].mxu0
    %v836 = vadd.f32 0.0, %v835
    %v837 = vpop.f32.mrb[0].mxu0
    %838 = vmatprep.mubr.bf16.mxu0 %v279
    %839 = vmatmul.mubr.bf16.gmra.mrb[0].mxu0 %v278
    %v840 = vpop.f32.mrb[0].mxu0
    %v841 = vadd.f32 0.0, %v840
    %v842 = vpop.f32.mrb[0].mxu0
    %v843 = vpop.f32.mrb[0].mxu0
    %v844 = vadd.f32 0.0, %v843
    %v845 = vpop.f32.mrb[0].mxu0
    %846 = vmatprep.mubr.bf16.mxu0 %v283
    %847 = vmatmul.mubr.bf16.gmra.mrb[0].mxu0 %v282
    %v848 = vpop.f32.mrb[0].mxu0
    %v849 = vadd.f32 0.0, %v848
    %v850 = vpop.f32.mrb[0].mxu0
    %v851 = vpop.f32.mrb[0].mxu0
    %v852 = vadd.f32 0.0, %v851
    %v853 = vpop.f32.mrb[0].mxu0
    %854 = vmatprep.mubr.bf16.mxu0 %v287
    %855 = vmatmul.mubr.bf16.gmra.mrb[0].mxu0 %v286
    %v856 = vpop.f32.mrb[0].mxu0
    %v857 = vadd.f32 0.0, %v856
    %v858 = vpop.f32.mrb[0].mxu0
    %v859 = vpop.f32.mrb[0].mxu0
    %v860 = vadd.f32 0.0, %v859
    %v861 = vpop.f32.mrb[0].mxu0
    %862 = vmatprep.mubr.bf16.mxu0 %v291
    %863 = vmatmul.mubr.bf16.gmra.mrb[0].mxu0 %v290
    %v864 = vpop.f32.mrb[0].mxu0
    %v865 = vadd.f32 0.0, %v864
    %v866 = vpop.f32.mrb[0].mxu0
    %v867 = vpop.f32.mrb[0].mxu0
    %v868 = vadd.f32 0.0, %v867
    %v869 = vpop.f32.mrb[0].mxu0
    %870 = vmatprep.mubr.bf16.mxu0 %v295
    %871 = vmatmul.mubr.bf16.gmra.mrb[0].mxu0 %v294
    %v872 = vpop.f32.mrb[0].mxu0
    %v873 = vadd.f32 0.0, %v872
    %v874 = vpop.f32.mrb[0].mxu0
    %v875 = vpop.f32.mrb[0].mxu0
    %v876 = vadd.f32 0.0, %v875
    %v877 = vpop.f32.mrb[0].mxu0
    %878 = vmatprep.mubr.bf16.mxu0 %v299
    %879 = vmatmul.mubr.bf16.gmra.mrb[0].mxu0 %v298
    %v880 = vpop.f32.mrb[0].mxu0
    %v881 = vadd.f32 0.0, %v880
    %v882 = vpop.f32.mrb[0].mxu0
    %v883 = vpop.f32.mrb[0].mxu0
    %v884 = vadd.f32 0.0, %v883
    %v885 = vpop.f32.mrb[0].mxu0
    %886 = vmatprep.mubr.bf16.mxu0 %v303
    %887 = vmatmul.mubr.bf16.gmra.mrb[0].mxu0 %v302
    %v888 = vpop.f32.mrb[0].mxu0
    %v889 = vadd.f32 0.0, %v888
    %v890 = vpop.f32.mrb[0].mxu0
    %v891 = vpop.f32.mrb[0].mxu0
    %v892 = vadd.f32 0.0, %v891
    %v893 = vpop.f32.mrb[0].mxu0
    %894 = vmatprep.mubr.bf16.mxu0 %v307
    %895 = vmatmul.mubr.bf16.gmra.mrb[0].mxu0 %v306
    %v896 = vpop.f32.mrb[0].mxu0
    %v897 = vadd.f32 0.0, %v896
    %v898 = vpop.f32.mrb[0].mxu0
    %v899 = vpop.f32.mrb[0].mxu0
    %v900 = vadd.f32 0.0, %v899
    %v901 = vpop.f32.mrb[0].mxu0
    %902 = vmatprep.mubr.bf16.mxu0 %v311
    %903 = vmatmul.mubr.bf16.gmra.mrb[0].mxu0 %v310
    %v904 = vpop.f32.mrb[0].mxu0
    %v905 = vadd.f32 0.0, %v904
    %v906 = vpop.f32.mrb[0].mxu0
    %v907 = vpop.f32.mrb[0].mxu0
    %v908 = vadd.f32 0.0, %v907
    %v909 = vpop.f32.mrb[0].mxu0
    %910 = vmatprep.mubr.bf16.mxu0 %v315
    %911 = vmatmul.mubr.bf16.gmra.mrb[0].mxu0 %v314
    %v912 = vpop.f32.mrb[0].mxu0
    %v913 = vadd.f32 0.0, %v912
    %v914 = vpop.f32.mrb[0].mxu0
    %v915 = vpop.f32.mrb[0].mxu0
    %v916 = vadd.f32 0.0, %v915
    %v917 = vpop.f32.mrb[0].mxu0
    %918 = vmatprep.mubr.bf16.mxu0 %v319
    %919 = vmatmul.mubr.bf16.gmra.mrb[0].mxu0 %v318
    %v920 = vpop.f32.mrb[0].mxu0
    %v921 = vadd.f32 0.0, %v920
    %v922 = vpop.f32.mrb[0].mxu0
    %v923 = vpop.f32.mrb[0].mxu0
    %v924 = vadd.f32 0.0, %v923
    %v925 = vpop.f32.mrb[0].mxu0
    %926 = vmatprep.mubr.bf16.mxu0 %v323
    %927 = vmatmul.mubr.bf16.gmra.mrb[0].mxu0 %v322
    %v928 = vpop.f32.mrb[0].mxu0
    %v929 = vadd.f32 0.0, %v928
    %v930 = vpop.f32.mrb[0].mxu0
    %v931 = vpop.f32.mrb[0].mxu0
    %v932 = vadd.f32 0.0, %v931
    %v933 = vpop.f32.mrb[0].mxu0
    %934 = vdwg.mxu0
    %935 = vmatprep.subr.bf16.mxu0 0
    %936 = vmatpush1.bf16.msra.mxu0 %v598
    %937 = vmatprep.subr.bf16.mxu0 0
    %938 = vmatpush1.bf16.msra.mxu0 %v599
    %939 = vmatprep.subr.bf16.mxu0 0
    %940 = vmatpush1.bf16.msra.mxu0 %v600
    %941 = vmatprep.subr.bf16.mxu0 0
    %942 = vmatpush1.bf16.msra.mxu0 %v601
    %943 = vmatprep.subr.bf16.mxu0 0
    %944 = vmatpush1.bf16.msra.mxu0 %v602
    %945 = vmatprep.subr.bf16.mxu0 0
    %946 = vmatpush1.bf16.msra.mxu0 %v603
    %947 = vmatprep.subr.bf16.mxu0 0
    %948 = vmatpush1.bf16.msra.mxu0 %v604
    %949 = vmatprep.subr.bf16.mxu0 0
    %950 = vmatpush1.bf16.msra.mxu0 %v605
    %951 = vmatprep.subr.bf16.mxu0 0
    %952 = vmatpush1.bf16.msra.mxu0 %v606
    %953 = vmatprep.subr.bf16.mxu0 0
    %954 = vmatpush1.bf16.msra.mxu0 %v607
    %955 = vmatprep.subr.bf16.mxu0 0
    %956 = vmatpush1.bf16.msra.mxu0 %v608
    %957 = vmatprep.subr.bf16.mxu0 0
    %958 = vmatpush1.bf16.msra.mxu0 %v609
    %959 = vmatprep.subr.bf16.mxu0 0
    %960 = vmatpush1.bf16.msra.mxu0 %v610
    %961 = vmatprep.subr.bf16.mxu0 0
    %962 = vmatpush1.bf16.msra.mxu0 %v611
    %963 = vmatprep.subr.bf16.mxu0 0
    %964 = vmatpush1.bf16.msra.mxu0 %v612
    %965 = vmatprep.subr.bf16.mxu0 0
    %966 = vmatpush1.bf16.msra.mxu0 %v613
    %967 = vmatprep.mubr.bf16.mxu0 %v201
    %968 = vmatmul.mubr.bf16.gmra.mrb[0].mxu0 %v200
    %v969 = vpop.f32.mrb[0].mxu0
    %v970 = vadd.f32 %v681, %v969
    %v971 = vpop.f32.mrb[0].mxu0
    %v972 = vpop.f32.mrb[0].mxu0
    %v973 = vadd.f32 %v684, %v972
    %v974 = vpop.f32.mrb[0].mxu0
    %975 = vmatprep.mubr.bf16.mxu0 %v205
    %976 = vmatmul.mubr.bf16.gmra.mrb[0].mxu0 %v204
    %v977 = vpop.f32.mrb[0].mxu0
    %v978 = vadd.f32 %v689, %v977
    %v979 = vpop.f32.mrb[0].mxu0
    %v980 = vpop.f32.mrb[0].mxu0
    %v981 = vadd.f32 %v692, %v980
    %v982 = vpop.f32.mrb[0].mxu0
    %983 = vmatprep.mubr.bf16.mxu0 %v209
    %984 = vmatmul.mubr.bf16.gmra.mrb[0].mxu0 %v208
    %v985 = vpop.f32.mrb[0].mxu0
    %v986 = vadd.f32 %v697, %v985
    %v987 = vpop.f32.mrb[0].mxu0
    %v988 = vpop.f32.mrb[0].mxu0
    %v989 = vadd.f32 %v700, %v988
    %v990 = vpop.f32.mrb[0].mxu0
    %991 = vmatprep.mubr.bf16.mxu0 %v213
    %992 = vmatmul.mubr.bf16.gmra.mrb[0].mxu0 %v212
    %v993 = vpop.f32.mrb[0].mxu0
    %v994 = vadd.f32 %v705, %v993
    %v995 = vpop.f32.mrb[0].mxu0
    %v996 = vpop.f32.mrb[0].mxu0
    %v997 = vadd.f32 %v708, %v996
    %v998 = vpop.f32.mrb[0].mxu0
    %999 = vmatprep.mubr.bf16.mxu0 %v217
    %1000 = vmatmul.mubr.bf16.gmra.mrb[0].mxu0 %v216
    %v1001 = vpop.f32.mrb[0].mxu0
    %v1002 = vadd.f32 %v713, %v1001
    %v1003 = vpop.f32.mrb[0].mxu0
    %v1004 = vpop.f32.mrb[0].mxu0
    %v1005 = vadd.f32 %v716, %v1004
    %v1006 = vpop.f32.mrb[0].mxu0
    %1007 = vmatprep.mubr.bf16.mxu0 %v221
    %1008 = vmatmul.mubr.bf16.gmra.mrb[0].mxu0 %v220
    %v1009 = vpop.f32.mrb[0].mxu0
    %v1010 = vadd.f32 %v721, %v1009
    %v1011 = vpop.f32.mrb[0].mxu0
    %v1012 = vpop.f32.mrb[0].mxu0
    %v1013 = vadd.f32 %v724, %v1012
    %v1014 = vpop.f32.mrb[0].mxu0
    %1015 = vmatprep.mubr.bf16.mxu0 %v225
    %1016 = vmatmul.mubr.bf16.gmra.mrb[0].mxu0 %v224
    %v1017 = vpop.f32.mrb[0].mxu0
    %v1018 = vadd.f32 %v729, %v1017
    %v1019 = vpop.f32.mrb[0].mxu0
    %v1020 = vpop.f32.mrb[0].mxu0
    %v1021 = vadd.f32 %v732, %v1020
    %v1022 = vpop.f32.mrb[0].mxu0
    %1023 = vmatprep.mubr.bf16.mxu0 %v229
    %1024 = vmatmul.mubr.bf16.gmra.mrb[0].mxu0 %v228
    %v1025 = vpop.f32.mrb[0].mxu0
    %v1026 = vadd.f32 %v737, %v1025
    %v1027 = vpop.f32.mrb[0].mxu0
    %v1028 = vpop.f32.mrb[0].mxu0
    %v1029 = vadd.f32 %v740, %v1028
    %v1030 = vpop.f32.mrb[0].mxu0
    %1031 = vmatprep.mubr.bf16.mxu0 %v233
    %1032 = vmatmul.mubr.bf16.gmra.mrb[0].mxu0 %v232
    %v1033 = vpop.f32.mrb[0].mxu0
    %v1034 = vadd.f32 %v745, %v1033
    %v1035 = vpop.f32.mrb[0].mxu0
    %v1036 = vpop.f32.mrb[0].mxu0
    %v1037 = vadd.f32 %v748, %v1036
    %v1038 = vpop.f32.mrb[0].mxu0
    %1039 = vmatprep.mubr.bf16.mxu0 %v237
    %1040 = vmatmul.mubr.bf16.gmra.mrb[0].mxu0 %v236
    %v1041 = vpop.f32.mrb[0].mxu0
    %v1042 = vadd.f32 %v753, %v1041
    %v1043 = vpop.f32.mrb[0].mxu0
    %v1044 = vpop.f32.mrb[0].mxu0
    %v1045 = vadd.f32 %v756, %v1044
    %v1046 = vpop.f32.mrb[0].mxu0
    %1047 = vmatprep.mubr.bf16.mxu0 %v241
    %1048 = vmatmul.mubr.bf16.gmra.mrb[0].mxu0 %v240
    %v1049 = vpop.f32.mrb[0].mxu0
    %v1050 = vadd.f32 %v761, %v1049
    %v1051 = vpop.f32.mrb[0].mxu0
    %v1052 = vpop.f32.mrb[0].mxu0
    %v1053 = vadd.f32 %v764, %v1052
    %v1054 = vpop.f32.mrb[0].mxu0
    %1055 = vmatprep.mubr.bf16.mxu0 %v245
    %1056 = vmatmul.mubr.bf16.gmra.mrb[0].mxu0 %v244
    %v1057 = vpop.f32.mrb[0].mxu0
    %v1058 = vadd.f32 %v769, %v1057
    %v1059 = vpop.f32.mrb[0].mxu0
    %v1060 = vpop.f32.mrb[0].mxu0
    %v1061 = vadd.f32 %v772, %v1060
    %v1062 = vpop.f32.mrb[0].mxu0
    %1063 = vmatprep.mubr.bf16.mxu0 %v249
    %1064 = vmatmul.mubr.bf16.gmra.mrb[0].mxu0 %v248
    %v1065 = vpop.f32.mrb[0].mxu0
    %v1066 = vadd.f32 %v777, %v1065
    %v1067 = vpop.f32.mrb[0].mxu0
    %v1068 = vpop.f32.mrb[0].mxu0
    %v1069 = vadd.f32 %v780, %v1068
    %v1070 = vpop.f32.mrb[0].mxu0
    %1071 = vmatprep.mubr.bf16.mxu0 %v253
    %1072 = vmatmul.mubr.bf16.gmra.mrb[0].mxu0 %v252
    %v1073 = vpop.f32.mrb[0].mxu0
    %v1074 = vadd.f32 %v785, %v1073
    %v1075 = vpop.f32.mrb[0].mxu0
    %v1076 = vpop.f32.mrb[0].mxu0
    %v1077 = vadd.f32 %v788, %v1076
    %v1078 = vpop.f32.mrb[0].mxu0
    %1079 = vmatprep.mubr.bf16.mxu0 %v257
    %1080 = vmatmul.mubr.bf16.gmra.mrb[0].mxu0 %v256
    %v1081 = vpop.f32.mrb[0].mxu0
    %v1082 = vadd.f32 %v793, %v1081
    %v1083 = vpop.f32.mrb[0].mxu0
    %v1084 = vpop.f32.mrb[0].mxu0
    %v1085 = vadd.f32 %v796, %v1084
    %v1086 = vpop.f32.mrb[0].mxu0
    %1087 = vmatprep.mubr.bf16.mxu0 %v261
    %1088 = vmatmul.mubr.bf16.gmra.mrb[0].mxu0 %v260
    %v1089 = vpop.f32.mrb[0].mxu0
    %v1090 = vadd.f32 %v801, %v1089
    %v1091 = vpop.f32.mrb[0].mxu0
    %v1092 = vpop.f32.mrb[0].mxu0
    %v1093 = vadd.f32 %v804, %v1092
    %v1094 = vpop.f32.mrb[0].mxu0
    %1095 = vmatprep.mubr.bf16.mxu0 %v265
    %1096 = vmatmul.mubr.bf16.gmra.mrb[0].mxu0 %v264
    %v1097 = vpop.f32.mrb[0].mxu0
    %v1098 = vadd.f32 %v809, %v1097
    %v1099 = vpop.f32.mrb[0].mxu0
    %v1100 = vpop.f32.mrb[0].mxu0
    %v1101 = vadd.f32 %v812, %v1100
    %v1102 = vpop.f32.mrb[0].mxu0
    %1103 = vmatprep.mubr.bf16.mxu0 %v269
    %1104 = vmatmul.mubr.bf16.gmra.mrb[0].mxu0 %v268
    %v1105 = vpop.f32.mrb[0].mxu0
    %v1106 = vadd.f32 %v817, %v1105
    %v1107 = vpop.f32.mrb[0].mxu0
    %v1108 = vpop.f32.mrb[0].mxu0
    %v1109 = vadd.f32 %v820, %v1108
    %v1110 = vpop.f32.mrb[0].mxu0
    %1111 = vmatprep.mubr.bf16.mxu0 %v273
    %1112 = vmatmul.mubr.bf16.gmra.mrb[0].mxu0 %v272
    %v1113 = vpop.f32.mrb[0].mxu0
    %v1114 = vadd.f32 %v825, %v1113
    %v1115 = vpop.f32.mrb[0].mxu0
    %v1116 = vpop.f32.mrb[0].mxu0
    %v1117 = vadd.f32 %v828, %v1116
    %v1118 = vpop.f32.mrb[0].mxu0
    %1119 = vmatprep.mubr.bf16.mxu0 %v277
    %1120 = vmatmul.mubr.bf16.gmra.mrb[0].mxu0 %v276
    %v1121 = vpop.f32.mrb[0].mxu0
    %v1122 = vadd.f32 %v833, %v1121
    %v1123 = vpop.f32.mrb[0].mxu0
    %v1124 = vpop.f32.mrb[0].mxu0
    %v1125 = vadd.f32 %v836, %v1124
    %v1126 = vpop.f32.mrb[0].mxu0
    %1127 = vmatprep.mubr.bf16.mxu0 %v281
    %1128 = vmatmul.mubr.bf16.gmra.mrb[0].mxu0 %v280
    %v1129 = vpop.f32.mrb[0].mxu0
    %v1130 = vadd.f32 %v841, %v1129
    %v1131 = vpop.f32.mrb[0].mxu0
    %v1132 = vpop.f32.mrb[0].mxu0
    %v1133 = vadd.f32 %v844, %v1132
    %v1134 = vpop.f32.mrb[0].mxu0
    %1135 = vmatprep.mubr.bf16.mxu0 %v285
    %1136 = vmatmul.mubr.bf16.gmra.mrb[0].mxu0 %v284
    %v1137 = vpop.f32.mrb[0].mxu0
    %v1138 = vadd.f32 %v849, %v1137
    %v1139 = vpop.f32.mrb[0].mxu0
    %v1140 = vpop.f32.mrb[0].mxu0
    %v1141 = vadd.f32 %v852, %v1140
    %v1142 = vpop.f32.mrb[0].mxu0
    %1143 = vmatprep.mubr.bf16.mxu0 %v289
    %1144 = vmatmul.mubr.bf16.gmra.mrb[0].mxu0 %v288
    %v1145 = vpop.f32.mrb[0].mxu0
    %v1146 = vadd.f32 %v857, %v1145
    %v1147 = vpop.f32.mrb[0].mxu0
    %v1148 = vpop.f32.mrb[0].mxu0
    %v1149 = vadd.f32 %v860, %v1148
    %v1150 = vpop.f32.mrb[0].mxu0
    %1151 = vmatprep.mubr.bf16.mxu0 %v293
    %1152 = vmatmul.mubr.bf16.gmra.mrb[0].mxu0 %v292
    %v1153 = vpop.f32.mrb[0].mxu0
    %v1154 = vadd.f32 %v865, %v1153
    %v1155 = vpop.f32.mrb[0].mxu0
    %v1156 = vpop.f32.mrb[0].mxu0
    %v1157 = vadd.f32 %v868, %v1156
    %v1158 = vpop.f32.mrb[0].mxu0
    %1159 = vmatprep.mubr.bf16.mxu0 %v297
    %1160 = vmatmul.mubr.bf16.gmra.mrb[0].mxu0 %v296
    %v1161 = vpop.f32.mrb[0].mxu0
    %v1162 = vadd.f32 %v873, %v1161
    %v1163 = vpop.f32.mrb[0].mxu0
    %v1164 = vpop.f32.mrb[0].mxu0
    %v1165 = vadd.f32 %v876, %v1164
    %v1166 = vpop.f32.mrb[0].mxu0
    %1167 = vmatprep.mubr.bf16.mxu0 %v301
    %1168 = vmatmul.mubr.bf16.gmra.mrb[0].mxu0 %v300
    %v1169 = vpop.f32.mrb[0].mxu0
    %v1170 = vadd.f32 %v881, %v1169
    %v1171 = vpop.f32.mrb[0].mxu0
    %v1172 = vpop.f32.mrb[0].mxu0
    %v1173 = vadd.f32 %v884, %v1172
    %v1174 = vpop.f32.mrb[0].mxu0
    %1175 = vmatprep.mubr.bf16.mxu0 %v305
    %1176 = vmatmul.mubr.bf16.gmra.mrb[0].mxu0 %v304
    %v1177 = vpop.f32.mrb[0].mxu0
    %v1178 = vadd.f32 %v889, %v1177
    %v1179 = vpop.f32.mrb[0].mxu0
    %v1180 = vpop.f32.mrb[0].mxu0
    %v1181 = vadd.f32 %v892, %v1180
    %v1182 = vpop.f32.mrb[0].mxu0
    %1183 = vmatprep.mubr.bf16.mxu0 %v309
    %1184 = vmatmul.mubr.bf16.gmra.mrb[0].mxu0 %v308
    %v1185 = vpop.f32.mrb[0].mxu0
    %v1186 = vadd.f32 %v897, %v1185
    %v1187 = vpop.f32.mrb[0].mxu0
    %v1188 = vpop.f32.mrb[0].mxu0
    %v1189 = vadd.f32 %v900, %v1188
    %v1190 = vpop.f32.mrb[0].mxu0
    %1191 = vmatprep.mubr.bf16.mxu0 %v313
    %1192 = vmatmul.mubr.bf16.gmra.mrb[0].mxu0 %v312
    %v1193 = vpop.f32.mrb[0].mxu0
    %v1194 = vadd.f32 %v905, %v1193
    %v1195 = vpop.f32.mrb[0].mxu0
    %v1196 = vpop.f32.mrb[0].mxu0
    %v1197 = vadd.f32 %v908, %v1196
    %v1198 = vpop.f32.mrb[0].mxu0
    %1199 = vmatprep.mubr.bf16.mxu0 %v317
    %1200 = vmatmul.mubr.bf16.gmra.mrb[0].mxu0 %v316
    %v1201 = vpop.f32.mrb[0].mxu0
    %v1202 = vadd.f32 %v913, %v1201
    %v1203 = vpop.f32.mrb[0].mxu0
    %v1204 = vpop.f32.mrb[0].mxu0
    %v1205 = vadd.f32 %v916, %v1204
    %v1206 = vpop.f32.mrb[0].mxu0
    %1207 = vmatprep.mubr.bf16.mxu0 %v321
    %1208 = vmatmul.mubr.bf16.gmra.mrb[0].mxu0 %v320
    %v1209 = vpop.f32.mrb[0].mxu0
    %v1210 = vadd.f32 %v921, %v1209
    %v1211 = vpop.f32.mrb[0].mxu0
    %v1212 = vpop.f32.mrb[0].mxu0
    %v1213 = vadd.f32 %v924, %v1212
    %v1214 = vpop.f32.mrb[0].mxu0
    %1215 = vmatprep.mubr.bf16.mxu0 %v325
    %1216 = vmatmul.mubr.bf16.gmra.mrb[0].mxu0 %v324
    %v1217 = vpop.f32.mrb[0].mxu0
    %v1218 = vadd.f32 %v929, %v1217
    %v1219 = vpop.f32.mrb[0].mxu0
    %v1220 = vpop.f32.mrb[0].mxu0
    %v1221 = vadd.f32 %v932, %v1220
    %v1222 = vpop.f32.mrb[0].mxu0
    %1223 = vdwg.mxu0
    %v1224 = vadd.f32 %v326, %v970
    %v1225 = vadd.f32 %v327, %v973
    %v1226 = vadd.f32 %v328, %v978
    %v1227 = vadd.f32 %v329, %v981
    %v1228 = vadd.f32 %v330, %v986
    %v1229 = vadd.f32 %v331, %v989
    %v1230 = vadd.f32 %v332, %v994
    %v1231 = vadd.f32 %v333, %v997
    %v1232 = vadd.f32 %v334, %v1002
    %v1233 = vadd.f32 %v335, %v1005
    %v1234 = vadd.f32 %v336, %v1010
    %v1235 = vadd.f32 %v337, %v1013
    %v1236 = vadd.f32 %v338, %v1018
    %v1237 = vadd.f32 %v339, %v1021
    %v1238 = vadd.f32 %v340, %v1026
    %v1239 = vadd.f32 %v341, %v1029
    %v1240 = vadd.f32 %v342, %v1034
    %v1241 = vadd.f32 %v343, %v1037
    %v1242 = vadd.f32 %v344, %v1042
    %v1243 = vadd.f32 %v345, %v1045
    %v1244 = vadd.f32 %v346, %v1050
    %v1245 = vadd.f32 %v347, %v1053
    %v1246 = vadd.f32 %v348, %v1058
    %v1247 = vadd.f32 %v349, %v1061
    %v1248 = vadd.f32 %v350, %v1066
    %v1249 = vadd.f32 %v351, %v1069
    %v1250 = vadd.f32 %v352, %v1074
    %v1251 = vadd.f32 %v353, %v1077
    %v1252 = vadd.f32 %v354, %v1082
    %v1253 = vadd.f32 %v355, %v1085
    %v1254 = vadd.f32 %v356, %v1090
    %v1255 = vadd.f32 %v357, %v1093
    %v1256 = vadd.f32 %v358, %v1098
    %v1257 = vadd.f32 %v359, %v1101
    %v1258 = vadd.f32 %v360, %v1106
    %v1259 = vadd.f32 %v361, %v1109
    %v1260 = vadd.f32 %v362, %v1114
    %v1261 = vadd.f32 %v363, %v1117
    %v1262 = vadd.f32 %v364, %v1122
    %v1263 = vadd.f32 %v365, %v1125
    %v1264 = vadd.f32 %v366, %v1130
    %v1265 = vadd.f32 %v367, %v1133
    %v1266 = vadd.f32 %v368, %v1138
    %v1267 = vadd.f32 %v369, %v1141
    %v1268 = vadd.f32 %v370, %v1146
    %v1269 = vadd.f32 %v371, %v1149
    %v1270 = vadd.f32 %v372, %v1154
    %v1271 = vadd.f32 %v373, %v1157
    %v1272 = vadd.f32 %v374, %v1162
    %v1273 = vadd.f32 %v375, %v1165
    %v1274 = vadd.f32 %v376, %v1170
    %v1275 = vadd.f32 %v377, %v1173
    %v1276 = vadd.f32 %v378, %v1178
    %v1277 = vadd.f32 %v379, %v1181
    %v1278 = vadd.f32 %v380, %v1186
    %v1279 = vadd.f32 %v381, %v1189
    %v1280 = vadd.f32 %v382, %v1194
    %v1281 = vadd.f32 %v383, %v1197
    %v1282 = vadd.f32 %v384, %v1202
    %v1283 = vadd.f32 %v385, %v1205
    %v1284 = vadd.f32 %v386, %v1210
    %v1285 = vadd.f32 %v387, %v1213
    %v1286 = vadd.f32 %v388, %v1218
    %v1287 = vadd.f32 %v389, %v1221
    %1288 = vst [vmem:[#allocation2] sm:$0xff] %v1224
    %1289 = vst [vmem:[#allocation2 + $0x8] sm:$0xff] %v1225
    %1290 = vst [vmem:[#allocation2 + $0x10] sm:$0xff] %v1226
    %1291 = vst [vmem:[#allocation2 + $0x18] sm:$0xff] %v1227
    %1292 = vst [vmem:[#allocation2 + $0x20] sm:$0xff] %v1228
    %1293 = vst [vmem:[#allocation2 + $0x28] sm:$0xff] %v1229
    %1294 = vst [vmem:[#allocation2 + $0x30] sm:$0xff] %v1230
    %1295 = vst [vmem:[#allocation2 + $0x38] sm:$0xff] %v1231
    %1296 = vst [vmem:[#allocation2 + $0x40] sm:$0xff] %v1232
    %1297 = vst [vmem:[#allocation2 + $0x48] sm:$0xff] %v1233
    %1298 = vst [vmem:[#allocation2 + $0x50] sm:$0xff] %v1234
    %1299 = vst [vmem:[#allocation2 + $0x58] sm:$0xff] %v1235
    %1300 = vst [vmem:[#allocation2 + $0x60] sm:$0xff] %v1236
    %1301 = vst [vmem:[#allocation2 + $0x68] sm:$0xff] %v1237
    %1302 = vst [vmem:[#allocation2 + $0x70] sm:$0xff] %v1238
    %1303 = vst [vmem:[#allocation2 + $0x78] sm:$0xff] %v1239
    %1304 = vst [vmem:[#allocation2 + $0x80] sm:$0xff] %v1240
    %1305 = vst [vmem:[#allocation2 + $0x88] sm:$0xff] %v1241
    %1306 = vst [vmem:[#allocation2 + $0x90] sm:$0xff] %v1242
    %1307 = vst [vmem:[#allocation2 + $0x98] sm:$0xff] %v1243
    %1308 = vst [vmem:[#allocation2 + $0xa0] sm:$0xff] %v1244
    %1309 = vst [vmem:[#allocation2 + $0xa8] sm:$0xff] %v1245
    %1310 = vst [vmem:[#allocation2 + $0xb0] sm:$0xff] %v1246
    %1311 = vst [vmem:[#allocation2 + $0xb8] sm:$0xff] %v1247
    %1312 = vst [vmem:[#allocation2 + $0xc0] sm:$0xff] %v1248
    %1313 = vst [vmem:[#allocation2 + $0xc8] sm:$0xff] %v1249
    %1314 = vst [vmem:[#allocation2 + $0xd0] sm:$0xff] %v1250
    %1315 = vst [vmem:[#allocation2 + $0xd8] sm:$0xff] %v1251
    %1316 = vst [vmem:[#allocation2 + $0xe0] sm:$0xff] %v1252
    %1317 = vst [vmem:[#allocation2 + $0xe8] sm:$0xff] %v1253
    %1318 = vst [vmem:[#allocation2 + $0xf0] sm:$0xff] %v1254
    %1319 = vst [vmem:[#allocation2 + $0xf8] sm:$0xff] %v1255
    %1320 = vst [vmem:[#allocation2 + $0x100] sm:$0xff] %v1256
    %1321 = vst [vmem:[#allocation2 + $0x108] sm:$0xff] %v1257
    %1322 = vst [vmem:[#allocation2 + $0x110] sm:$0xff] %v1258
    %1323 = vst [vmem:[#allocation2 + $0x118] sm:$0xff] %v1259
    %1324 = vst [vmem:[#allocation2 + $0x120] sm:$0xff] %v1260
    %1325 = vst [vmem:[#allocation2 + $0x128] sm:$0xff] %v1261
    %1326 = vst [vmem:[#allocation2 + $0x130] sm:$0xff] %v1262
    %1327 = vst [vmem:[#allocation2 + $0x138] sm:$0xff] %v1263
    %1328 = vst [vmem:[#allocation2 + $0x140] sm:$0xff] %v1264
    %1329 = vst [vmem:[#allocation2 + $0x148] sm:$0xff] %v1265
    %1330 = vst [vmem:[#allocation2 + $0x150] sm:$0xff] %v1266
    %1331 = vst [vmem:[#allocation2 + $0x158] sm:$0xff] %v1267
    %1332 = vst [vmem:[#allocation2 + $0x160] sm:$0xff] %v1268
    %1333 = vst [vmem:[#allocation2 + $0x168] sm:$0xff] %v1269
    %1334 = vst [vmem:[#allocation2 + $0x170] sm:$0xff] %v1270
    %1335 = vst [vmem:[#allocation2 + $0x178] sm:$0xff] %v1271
    %1336 = vst [vmem:[#allocation2 + $0x180] sm:$0xff] %v1272
    %1337 = vst [vmem:[#allocation2 + $0x188] sm:$0xff] %v1273
    %1338 = vst [vmem:[#allocation2 + $0x190] sm:$0xff] %v1274
    %1339 = vst [vmem:[#allocation2 + $0x198] sm:$0xff] %v1275
    %1340 = vst [vmem:[#allocation2 + $0x1a0] sm:$0xff] %v1276
    %1341 = vst [vmem:[#allocation2 + $0x1a8] sm:$0xff] %v1277
    %1342 = vst [vmem:[#allocation2 + $0x1b0] sm:$0xff] %v1278
    %1343 = vst [vmem:[#allocation2 + $0x1b8] sm:$0xff] %v1279
    %1344 = vst [vmem:[#allocation2 + $0x1c0] sm:$0xff] %v1280
    %1345 = vst [vmem:[#allocation2 + $0x1c8] sm:$0xff] %v1281
    %1346 = vst [vmem:[#allocation2 + $0x1d0] sm:$0xff] %v1282
    %1347 = vst [vmem:[#allocation2 + $0x1d8] sm:$0xff] %v1283
    %1348 = vst [vmem:[#allocation2 + $0x1e0] sm:$0xff] %v1284
    %1349 = vst [vmem:[#allocation2 + $0x1e8] sm:$0xff] %v1285
    %1350 = vst [vmem:[#allocation2 + $0x1f0] sm:$0xff] %v1286
    %1351 = vst [vmem:[#allocation2 + $0x1f8] sm:$0xff] %v1287
    // Predicated region
    $region42: #{tpu_custom_call.1} parent=1 // pred_check
      %p1352 = pneg %p66
    $region43: #{tpu_custom_call.1} parent=1 // pred_check_branch
      %1354 = sbr.rel (%p1352) target = $region45
    $region44: #{tpu_custom_call.1} parent=1 // pred_region
      %v1355 = vld [vmem:[%s2] sm:$0xff]
      %v1356 = vld [vmem:[%s2 + $0x8] sm:$0xff]
      %v1357 = vld [vmem:[%s2 + $0x10] sm:$0xff]
      %v1358 = vld [vmem:[%s2 + $0x18] sm:$0xff]
      %v1359 = vld [vmem:[%s2 + $0x20] sm:$0xff]
      %v1360 = vld [vmem:[%s2 + $0x28] sm:$0xff]
      %v1361 = vld [vmem:[%s2 + $0x30] sm:$0xff]
      %v1362 = vld [vmem:[%s2 + $0x38] sm:$0xff]
      %v1363 = vld [vmem:[%s2 + $0x40] sm:$0xff]
      %v1364 = vld [vmem:[%s2 + $0x48] sm:$0xff]
      %v1365 = vld [vmem:[%s2 + $0x50] sm:$0xff]
      %v1366 = vld [vmem:[%s2 + $0x58] sm:$0xff]
      %v1367 = vld [vmem:[%s2 + $0x60] sm:$0xff]
      %v1368 = vld [vmem:[%s2 + $0x68] sm:$0xff]
      %v1369 = vld [vmem:[%s2 + $0x70] sm:$0xff]
      %v1370 = vld [vmem:[%s2 + $0x78] sm:$0xff]
      %v1371 = vld [vmem:[%s2 + $0x80] sm:$0xff]
      %v1372 = vld [vmem:[%s2 + $0x88] sm:$0xff]
      %v1373 = vld [vmem:[%s2 + $0x90] sm:$0xff]
      %v1374 = vld [vmem:[%s2 + $0x98] sm:$0xff]
      %v1375 = vld [vmem:[%s2 + $0xa0] sm:$0xff]
      %v1376 = vld [vmem:[%s2 + $0xa8] sm:$0xff]
      %v1377 = vld [vmem:[%s2 + $0xb0] sm:$0xff]
      %v1378 = vld [vmem:[%s2 + $0xb8] sm:$0xff]
      %v1379 = vld [vmem:[%s2 + $0xc0] sm:$0xff]
      %v1380 = vld [vmem:[%s2 + $0xc8] sm:$0xff]
      %v1381 = vld [vmem:[%s2 + $0xd0] sm:$0xff]
      %v1382 = vld [vmem:[%s2 + $0xd8] sm:$0xff]
      %v1383 = vld [vmem:[%s2 + $0xe0] sm:$0xff]
      %v1384 = vld [vmem:[%s2 + $0xe8] sm:$0xff]
      %v1385 = vld [vmem:[%s2 + $0xf0] sm:$0xff]
      %v1386 = vld [vmem:[%s2 + $0xf8] sm:$0xff]
      %v1387 = vld [vmem:[%s2 + $0x100] sm:$0xff]
      %v1388 = vld [vmem:[%s2 + $0x108] sm:$0xff]
      %v1389 = vld [vmem:[%s2 + $0x110] sm:$0xff]
      %v1390 = vld [vmem:[%s2 + $0x118] sm:$0xff]
      %v1391 = vld [vmem:[%s2 + $0x120] sm:$0xff]
      %v1392 = vld [vmem:[%s2 + $0x128] sm:$0xff]
      %v1393 = vld [vmem:[%s2 + $0x130] sm:$0xff]
      %v1394 = vld [vmem:[%s2 + $0x138] sm:$0xff]
      %v1395 = vld [vmem:[%s2 + $0x140] sm:$0xff]
      %v1396 = vld [vmem:[%s2 + $0x148] sm:$0xff]
      %v1397 = vld [vmem:[%s2 + $0x150] sm:$0xff]
      %v1398 = vld [vmem:[%s2 + $0x158] sm:$0xff]
      %v1399 = vld [vmem:[%s2 + $0x160] sm:$0xff]
      %v1400 = vld [vmem:[%s2 + $0x168] sm:$0xff]
      %v1401 = vld [vmem:[%s2 + $0x170] sm:$0xff]
      %v1402 = vld [vmem:[%s2 + $0x178] sm:$0xff]
      %v1403 = vld [vmem:[%s2 + $0x180] sm:$0xff]
      %v1404 = vld [vmem:[%s2 + $0x188] sm:$0xff]
      %v1405 = vld [vmem:[%s2 + $0x190] sm:$0xff]
      %v1406 = vld [vmem:[%s2 + $0x198] sm:$0xff]
      %v1407 = vld [vmem:[%s2 + $0x1a0] sm:$0xff]
      %v1408 = vld [vmem:[%s2 + $0x1a8] sm:$0xff]
      %v1409 = vld [vmem:[%s2 + $0x1b0] sm:$0xff]
      %v1410 = vld [vmem:[%s2 + $0x1b8] sm:$0xff]
      %v1411 = vld [vmem:[%s2 + $0x1c0] sm:$0xff]
      %v1412 = vld [vmem:[%s2 + $0x1c8] sm:$0xff]
      %v1413 = vld [vmem:[%s2 + $0x1d0] sm:$0xff]
      %v1414 = vld [vmem:[%s2 + $0x1d8] sm:$0xff]
      %v1415 = vld [vmem:[%s2 + $0x1e0] sm:$0xff]
      %v1416 = vld [vmem:[%s2 + $0x1e8] sm:$0xff]
      %v1417 = vld [vmem:[%s2 + $0x1f0] sm:$0xff]
      %v1418 = vld [vmem:[%s2 + $0x1f8] sm:$0xff]
      %v1419 = vld [vmem:[#allocation2] sm:$0xff]
      %v1420 = vld [vmem:[#allocation2 + $0x8] sm:$0xff]
      %v1421 = vld [vmem:[#allocation2 + $0x10] sm:$0xff]
      %v1422 = vld [vmem:[#allocation2 + $0x18] sm:$0xff]
      %v1423 = vld [vmem:[#allocation2 + $0x20] sm:$0xff]
      %v1424 = vld [vmem:[#allocation2 + $0x28] sm:$0xff]
      %v1425 = vld [vmem:[#allocation2 + $0x30] sm:$0xff]
      %v1426 = vld [vmem:[#allocation2 + $0x38] sm:$0xff]
      %v1427 = vld [vmem:[#allocation2 + $0x40] sm:$0xff]
      %v1428 = vld [vmem:[#allocation2 + $0x48] sm:$0xff]
      %v1429 = vld [vmem:[#allocation2 + $0x50] sm:$0xff]
      %v1430 = vld [vmem:[#allocation2 + $0x58] sm:$0xff]
      %v1431 = vld [vmem:[#allocation2 + $0x60] sm:$0xff]
      %v1432 = vld [vmem:[#allocation2 + $0x68] sm:$0xff]
      %v1433 = vld [vmem:[#allocation2 + $0x70] sm:$0xff]
      %v1434 = vld [vmem:[#allocation2 + $0x78] sm:$0xff]
      %v1435 = vld [vmem:[#allocation2 + $0x80] sm:$0xff]
      %v1436 = vld [vmem:[#allocation2 + $0x88] sm:$0xff]
      %v1437 = vld [vmem:[#allocation2 + $0x90] sm:$0xff]
      %v1438 = vld [vmem:[#allocation2 + $0x98] sm:$0xff]
      %v1439 = vld [vmem:[#allocation2 + $0xa0] sm:$0xff]
      %v1440 = vld [vmem:[#allocation2 + $0xa8] sm:$0xff]
      %v1441 = vld [vmem:[#allocation2 + $0xb0] sm:$0xff]
      %v1442 = vld [vmem:[#allocation2 + $0xb8] sm:$0xff]
      %v1443 = vld [vmem:[#allocation2 + $0xc0] sm:$0xff]
      %v1444 = vld [vmem:[#allocation2 + $0xc8] sm:$0xff]
      %v1445 = vld [vmem:[#allocation2 + $0xd0] sm:$0xff]
      %v1446 = vld [vmem:[#allocation2 + $0xd8] sm:$0xff]
      %v1447 = vld [vmem:[#allocation2 + $0xe0] sm:$0xff]
      %v1448 = vld [vmem:[#allocation2 + $0xe8] sm:$0xff]
      %v1449 = vld [vmem:[#allocation2 + $0xf0] sm:$0xff]
      %v1450 = vld [vmem:[#allocation2 + $0xf8] sm:$0xff]
      %v1451 = vld [vmem:[#allocation2 + $0x100] sm:$0xff]
      %v1452 = vld [vmem:[#allocation2 + $0x108] sm:$0xff]
      %v1453 = vld [vmem:[#allocation2 + $0x110] sm:$0xff]
      %v1454 = vld [vmem:[#allocation2 + $0x118] sm:$0xff]
      %v1455 = vld [vmem:[#allocation2 + $0x120] sm:$0xff]
      %v1456 = vld [vmem:[#allocation2 + $0x128] sm:$0xff]
      %v1457 = vld [vmem:[#allocation2 + $0x130] sm:$0xff]
      %v1458 = vld [vmem:[#allocation2 + $0x138] sm:$0xff]
      %v1459 = vld [vmem:[#allocation2 + $0x140] sm:$0xff]
      %v1460 = vld [vmem:[#allocation2 + $0x148] sm:$0xff]
      %v1461 = vld [vmem:[#allocation2 + $0x150] sm:$0xff]
      %v1462 = vld [vmem:[#allocation2 + $0x158] sm:$0xff]
      %v1463 = vld [vmem:[#allocation2 + $0x160] sm:$0xff]
      %v1464 = vld [vmem:[#allocation2 + $0x168] sm:$0xff]
      %v1465 = vld [vmem:[#allocation2 + $0x170] sm:$0xff]
      %v1466 = vld [vmem:[#allocation2 + $0x178] sm:$0xff]
      %v1467 = vld [vmem:[#allocation2 + $0x180] sm:$0xff]
      %v1468 = vld [vmem:[#allocation2 + $0x188] sm:$0xff]
      %v1469 = vld [vmem:[#allocation2 + $0x190] sm:$0xff]
      %v1470 = vld [vmem:[#allocation2 + $0x198] sm:$0xff]
      %v1471 = vld [vmem:[#allocation2 + $0x1a0] sm:$0xff]
      %v1472 = vld [vmem:[#allocation2 + $0x1a8] sm:$0xff]
      %v1473 = vld [vmem:[#allocation2 + $0x1b0] sm:$0xff]
      %v1474 = vld [vmem:[#allocation2 + $0x1b8] sm:$0xff]
      %v1475 = vld [vmem:[#allocation2 + $0x1c0] sm:$0xff]
      %v1476 = vld [vmem:[#allocation2 + $0x1c8] sm:$0xff]
      %v1477 = vld [vmem:[#allocation2 + $0x1d0] sm:$0xff]
      %v1478 = vld [vmem:[#allocation2 + $0x1d8] sm:$0xff]
      %v1479 = vld [vmem:[#allocation2 + $0x1e0] sm:$0xff]
      %v1480 = vld [vmem:[#allocation2 + $0x1e8] sm:$0xff]
      %v1481 = vld [vmem:[#allocation2 + $0x1f0] sm:$0xff]
      %v1482 = vld [vmem:[#allocation2 + $0x1f8] sm:$0xff]
      %1484 = vset.pattern.permute.xlu0 0
      %1485 = vperm.xlu0 %1484, %v1355
      %v1486 = vpop.permute.xlu0 %1485
      %1489 = vset.pattern.permute.xlu0 0
      %1490 = vperm.xlu0 %1489, %v1356
      %v1491 = vpop.permute.xlu0 %1490
      %1494 = vset.pattern.permute.xlu0 0
      %1495 = vperm.xlu0 %1494, %v1357
      %v1496 = vpop.permute.xlu0 %1495
      %1499 = vset.pattern.permute.xlu0 0
      %1500 = vperm.xlu0 %1499, %v1358
      %v1501 = vpop.permute.xlu0 %1500
      %1504 = vset.pattern.permute.xlu0 0
      %1505 = vperm.xlu0 %1504, %v1359
      %v1506 = vpop.permute.xlu0 %1505
      %1509 = vset.pattern.permute.xlu0 0
      %1510 = vperm.xlu0 %1509, %v1360
      %v1511 = vpop.permute.xlu0 %1510
      %1514 = vset.pattern.permute.xlu0 0
      %1515 = vperm.xlu0 %1514, %v1361
      %v1516 = vpop.permute.xlu0 %1515
      %1519 = vset.pattern.permute.xlu0 0
      %1520 = vperm.xlu0 %1519, %v1362
      %v1521 = vpop.permute.xlu0 %1520
      %1524 = vset.pattern.permute.xlu0 0
      %1525 = vperm.xlu0 %1524, %v1363
      %v1526 = vpop.permute.xlu0 %1525
      %1529 = vset.pattern.permute.xlu0 0
      %1530 = vperm.xlu0 %1529, %v1364
      %v1531 = vpop.permute.xlu0 %1530
      %1534 = vset.pattern.permute.xlu0 0
      %1535 = vperm.xlu0 %1534, %v1365
      %v1536 = vpop.permute.xlu0 %1535
      %1539 = vset.pattern.permute.xlu0 0
      %1540 = vperm.xlu0 %1539, %v1366
      %v1541 = vpop.permute.xlu0 %1540
      %1544 = vset.pattern.permute.xlu0 0
      %1545 = vperm.xlu0 %1544, %v1367
      %v1546 = vpop.permute.xlu0 %1545
      %1549 = vset.pattern.permute.xlu0 0
      %1550 = vperm.xlu0 %1549, %v1368
      %v1551 = vpop.permute.xlu0 %1550
      %1554 = vset.pattern.permute.xlu0 0
      %1555 = vperm.xlu0 %1554, %v1369
      %v1556 = vpop.permute.xlu0 %1555
      %1559 = vset.pattern.permute.xlu0 0
      %1560 = vperm.xlu0 %1559, %v1370
      %v1561 = vpop.permute.xlu0 %1560
      %1564 = vset.pattern.permute.xlu0 0
      %1565 = vperm.xlu0 %1564, %v1371
      %v1566 = vpop.permute.xlu0 %1565
      %1569 = vset.pattern.permute.xlu0 0
      %1570 = vperm.xlu0 %1569, %v1372
      %v1571 = vpop.permute.xlu0 %1570
      %1574 = vset.pattern.permute.xlu0 0
      %1575 = vperm.xlu0 %1574, %v1373
      %v1576 = vpop.permute.xlu0 %1575
      %1579 = vset.pattern.permute.xlu0 0
      %1580 = vperm.xlu0 %1579, %v1374
      %v1581 = vpop.permute.xlu0 %1580
      %1584 = vset.pattern.permute.xlu0 0
      %1585 = vperm.xlu0 %1584, %v1375
      %v1586 = vpop.permute.xlu0 %1585
      %1589 = vset.pattern.permute.xlu0 0
      %1590 = vperm.xlu0 %1589, %v1376
      %v1591 = vpop.permute.xlu0 %1590
      %1594 = vset.pattern.permute.xlu0 0
      %1595 = vperm.xlu0 %1594, %v1377
      %v1596 = vpop.permute.xlu0 %1595
      %1599 = vset.pattern.permute.xlu0 0
      %1600 = vperm.xlu0 %1599, %v1378
      %v1601 = vpop.permute.xlu0 %1600
      %1604 = vset.pattern.permute.xlu0 0
      %1605 = vperm.xlu0 %1604, %v1379
      %v1606 = vpop.permute.xlu0 %1605
      %1609 = vset.pattern.permute.xlu0 0
      %1610 = vperm.xlu0 %1609, %v1380
      %v1611 = vpop.permute.xlu0 %1610
      %1614 = vset.pattern.permute.xlu0 0
      %1615 = vperm.xlu0 %1614, %v1381
      %v1616 = vpop.permute.xlu0 %1615
      %1619 = vset.pattern.permute.xlu0 0
      %1620 = vperm.xlu0 %1619, %v1382
      %v1621 = vpop.permute.xlu0 %1620
      %1624 = vset.pattern.permute.xlu0 0
      %1625 = vperm.xlu0 %1624, %v1383
      %v1626 = vpop.permute.xlu0 %1625
      %1629 = vset.pattern.permute.xlu0 0
      %1630 = vperm.xlu0 %1629, %v1384
      %v1631 = vpop.permute.xlu0 %1630
      %1634 = vset.pattern.permute.xlu0 0
      %1635 = vperm.xlu0 %1634, %v1385
      %v1636 = vpop.permute.xlu0 %1635
      %1639 = vset.pattern.permute.xlu0 0
      %1640 = vperm.xlu0 %1639, %v1386
      %v1641 = vpop.permute.xlu0 %1640
      %1644 = vset.pattern.permute.xlu0 0
      %1645 = vperm.xlu0 %1644, %v1387
      %v1646 = vpop.permute.xlu0 %1645
      %1649 = vset.pattern.permute.xlu0 0
      %1650 = vperm.xlu0 %1649, %v1388
      %v1651 = vpop.permute.xlu0 %1650
      %1654 = vset.pattern.permute.xlu0 0
      %1655 = vperm.xlu0 %1654, %v1389
      %v1656 = vpop.permute.xlu0 %1655
      %1659 = vset.pattern.permute.xlu0 0
      %1660 = vperm.xlu0 %1659, %v1390
      %v1661 = vpop.permute.xlu0 %1660
      %1664 = vset.pattern.permute.xlu0 0
      %1665 = vperm.xlu0 %1664, %v1391
      %v1666 = vpop.permute.xlu0 %1665
      %1669 = vset.pattern.permute.xlu0 0
      %1670 = vperm.xlu0 %1669, %v1392
      %v1671 = vpop.permute.xlu0 %1670
      %1674 = vset.pattern.permute.xlu0 0
      %1675 = vperm.xlu0 %1674, %v1393
      %v1676 = vpop.permute.xlu0 %1675
      %1679 = vset.pattern.permute.xlu0 0
      %1680 = vperm.xlu0 %1679, %v1394
      %v1681 = vpop.permute.xlu0 %1680
      %1684 = vset.pattern.permute.xlu0 0
      %1685 = vperm.xlu0 %1684, %v1395
      %v1686 = vpop.permute.xlu0 %1685
      %1689 = vset.pattern.permute.xlu0 0
      %1690 = vperm.xlu0 %1689, %v1396
      %v1691 = vpop.permute.xlu0 %1690
      %1694 = vset.pattern.permute.xlu0 0
      %1695 = vperm.xlu0 %1694, %v1397
      %v1696 = vpop.permute.xlu0 %1695
      %1699 = vset.pattern.permute.xlu0 0
      %1700 = vperm.xlu0 %1699, %v1398
      %v1701 = vpop.permute.xlu0 %1700
      %1704 = vset.pattern.permute.xlu0 0
      %1705 = vperm.xlu0 %1704, %v1399
      %v1706 = vpop.permute.xlu0 %1705
      %1709 = vset.pattern.permute.xlu0 0
      %1710 = vperm.xlu0 %1709, %v1400
      %v1711 = vpop.permute.xlu0 %1710
      %1714 = vset.pattern.permute.xlu0 0
      %1715 = vperm.xlu0 %1714, %v1401
      %v1716 = vpop.permute.xlu0 %1715
      %1719 = vset.pattern.permute.xlu0 0
      %1720 = vperm.xlu0 %1719, %v1402
      %v1721 = vpop.permute.xlu0 %1720
      %1724 = vset.pattern.permute.xlu0 0
      %1725 = vperm.xlu0 %1724, %v1403
      %v1726 = vpop.permute.xlu0 %1725
      %1729 = vset.pattern.permute.xlu0 0
      %1730 = vperm.xlu0 %1729, %v1404
      %v1731 = vpop.permute.xlu0 %1730
      %1734 = vset.pattern.permute.xlu0 0
      %1735 = vperm.xlu0 %1734, %v1405
      %v1736 = vpop.permute.xlu0 %1735
      %1739 = vset.pattern.permute.xlu0 0
      %1740 = vperm.xlu0 %1739, %v1406
      %v1741 = vpop.permute.xlu0 %1740
      %1744 = vset.pattern.permute.xlu0 0
      %1745 = vperm.xlu0 %1744, %v1407
      %v1746 = vpop.permute.xlu0 %1745
      %1749 = vset.pattern.permute.xlu0 0
      %1750 = vperm.xlu0 %1749, %v1408
      %v1751 = vpop.permute.xlu0 %1750
      %1754 = vset.pattern.permute.xlu0 0
      %1755 = vperm.xlu0 %1754, %v1409
      %v1756 = vpop.permute.xlu0 %1755
      %1759 = vset.pattern.permute.xlu0 0
      %1760 = vperm.xlu0 %1759, %v1410
      %v1761 = vpop.permute.xlu0 %1760
      %1764 = vset.pattern.permute.xlu0 0
      %1765 = vperm.xlu0 %1764, %v1411
      %v1766 = vpop.permute.xlu0 %1765
      %1769 = vset.pattern.permute.xlu0 0
      %1770 = vperm.xlu0 %1769, %v1412
      %v1771 = vpop.permute.xlu0 %1770
      %1774 = vset.pattern.permute.xlu0 0
      %1775 = vperm.xlu0 %1774, %v1413
      %v1776 = vpop.permute.xlu0 %1775
      %1779 = vset.pattern.permute.xlu0 0
      %1780 = vperm.xlu0 %1779, %v1414
      %v1781 = vpop.permute.xlu0 %1780
      %1784 = vset.pattern.permute.xlu0 0
      %1785 = vperm.xlu0 %1784, %v1415
      %v1786 = vpop.permute.xlu0 %1785
      %1789 = vset.pattern.permute.xlu0 0
      %1790 = vperm.xlu0 %1789, %v1416
      %v1791 = vpop.permute.xlu0 %1790
      %1794 = vset.pattern.permute.xlu0 0
      %1795 = vperm.xlu0 %1794, %v1417
      %v1796 = vpop.permute.xlu0 %1795
      %1799 = vset.pattern.permute.xlu0 0
      %1800 = vperm.xlu0 %1799, %v1418
      %v1801 = vpop.permute.xlu0 %1800
      %v1803 = vmul.f32 %v1419, %v1486
      %v1804 = vmul.f32 %v1420, %v1491
      %v1805 = vmul.f32 %v1421, %v1496
      %v1806 = vmul.f32 %v1422, %v1501
      %v1807 = vmul.f32 %v1423, %v1506
      %v1808 = vmul.f32 %v1424, %v1511
      %v1809 = vmul.f32 %v1425, %v1516
      %v1810 = vmul.f32 %v1426, %v1521
      %v1811 = vmul.f32 %v1427, %v1526
      %v1812 = vmul.f32 %v1428, %v1531
      %v1813 = vmul.f32 %v1429, %v1536
      %v1814 = vmul.f32 %v1430, %v1541
      %v1815 = vmul.f32 %v1431, %v1546
      %v1816 = vmul.f32 %v1432, %v1551
      %v1817 = vmul.f32 %v1433, %v1556
      %v1818 = vmul.f32 %v1434, %v1561
      %v1819 = vmul.f32 %v1435, %v1566
      %v1820 = vmul.f32 %v1436, %v1571
      %v1821 = vmul.f32 %v1437, %v1576
      %v1822 = vmul.f32 %v1438, %v1581
      %v1823 = vmul.f32 %v1439, %v1586
      %v1824 = vmul.f32 %v1440, %v1591
      %v1825 = vmul.f32 %v1441, %v1596
      %v1826 = vmul.f32 %v1442, %v1601
      %v1827 = vmul.f32 %v1443, %v1606
      %v1828 = vmul.f32 %v1444, %v1611
      %v1829 = vmul.f32 %v1445, %v1616
      %v1830 = vmul.f32 %v1446, %v1621
      %v1831 = vmul.f32 %v1447, %v1626
      %v1832 = vmul.f32 %v1448, %v1631
      %v1833 = vmul.f32 %v1449, %v1636
      %v1834 = vmul.f32 %v1450, %v1641
      %v1835 = vmul.f32 %v1451, %v1646
      %v1836 = vmul.f32 %v1452, %v1651
      %v1837 = vmul.f32 %v1453, %v1656
      %v1838 = vmul.f32 %v1454, %v1661
      %v1839 = vmul.f32 %v1455, %v1666
      %v1840 = vmul.f32 %v1456, %v1671
      %v1841 = vmul.f32 %v1457, %v1676
      %v1842 = vmul.f32 %v1458, %v1681
      %v1843 = vmul.f32 %v1459, %v1686
      %v1844 = vmul.f32 %v1460, %v1691
      %v1845 = vmul.f32 %v1461, %v1696
      %v1846 = vmul.f32 %v1462, %v1701
      %v1847 = vmul.f32 %v1463, %v1706
      %v1848 = vmul.f32 %v1464, %v1711
      %v1849 = vmul.f32 %v1465, %v1716
      %v1850 = vmul.f32 %v1466, %v1721
      %v1851 = vmul.f32 %v1467, %v1726
      %v1852 = vmul.f32 %v1468, %v1731
      %v1853 = vmul.f32 %v1469, %v1736
      %v1854 = vmul.f32 %v1470, %v1741
      %v1855 = vmul.f32 %v1471, %v1746
      %v1856 = vmul.f32 %v1472, %v1751
      %v1857 = vmul.f32 %v1473, %v1756
      %v1858 = vmul.f32 %v1474, %v1761
      %v1859 = vmul.f32 %v1475, %v1766
      %v1860 = vmul.f32 %v1476, %v1771
      %v1861 = vmul.f32 %v1477, %v1776
      %v1862 = vmul.f32 %v1478, %v1781
      %v1863 = vmul.f32 %v1479, %v1786
      %v1864 = vmul.f32 %v1480, %v1791
      %v1865 = vmul.f32 %v1481, %v1796
      %v1866 = vmul.f32 %v1482, %v1801
      %v1867 = vpack.c.bf16 %v1804, %v1803
      %v1868 = vpack.c.bf16 %v1806, %v1805
      %v1869 = vpack.c.bf16 %v1808, %v1807
      %v1870 = vpack.c.bf16 %v1810, %v1809
      %v1871 = vpack.c.bf16 %v1812, %v1811
      %v1872 = vpack.c.bf16 %v1814, %v1813
      %v1873 = vpack.c.bf16 %v1816, %v1815
      %v1874 = vpack.c.bf16 %v1818, %v1817
      %v1875 = vpack.c.bf16 %v1820, %v1819
      %v1876 = vpack.c.bf16 %v1822, %v1821
      %v1877 = vpack.c.bf16 %v1824, %v1823
      %v1878 = vpack.c.bf16 %v1826, %v1825
      %v1879 = vpack.c.bf16 %v1828, %v1827
      %v1880 = vpack.c.bf16 %v1830, %v1829
      %v1881 = vpack.c.bf16 %v1832, %v1831
      %v1882 = vpack.c.bf16 %v1834, %v1833
      %v1883 = vpack.c.bf16 %v1836, %v1835
      %v1884 = vpack.c.bf16 %v1838, %v1837
      %v1885 = vpack.c.bf16 %v1840, %v1839
      %v1886 = vpack.c.bf16 %v1842, %v1841
      %v1887 = vpack.c.bf16 %v1844, %v1843
      %v1888 = vpack.c.bf16 %v1846, %v1845
      %v1889 = vpack.c.bf16 %v1848, %v1847
      %v1890 = vpack.c.bf16 %v1850, %v1849
      %v1891 = vpack.c.bf16 %v1852, %v1851
      %v1892 = vpack.c.bf16 %v1854, %v1853
      %v1893 = vpack.c.bf16 %v1856, %v1855
      %v1894 = vpack.c.bf16 %v1858, %v1857
      %v1895 = vpack.c.bf16 %v1860, %v1859
      %v1896 = vpack.c.bf16 %v1862, %v1861
      %v1897 = vpack.c.bf16 %v1864, %v1863
      %v1898 = vpack.c.bf16 %v1866, %v1865
      %v1899 = vld [vmem:[#allocation6] sm:$0xf]
      %v1900 = vld [vmem:[#allocation6 + $0x4] sm:$0xf]
      %v1901 = vld [vmem:[#allocation6 + $0x8] sm:$0xf]
      %v1902 = vld [vmem:[#allocation6 + $0xc] sm:$0xf]
      %v1903 = vld [vmem:[#allocation6 + $0x10] sm:$0xf]
      %v1904 = vld [vmem:[#allocation6 + $0x14] sm:$0xf]
      %v1905 = vld [vmem:[#allocation6 + $0x18] sm:$0xf]
      %v1906 = vld [vmem:[#allocation6 + $0x1c] sm:$0xf]
      %v1907 = vld [vmem:[#allocation6 + $0x20] sm:$0xf]
      %v1908 = vld [vmem:[#allocation6 + $0x24] sm:$0xf]
      %v1909 = vld [vmem:[#allocation6 + $0x28] sm:$0xf]
      %v1910 = vld [vmem:[#allocation6 + $0x2c] sm:$0xf]
      %v1911 = vld [vmem:[#allocation6 + $0x30] sm:$0xf]
      %v1912 = vld [vmem:[#allocation6 + $0x34] sm:$0xf]
      %v1913 = vld [vmem:[#allocation6 + $0x38] sm:$0xf]
      %v1914 = vld [vmem:[#allocation6 + $0x3c] sm:$0xf]
      %v1915 = vld [vmem:[%s4] sm:$0x1]
      %v1917 = vlaneseq
      %v1918 = vshrl.u32 %v1917, 7
      %v1919 = vsub.s32 0, %v1918
      %v1920 = vrot.slane %v1915, %v1919
      %v1938 = vunpack.c.l.b16 %v1899
      %v1939 = vunpack.c.l.b16 %v1900
      %v1940 = vunpack.c.l.b16 %v1901
      %v1941 = vunpack.c.l.b16 %v1902
      %v1942 = vunpack.c.l.b16 %v1903
      %v1943 = vunpack.c.l.b16 %v1904
      %v1944 = vunpack.c.l.b16 %v1905
      %v1945 = vunpack.c.l.b16 %v1906
      %v1946 = vunpack.c.l.b16 %v1907
      %v1947 = vunpack.c.l.b16 %v1908
      %v1948 = vunpack.c.l.b16 %v1909
      %v1949 = vunpack.c.l.b16 %v1910
      %v1950 = vunpack.c.l.b16 %v1911
      %v1951 = vunpack.c.l.b16 %v1912
      %v1952 = vunpack.c.l.b16 %v1913
      %v1953 = vunpack.c.l.b16 %v1914
      %v1954 = vpack.c.b16 %v1939, %v1938
      %v1955 = vpack.c.b16 %v1941, %v1940
      %v1956 = vpack.c.b16 %v1943, %v1942
      %v1957 = vpack.c.b16 %v1945, %v1944
      %v1958 = vpack.c.b16 %v1947, %v1946
      %v1959 = vpack.c.b16 %v1949, %v1948
      %v1960 = vpack.c.b16 %v1951, %v1950
      %v1961 = vpack.c.b16 %v1953, %v1952
      %1970 = vmatprep.subr.bf16.mxu0 0
      %1971 = vmatpush1.bf16.msra.mxu0 %v1954
      %1972 = vmatprep.subr.bf16.mxu0 0
      %1973 = vmatpush1.bf16.msra.mxu0 %v1955
      %1974 = vmatprep.subr.bf16.mxu0 0
      %1975 = vmatpush1.bf16.msra.mxu0 %v1956
      %1976 = vmatprep.subr.bf16.mxu0 0
      %1977 = vmatpush1.bf16.msra.mxu0 %v1957
      %1978 = vmatprep.subr.bf16.mxu0 0
      %1979 = vmatpush1.bf16.msra.mxu0 %v1958
      %1980 = vmatprep.subr.bf16.mxu0 0
      %1981 = vmatpush1.bf16.msra.mxu0 %v1959
      %1982 = vmatprep.subr.bf16.mxu0 0
      %1983 = vmatpush1.bf16.msra.mxu0 %v1960
      %1984 = vmatprep.subr.bf16.mxu0 0
      %1985 = vmatpush1.bf16.msra.mxu0 %v1961
      %1986 = vmatprep.subr.bf16.mxu0 0
      %1987 = vmatpush1.bf16.msra.mxu0 0
      %1988 = vmatprep.subr.bf16.mxu0 0
      %1989 = vmatpush1.bf16.msra.mxu0 0
      %1990 = vmatprep.subr.bf16.mxu0 0
      %1991 = vmatpush1.bf16.msra.mxu0 0
      %1992 = vmatprep.subr.bf16.mxu0 0
      %1993 = vmatpush1.bf16.msra.mxu0 0
      %1994 = vmatprep.subr.bf16.mxu0 0
      %1995 = vmatpush1.bf16.msra.mxu0 0
      %1996 = vmatprep.subr.bf16.mxu0 0
      %1997 = vmatpush1.bf16.msra.mxu0 0
      %1998 = vmatprep.subr.bf16.mxu0 0
      %1999 = vmatpush1.bf16.msra.mxu0 0
      %2000 = vmatprep.subr.bf16.mxu0 0
      %2001 = vmatpush1.bf16.msra.mxu0 0
      %2002 = vmatprep.mubr.bf16.mxu0 0
      %2003 = vmatmul.mubr.bf16.gmra.mrb[0].mxu0 %v1867
      %v2004 = vpop.f32.mrb[0].mxu0
      %v2005 = vadd.f32 %v1920, %v2004
      %v2006 = vpop.f32.mrb[0].mxu0
      %v2007 = vpop.f32.mrb[0].mxu0
      %v2008 = vadd.f32 %v1920, %v2007
      %v2009 = vpop.f32.mrb[0].mxu0
      %2010 = vmatprep.mubr.bf16.mxu0 0
      %2011 = vmatmul.mubr.bf16.gmra.mrb[0].mxu0 %v1868
      %v2012 = vpop.f32.mrb[0].mxu0
      %v2013 = vadd.f32 %v1920, %v2012
      %v2014 = vpop.f32.mrb[0].mxu0
      %v2015 = vpop.f32.mrb[0].mxu0
      %v2016 = vadd.f32 %v1920, %v2015
      %v2017 = vpop.f32.mrb[0].mxu0
      %2018 = vmatprep.mubr.bf16.mxu0 0
      %2019 = vmatmul.mubr.bf16.gmra.mrb[0].mxu0 %v1869
      %v2020 = vpop.f32.mrb[0].mxu0
      %v2021 = vadd.f32 %v1920, %v2020
      %v2022 = vpop.f32.mrb[0].mxu0
      %v2023 = vpop.f32.mrb[0].mxu0
      %v2024 = vadd.f32 %v1920, %v2023
      %v2025 = vpop.f32.mrb[0].mxu0
      %2026 = vmatprep.mubr.bf16.mxu0 0
      %2027 = vmatmul.mubr.bf16.gmra.mrb[0].mxu0 %v1870
      %v2028 = vpop.f32.mrb[0].mxu0
      %v2029 = vadd.f32 %v1920, %v2028
      %v2030 = vpop.f32.mrb[0].mxu0
      %v2031 = vpop.f32.mrb[0].mxu0
      %v2032 = vadd.f32 %v1920, %v2031
      %v2033 = vpop.f32.mrb[0].mxu0
      %2034 = vmatprep.mubr.bf16.mxu0 0
      %2035 = vmatmul.mubr.bf16.gmra.mrb[0].mxu0 %v1871
      %v2036 = vpop.f32.mrb[0].mxu0
      %v2037 = vadd.f32 %v1920, %v2036
      %v2038 = vpop.f32.mrb[0].mxu0
      %v2039 = vpop.f32.mrb[0].mxu0
      %v2040 = vadd.f32 %v1920, %v2039
      %v2041 = vpop.f32.mrb[0].mxu0
      %2042 = vmatprep.mubr.bf16.mxu0 0
      %2043 = vmatmul.mubr.bf16.gmra.mrb[0].mxu0 %v1872
      %v2044 = vpop.f32.mrb[0].mxu0
      %v2045 = vadd.f32 %v1920, %v2044
      %v2046 = vpop.f32.mrb[0].mxu0
      %v2047 = vpop.f32.mrb[0].mxu0
      %v2048 = vadd.f32 %v1920, %v2047
      %v2049 = vpop.f32.mrb[0].mxu0
      %2050 = vmatprep.mubr.bf16.mxu0 0
      %2051 = vmatmul.mubr.bf16.gmra.mrb[0].mxu0 %v1873
      %v2052 = vpop.f32.mrb[0].mxu0
      %v2053 = vadd.f32 %v1920, %v2052
      %v2054 = vpop.f32.mrb[0].mxu0
      %v2055 = vpop.f32.mrb[0].mxu0
      %v2056 = vadd.f32 %v1920, %v2055
      %v2057 = vpop.f32.mrb[0].mxu0
      %2058 = vmatprep.mubr.bf16.mxu0 0
      %2059 = vmatmul.mubr.bf16.gmra.mrb[0].mxu0 %v1874
      %v2060 = vpop.f32.mrb[0].mxu0
      %v2061 = vadd.f32 %v1920, %v2060
      %v2062 = vpop.f32.mrb[0].mxu0
      %v2063 = vpop.f32.mrb[0].mxu0
      %v2064 = vadd.f32 %v1920, %v2063
      %v2065 = vpop.f32.mrb[0].mxu0
      %2066 = vmatprep.mubr.bf16.mxu0 0
      %2067 = vmatmul.mubr.bf16.gmra.mrb[0].mxu0 %v1875
      %v2068 = vpop.f32.mrb[0].mxu0
      %v2069 = vadd.f32 %v1920, %v2068
      %v2070 = vpop.f32.mrb[0].mxu0
      %v2071 = vpop.f32.mrb[0].mxu0
      %v2072 = vadd.f32 %v1920, %v2071
      %v2073 = vpop.f32.mrb[0].mxu0
      %2074 = vmatprep.mubr.bf16.mxu0 0
      %2075 = vmatmul.mubr.bf16.gmra.mrb[0].mxu0 %v1876
      %v2076 = vpop.f32.mrb[0].mxu0
      %v2077 = vadd.f32 %v1920, %v2076
      %v2078 = vpop.f32.mrb[0].mxu0
      %v2079 = vpop.f32.mrb[0].mxu0
      %v2080 = vadd.f32 %v1920, %v2079
      %v2081 = vpop.f32.mrb[0].mxu0
      %2082 = vmatprep.mubr.bf16.mxu0 0
      %2083 = vmatmul.mubr.bf16.gmra.mrb[0].mxu0 %v1877
      %v2084 = vpop.f32.mrb[0].mxu0
      %v2085 = vadd.f32 %v1920, %v2084
      %v2086 = vpop.f32.mrb[0].mxu0
      %v2087 = vpop.f32.mrb[0].mxu0
      %v2088 = vadd.f32 %v1920, %v2087
      %v2089 = vpop.f32.mrb[0].mxu0
      %2090 = vmatprep.mubr.bf16.mxu0 0
      %2091 = vmatmul.mubr.bf16.gmra.mrb[0].mxu0 %v1878
      %v2092 = vpop.f32.mrb[0].mxu0
      %v2093 = vadd.f32 %v1920, %v2092
      %v2094 = vpop.f32.mrb[0].mxu0
      %v2095 = vpop.f32.mrb[0].mxu0
      %v2096 = vadd.f32 %v1920, %v2095
      %v2097 = vpop.f32.mrb[0].mxu0
      %2098 = vmatprep.mubr.bf16.mxu0 0
      %2099 = vmatmul.mubr.bf16.gmra.mrb[0].mxu0 %v1879
      %v2100 = vpop.f32.mrb[0].mxu0
      %v2101 = vadd.f32 %v1920, %v2100
      %v2102 = vpop.f32.mrb[0].mxu0
      %v2103 = vpop.f32.mrb[0].mxu0
      %v2104 = vadd.f32 %v1920, %v2103
      %v2105 = vpop.f32.mrb[0].mxu0
      %2106 = vmatprep.mubr.bf16.mxu0 0
      %2107 = vmatmul.mubr.bf16.gmra.mrb[0].mxu0 %v1880
      %v2108 = vpop.f32.mrb[0].mxu0
      %v2109 = vadd.f32 %v1920, %v2108
      %v2110 = vpop.f32.mrb[0].mxu0
      %v2111 = vpop.f32.mrb[0].mxu0
      %v2112 = vadd.f32 %v1920, %v2111
      %v2113 = vpop.f32.mrb[0].mxu0
      %2114 = vmatprep.mubr.bf16.mxu0 0
      %2115 = vmatmul.mubr.bf16.gmra.mrb[0].mxu0 %v1881
      %v2116 = vpop.f32.mrb[0].mxu0
      %v2117 = vadd.f32 %v1920, %v2116
      %v2118 = vpop.f32.mrb[0].mxu0
      %v2119 = vpop.f32.mrb[0].mxu0
      %v2120 = vadd.f32 %v1920, %v2119
      %v2121 = vpop.f32.mrb[0].mxu0
      %2122 = vmatprep.mubr.bf16.mxu0 0
      %2123 = vmatmul.mubr.bf16.gmra.mrb[0].mxu0 %v1882
      %v2124 = vpop.f32.mrb[0].mxu0
      %v2125 = vadd.f32 %v1920, %v2124
      %v2126 = vpop.f32.mrb[0].mxu0
      %v2127 = vpop.f32.mrb[0].mxu0
      %v2128 = vadd.f32 %v1920, %v2127
      %v2129 = vpop.f32.mrb[0].mxu0
      %2130 = vmatprep.mubr.bf16.mxu0 0
      %2131 = vmatmul.mubr.bf16.gmra.mrb[0].mxu0 %v1883
      %v2132 = vpop.f32.mrb[0].mxu0
      %v2133 = vadd.f32 %v1920, %v2132
      %v2134 = vpop.f32.mrb[0].mxu0
      %v2135 = vpop.f32.mrb[0].mxu0
      %v2136 = vadd.f32 %v1920, %v2135
      %v2137 = vpop.f32.mrb[0].mxu0
      %2138 = vmatprep.mubr.bf16.mxu0 0
      %2139 = vmatmul.mubr.bf16.gmra.mrb[0].mxu0 %v1884
      %v2140 = vpop.f32.mrb[0].mxu0
      %v2141 = vadd.f32 %v1920, %v2140
      %v2142 = vpop.f32.mrb[0].mxu0
      %v2143 = vpop.f32.mrb[0].mxu0
      %v2144 = vadd.f32 %v1920, %v2143
      %v2145 = vpop.f32.mrb[0].mxu0
      %2146 = vmatprep.mubr.bf16.mxu0 0
      %2147 = vmatmul.mubr.bf16.gmra.mrb[0].mxu0 %v1885
      %v2148 = vpop.f32.mrb[0].mxu0
      %v2149 = vadd.f32 %v1920, %v2148
      %v2150 = vpop.f32.mrb[0].mxu0
      %v2151 = vpop.f32.mrb[0].mxu0
      %v2152 = vadd.f32 %v1920, %v2151
      %v2153 = vpop.f32.mrb[0].mxu0
      %2154 = vmatprep.mubr.bf16.mxu0 0
      %2155 = vmatmul.mubr.bf16.gmra.mrb[0].mxu0 %v1886
      %v2156 = vpop.f32.mrb[0].mxu0
      %v2157 = vadd.f32 %v1920, %v2156
      %v2158 = vpop.f32.mrb[0].mxu0
      %v2159 = vpop.f32.mrb[0].mxu0
      %v2160 = vadd.f32 %v1920, %v2159
      %v2161 = vpop.f32.mrb[0].mxu0
      %2162 = vmatprep.mubr.bf16.mxu0 0
      %2163 = vmatmul.mubr.bf16.gmra.mrb[0].mxu0 %v1887
      %v2164 = vpop.f32.mrb[0].mxu0
      %v2165 = vadd.f32 %v1920, %v2164
      %v2166 = vpop.f32.mrb[0].mxu0
      %v2167 = vpop.f32.mrb[0].mxu0
      %v2168 = vadd.f32 %v1920, %v2167
      %v2169 = vpop.f32.mrb[0].mxu0
      %2170 = vmatprep.mubr.bf16.mxu0 0
      %2171 = vmatmul.mubr.bf16.gmra.mrb[0].mxu0 %v1888
      %v2172 = vpop.f32.mrb[0].mxu0
      %v2173 = vadd.f32 %v1920, %v2172
      %v2174 = vpop.f32.mrb[0].mxu0
      %v2175 = vpop.f32.mrb[0].mxu0
      %v2176 = vadd.f32 %v1920, %v2175
      %v2177 = vpop.f32.mrb[0].mxu0
      %2178 = vmatprep.mubr.bf16.mxu0 0
      %2179 = vmatmul.mubr.bf16.gmra.mrb[0].mxu0 %v1889
      %v2180 = vpop.f32.mrb[0].mxu0
      %v2181 = vadd.f32 %v1920, %v2180
      %v2182 = vpop.f32.mrb[0].mxu0
      %v2183 = vpop.f32.mrb[0].mxu0
      %v2184 = vadd.f32 %v1920, %v2183
      %v2185 = vpop.f32.mrb[0].mxu0
      %2186 = vmatprep.mubr.bf16.mxu0 0
      %2187 = vmatmul.mubr.bf16.gmra.mrb[0].mxu0 %v1890
      %v2188 = vpop.f32.mrb[0].mxu0
      %v2189 = vadd.f32 %v1920, %v2188
      %v2190 = vpop.f32.mrb[0].mxu0
      %v2191 = vpop.f32.mrb[0].mxu0
      %v2192 = vadd.f32 %v1920, %v2191
      %v2193 = vpop.f32.mrb[0].mxu0
      %2194 = vmatprep.mubr.bf16.mxu0 0
      %2195 = vmatmul.mubr.bf16.gmra.mrb[0].mxu0 %v1891
      %v2196 = vpop.f32.mrb[0].mxu0
      %v2197 = vadd.f32 %v1920, %v2196
      %v2198 = vpop.f32.mrb[0].mxu0
      %v2199 = vpop.f32.mrb[0].mxu0
      %v2200 = vadd.f32 %v1920, %v2199
      %v2201 = vpop.f32.mrb[0].mxu0
      %2202 = vmatprep.mubr.bf16.mxu0 0
      %2203 = vmatmul.mubr.bf16.gmra.mrb[0].mxu0 %v1892
      %v2204 = vpop.f32.mrb[0].mxu0
      %v2205 = vadd.f32 %v1920, %v2204
      %v2206 = vpop.f32.mrb[0].mxu0
      %v2207 = vpop.f32.mrb[0].mxu0
      %v2208 = vadd.f32 %v1920, %v2207
      %v2209 = vpop.f32.mrb[0].mxu0
      %2210 = vmatprep.mubr.bf16.mxu0 0
      %2211 = vmatmul.mubr.bf16.gmra.mrb[0].mxu0 %v1893
      %v2212 = vpop.f32.mrb[0].mxu0
      %v2213 = vadd.f32 %v1920, %v2212
      %v2214 = vpop.f32.mrb[0].mxu0
      %v2215 = vpop.f32.mrb[0].mxu0
      %v2216 = vadd.f32 %v1920, %v2215
      %v2217 = vpop.f32.mrb[0].mxu0
      %2218 = vmatprep.mubr.bf16.mxu0 0
      %2219 = vmatmul.mubr.bf16.gmra.mrb[0].mxu0 %v1894
      %v2220 = vpop.f32.mrb[0].mxu0
      %v2221 = vadd.f32 %v1920, %v2220
      %v2222 = vpop.f32.mrb[0].mxu0
      %v2223 = vpop.f32.mrb[0].mxu0
      %v2224 = vadd.f32 %v1920, %v2223
      %v2225 = vpop.f32.mrb[0].mxu0
      %2226 = vmatprep.mubr.bf16.mxu0 0
      %2227 = vmatmul.mubr.bf16.gmra.mrb[0].mxu0 %v1895
      %v2228 = vpop.f32.mrb[0].mxu0
      %v2229 = vadd.f32 %v1920, %v2228
      %v2230 = vpop.f32.mrb[0].mxu0
      %v2231 = vpop.f32.mrb[0].mxu0
      %v2232 = vadd.f32 %v1920, %v2231
      %v2233 = vpop.f32.mrb[0].mxu0
      %2234 = vmatprep.mubr.bf16.mxu0 0
      %2235 = vmatmul.mubr.bf16.gmra.mrb[0].mxu0 %v1896
      %v2236 = vpop.f32.mrb[0].mxu0
      %v2237 = vadd.f32 %v1920, %v2236
      %v2238 = vpop.f32.mrb[0].mxu0
      %v2239 = vpop.f32.mrb[0].mxu0
      %v2240 = vadd.f32 %v1920, %v2239
      %v2241 = vpop.f32.mrb[0].mxu0
      %2242 = vmatprep.mubr.bf16.mxu0 0
      %2243 = vmatmul.mubr.bf16.gmra.mrb[0].mxu0 %v1897
      %v2244 = vpop.f32.mrb[0].mxu0
      %v2245 = vadd.f32 %v1920, %v2244
      %v2246 = vpop.f32.mrb[0].mxu0
      %v2247 = vpop.f32.mrb[0].mxu0
      %v2248 = vadd.f32 %v1920, %v2247
      %v2249 = vpop.f32.mrb[0].mxu0
      %2250 = vmatprep.mubr.bf16.mxu0 0
      %2251 = vmatmul.mubr.bf16.gmra.mrb[0].mxu0 %v1898
      %v2252 = vpop.f32.mrb[0].mxu0
      %v2253 = vadd.f32 %v1920, %v2252
      %v2254 = vpop.f32.mrb[0].mxu0
      %v2255 = vpop.f32.mrb[0].mxu0
      %v2256 = vadd.f32 %v1920, %v2255
      %v2257 = vpop.f32.mrb[0].mxu0
      %2258 = vdwg.mxu0
      %v2259 = vmax.f32 %v2005, 0.0
      %v2260 = vmax.f32 %v2008, 0.0
      %v2261 = vmax.f32 %v2013, 0.0
      %v2262 = vmax.f32 %v2016, 0.0
      %v2263 = vmax.f32 %v2021, 0.0
      %v2264 = vmax.f32 %v2024, 0.0
      %v2265 = vmax.f32 %v2029, 0.0
      %v2266 = vmax.f32 %v2032, 0.0
      %v2267 = vmax.f32 %v2037, 0.0
      %v2268 = vmax.f32 %v2040, 0.0
      %v2269 = vmax.f32 %v2045, 0.0
      %v2270 = vmax.f32 %v2048, 0.0
      %v2271 = vmax.f32 %v2053, 0.0
      %v2272 = vmax.f32 %v2056, 0.0
      %v2273 = vmax.f32 %v2061, 0.0
      %v2274 = vmax.f32 %v2064, 0.0
      %v2275 = vmax.f32 %v2069, 0.0
      %v2276 = vmax.f32 %v2072, 0.0
      %v2277 = vmax.f32 %v2077, 0.0
      %v2278 = vmax.f32 %v2080, 0.0
      %v2279 = vmax.f32 %v2085, 0.0
      %v2280 = vmax.f32 %v2088, 0.0
      %v2281 = vmax.f32 %v2093, 0.0
      %v2282 = vmax.f32 %v2096, 0.0
      %v2283 = vmax.f32 %v2101, 0.0
      %v2284 = vmax.f32 %v2104, 0.0
      %v2285 = vmax.f32 %v2109, 0.0
      %v2286 = vmax.f32 %v2112, 0.0
      %v2287 = vmax.f32 %v2117, 0.0
      %v2288 = vmax.f32 %v2120, 0.0
      %v2289 = vmax.f32 %v2125, 0.0
      %v2290 = vmax.f32 %v2128, 0.0
      %v2291 = vmax.f32 %v2133, 0.0
      %v2292 = vmax.f32 %v2136, 0.0
      %v2293 = vmax.f32 %v2141, 0.0
      %v2294 = vmax.f32 %v2144, 0.0
      %v2295 = vmax.f32 %v2149, 0.0
      %v2296 = vmax.f32 %v2152, 0.0
      %v2297 = vmax.f32 %v2157, 0.0
      %v2298 = vmax.f32 %v2160, 0.0
      %v2299 = vmax.f32 %v2165, 0.0
      %v2300 = vmax.f32 %v2168, 0.0
      %v2301 = vmax.f32 %v2173, 0.0
      %v2302 = vmax.f32 %v2176, 0.0
      %v2303 = vmax.f32 %v2181, 0.0
      %v2304 = vmax.f32 %v2184, 0.0
      %v2305 = vmax.f32 %v2189, 0.0
      %v2306 = vmax.f32 %v2192, 0.0
      %v2307 = vmax.f32 %v2197, 0.0
      %v2308 = vmax.f32 %v2200, 0.0
      %v2309 = vmax.f32 %v2205, 0.0
      %v2310 = vmax.f32 %v2208, 0.0
      %v2311 = vmax.f32 %v2213, 0.0
      %v2312 = vmax.f32 %v2216, 0.0
      %v2313 = vmax.f32 %v2221, 0.0
      %v2314 = vmax.f32 %v2224, 0.0
      %v2315 = vmax.f32 %v2229, 0.0
      %v2316 = vmax.f32 %v2232, 0.0
      %v2317 = vmax.f32 %v2237, 0.0
      %v2318 = vmax.f32 %v2240, 0.0
      %v2319 = vmax.f32 %v2245, 0.0
      %v2320 = vmax.f32 %v2248, 0.0
      %v2321 = vmax.f32 %v2253, 0.0
      %v2322 = vmax.f32 %v2256, 0.0
      %v2323 = vpack.c.bf16 %v2260, %v2259
      %v2324 = vpack.c.bf16 %v2262, %v2261
      %v2325 = vpack.c.bf16 %v2264, %v2263
      %v2326 = vpack.c.bf16 %v2266, %v2265
      %v2327 = vpack.c.bf16 %v2268, %v2267
      %v2328 = vpack.c.bf16 %v2270, %v2269
      %v2329 = vpack.c.bf16 %v2272, %v2271
      %v2330 = vpack.c.bf16 %v2274, %v2273
      %v2331 = vpack.c.bf16 %v2276, %v2275
      %v2332 = vpack.c.bf16 %v2278, %v2277
      %v2333 = vpack.c.bf16 %v2280, %v2279
      %v2334 = vpack.c.bf16 %v2282, %v2281
      %v2335 = vpack.c.bf16 %v2284, %v2283
      %v2336 = vpack.c.bf16 %v2286, %v2285
      %v2337 = vpack.c.bf16 %v2288, %v2287
      %v2338 = vpack.c.bf16 %v2290, %v2289
      %v2339 = vpack.c.bf16 %v2292, %v2291
      %v2340 = vpack.c.bf16 %v2294, %v2293
      %v2341 = vpack.c.bf16 %v2296, %v2295
      %v2342 = vpack.c.bf16 %v2298, %v2297
      %v2343 = vpack.c.bf16 %v2300, %v2299
      %v2344 = vpack.c.bf16 %v2302, %v2301
      %v2345 = vpack.c.bf16 %v2304, %v2303
      %v2346 = vpack.c.bf16 %v2306, %v2305
      %v2347 = vpack.c.bf16 %v2308, %v2307
      %v2348 = vpack.c.bf16 %v2310, %v2309
      %v2349 = vpack.c.bf16 %v2312, %v2311
      %v2350 = vpack.c.bf16 %v2314, %v2313
      %v2351 = vpack.c.bf16 %v2316, %v2315
      %v2352 = vpack.c.bf16 %v2318, %v2317
      %v2353 = vpack.c.bf16 %v2320, %v2319
      %v2354 = vpack.c.bf16 %v2322, %v2321
      %v2355 = vld [vmem:[#allocation8] sm:$0xf]
      %v2356 = vld [vmem:[#allocation8 + $0x4] sm:$0xf]
      %v2357 = vld [vmem:[#allocation8 + $0x8] sm:$0xf]
      %v2358 = vld [vmem:[#allocation8 + $0xc] sm:$0xf]
      %v2359 = vld [vmem:[#allocation8 + $0x10] sm:$0xf]
      %v2360 = vld [vmem:[#allocation8 + $0x14] sm:$0xf]
      %v2361 = vld [vmem:[#allocation8 + $0x18] sm:$0xf]
      %v2362 = vld [vmem:[#allocation8 + $0x1c] sm:$0xf]
      %v2363 = vld [vmem:[#allocation8 + $0x20] sm:$0xf]
      %v2364 = vld [vmem:[#allocation8 + $0x24] sm:$0xf]
      %v2365 = vld [vmem:[#allocation8 + $0x28] sm:$0xf]
      %v2366 = vld [vmem:[#allocation8 + $0x2c] sm:$0xf]
      %v2367 = vld [vmem:[#allocation8 + $0x30] sm:$0xf]
      %v2368 = vld [vmem:[#allocation8 + $0x34] sm:$0xf]
      %v2369 = vld [vmem:[#allocation8 + $0x38] sm:$0xf]
      %v2370 = vld [vmem:[#allocation8 + $0x3c] sm:$0xf]
      %v2387 = vunpack.c.l.b16 %v2355
      %v2388 = vunpack.c.l.b16 %v2356
      %v2389 = vunpack.c.l.b16 %v2357
      %v2390 = vunpack.c.l.b16 %v2358
      %v2391 = vunpack.c.l.b16 %v2359
      %v2392 = vunpack.c.l.b16 %v2360
      %v2393 = vunpack.c.l.b16 %v2361
      %v2394 = vunpack.c.l.b16 %v2362
      %v2395 = vunpack.c.l.b16 %v2363
      %v2396 = vunpack.c.l.b16 %v2364
      %v2397 = vunpack.c.l.b16 %v2365
      %v2398 = vunpack.c.l.b16 %v2366
      %v2399 = vunpack.c.l.b16 %v2367
      %v2400 = vunpack.c.l.b16 %v2368
      %v2401 = vunpack.c.l.b16 %v2369
      %v2402 = vunpack.c.l.b16 %v2370
      %v2403 = vpack.c.b16 %v2388, %v2387
      %v2404 = vpack.c.b16 %v2390, %v2389
      %v2405 = vpack.c.b16 %v2392, %v2391
      %v2406 = vpack.c.b16 %v2394, %v2393
      %v2407 = vpack.c.b16 %v2396, %v2395
      %v2408 = vpack.c.b16 %v2398, %v2397
      %v2409 = vpack.c.b16 %v2400, %v2399
      %v2410 = vpack.c.b16 %v2402, %v2401
      %2419 = vmatprep.subr.bf16.mxu0 0
      %2420 = vmatpush1.bf16.msra.mxu0 %v2403
      %2421 = vmatprep.subr.bf16.mxu0 0
      %2422 = vmatpush1.bf16.msra.mxu0 %v2404
      %2423 = vmatprep.subr.bf16.mxu0 0
      %2424 = vmatpush1.bf16.msra.mxu0 %v2405
      %2425 = vmatprep.subr.bf16.mxu0 0
      %2426 = vmatpush1.bf16.msra.mxu0 %v2406
      %2427 = vmatprep.subr.bf16.mxu0 0
      %2428 = vmatpush1.bf16.msra.mxu0 %v2407
      %2429 = vmatprep.subr.bf16.mxu0 0
      %2430 = vmatpush1.bf16.msra.mxu0 %v2408
      %2431 = vmatprep.subr.bf16.mxu0 0
      %2432 = vmatpush1.bf16.msra.mxu0 %v2409
      %2433 = vmatprep.subr.bf16.mxu0 0
      %2434 = vmatpush1.bf16.msra.mxu0 %v2410
      %2435 = vmatprep.subr.bf16.mxu0 0
      %2436 = vmatpush1.bf16.msra.mxu0 0
      %2437 = vmatprep.subr.bf16.mxu0 0
      %2438 = vmatpush1.bf16.msra.mxu0 0
      %2439 = vmatprep.subr.bf16.mxu0 0
      %2440 = vmatpush1.bf16.msra.mxu0 0
      %2441 = vmatprep.subr.bf16.mxu0 0
      %2442 = vmatpush1.bf16.msra.mxu0 0
      %2443 = vmatprep.subr.bf16.mxu0 0
      %2444 = vmatpush1.bf16.msra.mxu0 0
      %2445 = vmatprep.subr.bf16.mxu0 0
      %2446 = vmatpush1.bf16.msra.mxu0 0
      %2447 = vmatprep.subr.bf16.mxu0 0
      %2448 = vmatpush1.bf16.msra.mxu0 0
      %2449 = vmatprep.subr.bf16.mxu0 0
      %2450 = vmatpush1.bf16.msra.mxu0 0
      %2451 = vmatprep.mubr.bf16.mxu0 0
      %2452 = vmatmul.mubr.bf16.gmra.mrb[0].mxu0 %v2323
      %v2453 = vpop.f32.mrb[0].mxu0
      %v2454 = vadd.f32 0.0, %v2453
      %v2455 = vpop.f32.mrb[0].mxu0
      %v2456 = vpop.f32.mrb[0].mxu0
      %v2457 = vadd.f32 0.0, %v2456
      %v2458 = vpop.f32.mrb[0].mxu0
      %2459 = vmatprep.mubr.bf16.mxu0 0
      %2460 = vmatmul.mubr.bf16.gmra.mrb[0].mxu0 %v2324
      %v2461 = vpop.f32.mrb[0].mxu0
      %v2462 = vadd.f32 0.0, %v2461
      %v2463 = vpop.f32.mrb[0].mxu0
      %v2464 = vpop.f32.mrb[0].mxu0
      %v2465 = vadd.f32 0.0, %v2464
      %v2466 = vpop.f32.mrb[0].mxu0
      %2467 = vmatprep.mubr.bf16.mxu0 0
      %2468 = vmatmul.mubr.bf16.gmra.mrb[0].mxu0 %v2325
      %v2469 = vpop.f32.mrb[0].mxu0
      %v2470 = vadd.f32 0.0, %v2469
      %v2471 = vpop.f32.mrb[0].mxu0
      %v2472 = vpop.f32.mrb[0].mxu0
      %v2473 = vadd.f32 0.0, %v2472
      %v2474 = vpop.f32.mrb[0].mxu0
      %2475 = vmatprep.mubr.bf16.mxu0 0
      %2476 = vmatmul.mubr.bf16.gmra.mrb[0].mxu0 %v2326
      %v2477 = vpop.f32.mrb[0].mxu0
      %v2478 = vadd.f32 0.0, %v2477
      %v2479 = vpop.f32.mrb[0].mxu0
      %v2480 = vpop.f32.mrb[0].mxu0
      %v2481 = vadd.f32 0.0, %v2480
      %v2482 = vpop.f32.mrb[0].mxu0
      %2483 = vmatprep.mubr.bf16.mxu0 0
      %2484 = vmatmul.mubr.bf16.gmra.mrb[0].mxu0 %v2327
      %v2485 = vpop.f32.mrb[0].mxu0
      %v2486 = vadd.f32 0.0, %v2485
      %v2487 = vpop.f32.mrb[0].mxu0
      %v2488 = vpop.f32.mrb[0].mxu0
      %v2489 = vadd.f32 0.0, %v2488
      %v2490 = vpop.f32.mrb[0].mxu0
      %2491 = vmatprep.mubr.bf16.mxu0 0
      %2492 = vmatmul.mubr.bf16.gmra.mrb[0].mxu0 %v2328
      %v2493 = vpop.f32.mrb[0].mxu0
      %v2494 = vadd.f32 0.0, %v2493
      %v2495 = vpop.f32.mrb[0].mxu0
      %v2496 = vpop.f32.mrb[0].mxu0
      %v2497 = vadd.f32 0.0, %v2496
      %v2498 = vpop.f32.mrb[0].mxu0
      %2499 = vmatprep.mubr.bf16.mxu0 0
      %2500 = vmatmul.mubr.bf16.gmra.mrb[0].mxu0 %v2329
      %v2501 = vpop.f32.mrb[0].mxu0
      %v2502 = vadd.f32 0.0, %v2501
      %v2503 = vpop.f32.mrb[0].mxu0
      %v2504 = vpop.f32.mrb[0].mxu0
      %v2505 = vadd.f32 0.0, %v2504
      %v2506 = vpop.f32.mrb[0].mxu0
      %2507 = vmatprep.mubr.bf16.mxu0 0
      %2508 = vmatmul.mubr.bf16.gmra.mrb[0].mxu0 %v2330
      %v2509 = vpop.f32.mrb[0].mxu0
      %v2510 = vadd.f32 0.0, %v2509
      %v2511 = vpop.f32.mrb[0].mxu0
      %v2512 = vpop.f32.mrb[0].mxu0
      %v2513 = vadd.f32 0.0, %v2512
      %v2514 = vpop.f32.mrb[0].mxu0
      %2515 = vmatprep.mubr.bf16.mxu0 0
      %2516 = vmatmul.mubr.bf16.gmra.mrb[0].mxu0 %v2331
      %v2517 = vpop.f32.mrb[0].mxu0
      %v2518 = vadd.f32 0.0, %v2517
      %v2519 = vpop.f32.mrb[0].mxu0
      %v2520 = vpop.f32.mrb[0].mxu0
      %v2521 = vadd.f32 0.0, %v2520
      %v2522 = vpop.f32.mrb[0].mxu0
      %2523 = vmatprep.mubr.bf16.mxu0 0
      %2524 = vmatmul.mubr.bf16.gmra.mrb[0].mxu0 %v2332
      %v2525 = vpop.f32.mrb[0].mxu0
      %v2526 = vadd.f32 0.0, %v2525
      %v2527 = vpop.f32.mrb[0].mxu0
      %v2528 = vpop.f32.mrb[0].mxu0
      %v2529 = vadd.f32 0.0, %v2528
      %v2530 = vpop.f32.mrb[0].mxu0
      %2531 = vmatprep.mubr.bf16.mxu0 0
      %2532 = vmatmul.mubr.bf16.gmra.mrb[0].mxu0 %v2333
      %v2533 = vpop.f32.mrb[0].mxu0
      %v2534 = vadd.f32 0.0, %v2533
      %v2535 = vpop.f32.mrb[0].mxu0
      %v2536 = vpop.f32.mrb[0].mxu0
      %v2537 = vadd.f32 0.0, %v2536
      %v2538 = vpop.f32.mrb[0].mxu0
      %2539 = vmatprep.mubr.bf16.mxu0 0
      %2540 = vmatmul.mubr.bf16.gmra.mrb[0].mxu0 %v2334
      %v2541 = vpop.f32.mrb[0].mxu0
      %v2542 = vadd.f32 0.0, %v2541
      %v2543 = vpop.f32.mrb[0].mxu0
      %v2544 = vpop.f32.mrb[0].mxu0
      %v2545 = vadd.f32 0.0, %v2544
      %v2546 = vpop.f32.mrb[0].mxu0
      %2547 = vmatprep.mubr.bf16.mxu0 0
      %2548 = vmatmul.mubr.bf16.gmra.mrb[0].mxu0 %v2335
      %v2549 = vpop.f32.mrb[0].mxu0
      %v2550 = vadd.f32 0.0, %v2549
      %v2551 = vpop.f32.mrb[0].mxu0
      %v2552 = vpop.f32.mrb[0].mxu0
      %v2553 = vadd.f32 0.0, %v2552
      %v2554 = vpop.f32.mrb[0].mxu0
      %2555 = vmatprep.mubr.bf16.mxu0 0
      %2556 = vmatmul.mubr.bf16.gmra.mrb[0].mxu0 %v2336
      %v2557 = vpop.f32.mrb[0].mxu0
      %v2558 = vadd.f32 0.0, %v2557
      %v2559 = vpop.f32.mrb[0].mxu0
      %v2560 = vpop.f32.mrb[0].mxu0
      %v2561 = vadd.f32 0.0, %v2560
      %v2562 = vpop.f32.mrb[0].mxu0
      %2563 = vmatprep.mubr.bf16.mxu0 0
      %2564 = vmatmul.mubr.bf16.gmra.mrb[0].mxu0 %v2337
      %v2565 = vpop.f32.mrb[0].mxu0
      %v2566 = vadd.f32 0.0, %v2565
      %v2567 = vpop.f32.mrb[0].mxu0
      %v2568 = vpop.f32.mrb[0].mxu0
      %v2569 = vadd.f32 0.0, %v2568
      %v2570 = vpop.f32.mrb[0].mxu0
      %2571 = vmatprep.mubr.bf16.mxu0 0
      %2572 = vmatmul.mubr.bf16.gmra.mrb[0].mxu0 %v2338
      %v2573 = vpop.f32.mrb[0].mxu0
      %v2574 = vadd.f32 0.0, %v2573
      %v2575 = vpop.f32.mrb[0].mxu0
      %v2576 = vpop.f32.mrb[0].mxu0
      %v2577 = vadd.f32 0.0, %v2576
      %v2578 = vpop.f32.mrb[0].mxu0
      %2579 = vmatprep.mubr.bf16.mxu0 0
      %2580 = vmatmul.mubr.bf16.gmra.mrb[0].mxu0 %v2339
      %v2581 = vpop.f32.mrb[0].mxu0
      %v2582 = vadd.f32 0.0, %v2581
      %v2583 = vpop.f32.mrb[0].mxu0
      %v2584 = vpop.f32.mrb[0].mxu0
      %v2585 = vadd.f32 0.0, %v2584
      %v2586 = vpop.f32.mrb[0].mxu0
      %2587 = vmatprep.mubr.bf16.mxu0 0
      %2588 = vmatmul.mubr.bf16.gmra.mrb[0].mxu0 %v2340
      %v2589 = vpop.f32.mrb[0].mxu0
      %v2590 = vadd.f32 0.0, %v2589
      %v2591 = vpop.f32.mrb[0].mxu0
      %v2592 = vpop.f32.mrb[0].mxu0
      %v2593 = vadd.f32 0.0, %v2592
      %v2594 = vpop.f32.mrb[0].mxu0
      %2595 = vmatprep.mubr.bf16.mxu0 0
      %2596 = vmatmul.mubr.bf16.gmra.mrb[0].mxu0 %v2341
      %v2597 = vpop.f32.mrb[0].mxu0
      %v2598 = vadd.f32 0.0, %v2597
      %v2599 = vpop.f32.mrb[0].mxu0
      %v2600 = vpop.f32.mrb[0].mxu0
      %v2601 = vadd.f32 0.0, %v2600
      %v2602 = vpop.f32.mrb[0].mxu0
      %2603 = vmatprep.mubr.bf16.mxu0 0
      %2604 = vmatmul.mubr.bf16.gmra.mrb[0].mxu0 %v2342
      %v2605 = vpop.f32.mrb[0].mxu0
      %v2606 = vadd.f32 0.0, %v2605
      %v2607 = vpop.f32.mrb[0].mxu0
      %v2608 = vpop.f32.mrb[0].mxu0
      %v2609 = vadd.f32 0.0, %v2608
      %v2610 = vpop.f32.mrb[0].mxu0
      %2611 = vmatprep.mubr.bf16.mxu0 0
      %2612 = vmatmul.mubr.bf16.gmra.mrb[0].mxu0 %v2343
      %v2613 = vpop.f32.mrb[0].mxu0
      %v2614 = vadd.f32 0.0, %v2613
      %v2615 = vpop.f32.mrb[0].mxu0
      %v2616 = vpop.f32.mrb[0].mxu0
      %v2617 = vadd.f32 0.0, %v2616
      %v2618 = vpop.f32.mrb[0].mxu0
      %2619 = vmatprep.mubr.bf16.mxu0 0
      %2620 = vmatmul.mubr.bf16.gmra.mrb[0].mxu0 %v2344
      %v2621 = vpop.f32.mrb[0].mxu0
      %v2622 = vadd.f32 0.0, %v2621
      %v2623 = vpop.f32.mrb[0].mxu0
      %v2624 = vpop.f32.mrb[0].mxu0
      %v2625 = vadd.f32 0.0, %v2624
      %v2626 = vpop.f32.mrb[0].mxu0
      %2627 = vmatprep.mubr.bf16.mxu0 0
      %2628 = vmatmul.mubr.bf16.gmra.mrb[0].mxu0 %v2345
      %v2629 = vpop.f32.mrb[0].mxu0
      %v2630 = vadd.f32 0.0, %v2629
      %v2631 = vpop.f32.mrb[0].mxu0
      %v2632 = vpop.f32.mrb[0].mxu0
      %v2633 = vadd.f32 0.0, %v2632
      %v2634 = vpop.f32.mrb[0].mxu0
      %2635 = vmatprep.mubr.bf16.mxu0 0
      %2636 = vmatmul.mubr.bf16.gmra.mrb[0].mxu0 %v2346
      %v2637 = vpop.f32.mrb[0].mxu0
      %v2638 = vadd.f32 0.0, %v2637
      %v2639 = vpop.f32.mrb[0].mxu0
      %v2640 = vpop.f32.mrb[0].mxu0
      %v2641 = vadd.f32 0.0, %v2640
      %v2642 = vpop.f32.mrb[0].mxu0
      %2643 = vmatprep.mubr.bf16.mxu0 0
      %2644 = vmatmul.mubr.bf16.gmra.mrb[0].mxu0 %v2347
      %v2645 = vpop.f32.mrb[0].mxu0
      %v2646 = vadd.f32 0.0, %v2645
      %v2647 = vpop.f32.mrb[0].mxu0
      %v2648 = vpop.f32.mrb[0].mxu0
      %v2649 = vadd.f32 0.0, %v2648
      %v2650 = vpop.f32.mrb[0].mxu0
      %2651 = vmatprep.mubr.bf16.mxu0 0
      %2652 = vmatmul.mubr.bf16.gmra.mrb[0].mxu0 %v2348
      %v2653 = vpop.f32.mrb[0].mxu0
      %v2654 = vadd.f32 0.0, %v2653
      %v2655 = vpop.f32.mrb[0].mxu0
      %v2656 = vpop.f32.mrb[0].mxu0
      %v2657 = vadd.f32 0.0, %v2656
      %v2658 = vpop.f32.mrb[0].mxu0
      %2659 = vmatprep.mubr.bf16.mxu0 0
      %2660 = vmatmul.mubr.bf16.gmra.mrb[0].mxu0 %v2349
      %v2661 = vpop.f32.mrb[0].mxu0
      %v2662 = vadd.f32 0.0, %v2661
      %v2663 = vpop.f32.mrb[0].mxu0
      %v2664 = vpop.f32.mrb[0].mxu0
      %v2665 = vadd.f32 0.0, %v2664
      %v2666 = vpop.f32.mrb[0].mxu0
      %2667 = vmatprep.mubr.bf16.mxu0 0
      %2668 = vmatmul.mubr.bf16.gmra.mrb[0].mxu0 %v2350
      %v2669 = vpop.f32.mrb[0].mxu0
      %v2670 = vadd.f32 0.0, %v2669
      %v2671 = vpop.f32.mrb[0].mxu0
      %v2672 = vpop.f32.mrb[0].mxu0
      %v2673 = vadd.f32 0.0, %v2672
      %v2674 = vpop.f32.mrb[0].mxu0
      %2675 = vmatprep.mubr.bf16.mxu0 0
      %2676 = vmatmul.mubr.bf16.gmra.mrb[0].mxu0 %v2351
      %v2677 = vpop.f32.mrb[0].mxu0
      %v2678 = vadd.f32 0.0, %v2677
      %v2679 = vpop.f32.mrb[0].mxu0
      %v2680 = vpop.f32.mrb[0].mxu0
      %v2681 = vadd.f32 0.0, %v2680
      %v2682 = vpop.f32.mrb[0].mxu0
      %2683 = vmatprep.mubr.bf16.mxu0 0
      %2684 = vmatmul.mubr.bf16.gmra.mrb[0].mxu0 %v2352
      %v2685 = vpop.f32.mrb[0].mxu0
      %v2686 = vadd.f32 0.0, %v2685
      %v2687 = vpop.f32.mrb[0].mxu0
      %v2688 = vpop.f32.mrb[0].mxu0
      %v2689 = vadd.f32 0.0, %v2688
      %v2690 = vpop.f32.mrb[0].mxu0
      %2691 = vmatprep.mubr.bf16.mxu0 0
      %2692 = vmatmul.mubr.bf16.gmra.mrb[0].mxu0 %v2353
      %v2693 = vpop.f32.mrb[0].mxu0
      %v2694 = vadd.f32 0.0, %v2693
      %v2695 = vpop.f32.mrb[0].mxu0
      %v2696 = vpop.f32.mrb[0].mxu0
      %v2697 = vadd.f32 0.0, %v2696
      %v2698 = vpop.f32.mrb[0].mxu0
      %2699 = vmatprep.mubr.bf16.mxu0 0
      %2700 = vmatmul.mubr.bf16.gmra.mrb[0].mxu0 %v2354
      %v2701 = vpop.f32.mrb[0].mxu0
      %v2702 = vadd.f32 0.0, %v2701
      %v2703 = vpop.f32.mrb[0].mxu0
      %v2704 = vpop.f32.mrb[0].mxu0
      %v2705 = vadd.f32 0.0, %v2704
      %v2706 = vpop.f32.mrb[0].mxu0
      %2707 = vdwg.mxu0
      %v2708 = vmul.f32 %v2454, %v1486
      %v2709 = vmul.f32 %v2457, %v1491
      %v2710 = vmul.f32 %v2462, %v1496
      %v2711 = vmul.f32 %v2465, %v1501
      %v2712 = vmul.f32 %v2470, %v1506
      %v2713 = vmul.f32 %v2473, %v1511
      %v2714 = vmul.f32 %v2478, %v1516
      %v2715 = vmul.f32 %v2481, %v1521
      %v2716 = vmul.f32 %v2486, %v1526
      %v2717 = vmul.f32 %v2489, %v1531
      %v2718 = vmul.f32 %v2494, %v1536
      %v2719 = vmul.f32 %v2497, %v1541
      %v2720 = vmul.f32 %v2502, %v1546
      %v2721 = vmul.f32 %v2505, %v1551
      %v2722 = vmul.f32 %v2510, %v1556
      %v2723 = vmul.f32 %v2513, %v1561
      %v2724 = vmul.f32 %v2518, %v1566
      %v2725 = vmul.f32 %v2521, %v1571
      %v2726 = vmul.f32 %v2526, %v1576
      %v2727 = vmul.f32 %v2529, %v1581
      %v2728 = vmul.f32 %v2534, %v1586
      %v2729 = vmul.f32 %v2537, %v1591
      %v2730 = vmul.f32 %v2542, %v1596
      %v2731 = vmul.f32 %v2545, %v1601
      %v2732 = vmul.f32 %v2550, %v1606
      %v2733 = vmul.f32 %v2553, %v1611
      %v2734 = vmul.f32 %v2558, %v1616
      %v2735 = vmul.f32 %v2561, %v1621
      %v2736 = vmul.f32 %v2566, %v1626
      %v2737 = vmul.f32 %v2569, %v1631
      %v2738 = vmul.f32 %v2574, %v1636
      %v2739 = vmul.f32 %v2577, %v1641
      %v2740 = vmul.f32 %v2582, %v1646
      %v2741 = vmul.f32 %v2585, %v1651
      %v2742 = vmul.f32 %v2590, %v1656
      %v2743 = vmul.f32 %v2593, %v1661
      %v2744 = vmul.f32 %v2598, %v1666
      %v2745 = vmul.f32 %v2601, %v1671
      %v2746 = vmul.f32 %v2606, %v1676
      %v2747 = vmul.f32 %v2609, %v1681
      %v2748 = vmul.f32 %v2614, %v1686
      %v2749 = vmul.f32 %v2617, %v1691
      %v2750 = vmul.f32 %v2622, %v1696
      %v2751 = vmul.f32 %v2625, %v1701
      %v2752 = vmul.f32 %v2630, %v1706
      %v2753 = vmul.f32 %v2633, %v1711
      %v2754 = vmul.f32 %v2638, %v1716
      %v2755 = vmul.f32 %v2641, %v1721
      %v2756 = vmul.f32 %v2646, %v1726
      %v2757 = vmul.f32 %v2649, %v1731
      %v2758 = vmul.f32 %v2654, %v1736
      %v2759 = vmul.f32 %v2657, %v1741
      %v2760 = vmul.f32 %v2662, %v1746
      %v2761 = vmul.f32 %v2665, %v1751
      %v2762 = vmul.f32 %v2670, %v1756
      %v2763 = vmul.f32 %v2673, %v1761
      %v2764 = vmul.f32 %v2678, %v1766
      %v2765 = vmul.f32 %v2681, %v1771
      %v2766 = vmul.f32 %v2686, %v1776
      %v2767 = vmul.f32 %v2689, %v1781
      %v2768 = vmul.f32 %v2694, %v1786
      %v2769 = vmul.f32 %v2697, %v1791
      %v2770 = vmul.f32 %v2702, %v1796
      %v2771 = vmul.f32 %v2705, %v1801
      %v2772 = vpack.c.bf16 %v2709, %v2708
      %v2773 = vpack.c.bf16 %v2711, %v2710
      %v2774 = vpack.c.bf16 %v2713, %v2712
      %v2775 = vpack.c.bf16 %v2715, %v2714
      %v2776 = vpack.c.bf16 %v2717, %v2716
      %v2777 = vpack.c.bf16 %v2719, %v2718
      %v2778 = vpack.c.bf16 %v2721, %v2720
      %v2779 = vpack.c.bf16 %v2723, %v2722
      %v2780 = vpack.c.bf16 %v2725, %v2724
      %v2781 = vpack.c.bf16 %v2727, %v2726
      %v2782 = vpack.c.bf16 %v2729, %v2728
      %v2783 = vpack.c.bf16 %v2731, %v2730
      %v2784 = vpack.c.bf16 %v2733, %v2732
      %v2785 = vpack.c.bf16 %v2735, %v2734
      %v2786 = vpack.c.bf16 %v2737, %v2736
      %v2787 = vpack.c.bf16 %v2739, %v2738
      %v2788 = vpack.c.bf16 %v2741, %v2740
      %v2789 = vpack.c.bf16 %v2743, %v2742
      %v2790 = vpack.c.bf16 %v2745, %v2744
      %v2791 = vpack.c.bf16 %v2747, %v2746
      %v2792 = vpack.c.bf16 %v2749, %v2748
      %v2793 = vpack.c.bf16 %v2751, %v2750
      %v2794 = vpack.c.bf16 %v2753, %v2752
      %v2795 = vpack.c.bf16 %v2755, %v2754
      %v2796 = vpack.c.bf16 %v2757, %v2756
      %v2797 = vpack.c.bf16 %v2759, %v2758
      %v2798 = vpack.c.bf16 %v2761, %v2760
      %v2799 = vpack.c.bf16 %v2763, %v2762
      %v2800 = vpack.c.bf16 %v2765, %v2764
      %v2801 = vpack.c.bf16 %v2767, %v2766
      %v2802 = vpack.c.bf16 %v2769, %v2768
      %v2803 = vpack.c.bf16 %v2771, %v2770
      %v2836 = vunpack.c.l.b16 %v2772
      %v2837 = vunpack.c.h.b16 %v2772
      %v2838 = vunpack.c.l.b16 %v2773
      %v2839 = vunpack.c.h.b16 %v2773
      %v2840 = vunpack.c.l.b16 %v2774
      %v2841 = vunpack.c.h.b16 %v2774
      %v2842 = vunpack.c.l.b16 %v2775
      %v2843 = vunpack.c.h.b16 %v2775
      %v2844 = vunpack.c.l.b16 %v2776
      %v2845 = vunpack.c.h.b16 %v2776
      %v2846 = vunpack.c.l.b16 %v2777
      %v2847 = vunpack.c.h.b16 %v2777
      %v2848 = vunpack.c.l.b16 %v2778
      %v2849 = vunpack.c.h.b16 %v2778
      %v2850 = vunpack.c.l.b16 %v2779
      %v2851 = vunpack.c.h.b16 %v2779
      %v2852 = vunpack.c.l.b16 %v2780
      %v2853 = vunpack.c.h.b16 %v2780
      %v2854 = vunpack.c.l.b16 %v2781
      %v2855 = vunpack.c.h.b16 %v2781
      %v2856 = vunpack.c.l.b16 %v2782
      %v2857 = vunpack.c.h.b16 %v2782
      %v2858 = vunpack.c.l.b16 %v2783
      %v2859 = vunpack.c.h.b16 %v2783
      %v2860 = vunpack.c.l.b16 %v2784
      %v2861 = vunpack.c.h.b16 %v2784
      %v2862 = vunpack.c.l.b16 %v2785
      %v2863 = vunpack.c.h.b16 %v2785
      %v2864 = vunpack.c.l.b16 %v2786
      %v2865 = vunpack.c.h.b16 %v2786
      %v2866 = vunpack.c.l.b16 %v2787
      %v2867 = vunpack.c.h.b16 %v2787
      %v2868 = vunpack.c.l.b16 %v2788
      %v2869 = vunpack.c.h.b16 %v2788
      %v2870 = vunpack.c.l.b16 %v2789
      %v2871 = vunpack.c.h.b16 %v2789
      %v2872 = vunpack.c.l.b16 %v2790
      %v2873 = vunpack.c.h.b16 %v2790
      %v2874 = vunpack.c.l.b16 %v2791
      %v2875 = vunpack.c.h.b16 %v2791
      %v2876 = vunpack.c.l.b16 %v2792
      %v2877 = vunpack.c.h.b16 %v2792
      %v2878 = vunpack.c.l.b16 %v2793
      %v2879 = vunpack.c.h.b16 %v2793
      %v2880 = vunpack.c.l.b16 %v2794
      %v2881 = vunpack.c.h.b16 %v2794
      %v2882 = vunpack.c.l.b16 %v2795
      %v2883 = vunpack.c.h.b16 %v2795
      %v2884 = vunpack.c.l.b16 %v2796
      %v2885 = vunpack.c.h.b16 %v2796
      %v2886 = vunpack.c.l.b16 %v2797
      %v2887 = vunpack.c.h.b16 %v2797
      %v2888 = vunpack.c.l.b16 %v2798
      %v2889 = vunpack.c.h.b16 %v2798
      %v2890 = vunpack.c.l.b16 %v2799
      %v2891 = vunpack.c.h.b16 %v2799
      %v2892 = vunpack.c.l.b16 %v2800
      %v2893 = vunpack.c.h.b16 %v2800
      %v2894 = vunpack.c.l.b16 %v2801
      %v2895 = vunpack.c.h.b16 %v2801
      %v2896 = vunpack.c.l.b16 %v2802
      %v2897 = vunpack.c.h.b16 %v2802
      %v2898 = vunpack.c.l.b16 %v2803
      %v2899 = vunpack.c.h.b16 %v2803
      %v2900 = vpack.c.b16 %v2836, %v2836
      %v2901 = vpack.c.b16 %v2837, %v2837
      %v2902 = vpack.c.b16 %v2838, %v2838
      %v2903 = vpack.c.b16 %v2839, %v2839
      %v2904 = vpack.c.b16 %v2840, %v2840
      %v2905 = vpack.c.b16 %v2841, %v2841
      %v2906 = vpack.c.b16 %v2842, %v2842
      %v2907 = vpack.c.b16 %v2843, %v2843
      %v2908 = vpack.c.b16 %v2844, %v2844
      %v2909 = vpack.c.b16 %v2845, %v2845
      %v2910 = vpack.c.b16 %v2846, %v2846
      %v2911 = vpack.c.b16 %v2847, %v2847
      %v2912 = vpack.c.b16 %v2848, %v2848
      %v2913 = vpack.c.b16 %v2849, %v2849
      %v2914 = vpack.c.b16 %v2850, %v2850
      %v2915 = vpack.c.b16 %v2851, %v2851
      %v2916 = vpack.c.b16 %v2852, %v2852
      %v2917 = vpack.c.b16 %v2853, %v2853
      %v2918 = vpack.c.b16 %v2854, %v2854
      %v2919 = vpack.c.b16 %v2855, %v2855
      %v2920 = vpack.c.b16 %v2856, %v2856
      %v2921 = vpack.c.b16 %v2857, %v2857
      %v2922 = vpack.c.b16 %v2858, %v2858
      %v2923 = vpack.c.b16 %v2859, %v2859
      %v2924 = vpack.c.b16 %v2860, %v2860
      %v2925 = vpack.c.b16 %v2861, %v2861
      %v2926 = vpack.c.b16 %v2862, %v2862
      %v2927 = vpack.c.b16 %v2863, %v2863
      %v2928 = vpack.c.b16 %v2864, %v2864
      %v2929 = vpack.c.b16 %v2865, %v2865
      %v2930 = vpack.c.b16 %v2866, %v2866
      %v2931 = vpack.c.b16 %v2867, %v2867
      %v2932 = vpack.c.b16 %v2868, %v2868
      %v2933 = vpack.c.b16 %v2869, %v2869
      %v2934 = vpack.c.b16 %v2870, %v2870
      %v2935 = vpack.c.b16 %v2871, %v2871
      %v2936 = vpack.c.b16 %v2872, %v2872
      %v2937 = vpack.c.b16 %v2873, %v2873
      %v2938 = vpack.c.b16 %v2874, %v2874
      %v2939 = vpack.c.b16 %v2875, %v2875
      %v2940 = vpack.c.b16 %v2876, %v2876
      %v2941 = vpack.c.b16 %v2877, %v2877
      %v2942 = vpack.c.b16 %v2878, %v2878
      %v2943 = vpack.c.b16 %v2879, %v2879
      %v2944 = vpack.c.b16 %v2880, %v2880
      %v2945 = vpack.c.b16 %v2881, %v2881
      %v2946 = vpack.c.b16 %v2882, %v2882
      %v2947 = vpack.c.b16 %v2883, %v2883
      %v2948 = vpack.c.b16 %v2884, %v2884
      %v2949 = vpack.c.b16 %v2885, %v2885
      %v2950 = vpack.c.b16 %v2886, %v2886
      %v2951 = vpack.c.b16 %v2887, %v2887
      %v2952 = vpack.c.b16 %v2888, %v2888
      %v2953 = vpack.c.b16 %v2889, %v2889
      %v2954 = vpack.c.b16 %v2890, %v2890
      %v2955 = vpack.c.b16 %v2891, %v2891
      %v2956 = vpack.c.b16 %v2892, %v2892
      %v2957 = vpack.c.b16 %v2893, %v2893
      %v2958 = vpack.c.b16 %v2894, %v2894
      %v2959 = vpack.c.b16 %v2895, %v2895
      %v2960 = vpack.c.b16 %v2896, %v2896
      %v2961 = vpack.c.b16 %v2897, %v2897
      %v2962 = vpack.c.b16 %v2898, %v2898
      %v2963 = vpack.c.b16 %v2899, %v2899
      %3028 = vst [vmem:[#allocation9] sm:$0xf] %v2900
      %3029 = vst [vmem:[#allocation9 + $0x4] sm:$0xf] %v2901
      %3030 = vst [vmem:[#allocation9 + $0x8] sm:$0xf] %v2902
      %3031 = vst [vmem:[#allocation9 + $0xc] sm:$0xf] %v2903
      %3032 = vst [vmem:[#allocation9 + $0x10] sm:$0xf] %v2904
      %3033 = vst [vmem:[#allocation9 + $0x14] sm:$0xf] %v2905
      %3034 = vst [vmem:[#allocation9 + $0x18] sm:$0xf] %v2906
      %3035 = vst [vmem:[#allocation9 + $0x1c] sm:$0xf] %v2907
      %3036 = vst [vmem:[#allocation9 + $0x20] sm:$0xf] %v2908
      %3037 = vst [vmem:[#allocation9 + $0x24] sm:$0xf] %v2909
      %3038 = vst [vmem:[#allocation9 + $0x28] sm:$0xf] %v2910
      %3039 = vst [vmem:[#allocation9 + $0x2c] sm:$0xf] %v2911
      %3040 = vst [vmem:[#allocation9 + $0x30] sm:$0xf] %v2912
      %3041 = vst [vmem:[#allocation9 + $0x34] sm:$0xf] %v2913
      %3042 = vst [vmem:[#allocation9 + $0x38] sm:$0xf] %v2914
      %3043 = vst [vmem:[#allocation9 + $0x3c] sm:$0xf] %v2915
      %3044 = vst [vmem:[#allocation9 + $0x40] sm:$0xf] %v2916
      %3045 = vst [vmem:[#allocation9 + $0x44] sm:$0xf] %v2917
      %3046 = vst [vmem:[#allocation9 + $0x48] sm:$0xf] %v2918
      %3047 = vst [vmem:[#allocation9 + $0x4c] sm:$0xf] %v2919
      %3048 = vst [vmem:[#allocation9 + $0x50] sm:$0xf] %v2920
      %3049 = vst [vmem:[#allocation9 + $0x54] sm:$0xf] %v2921
      %3050 = vst [vmem:[#allocation9 + $0x58] sm:$0xf] %v2922
      %3051 = vst [vmem:[#allocation9 + $0x5c] sm:$0xf] %v2923
      %3052 = vst [vmem:[#allocation9 + $0x60] sm:$0xf] %v2924
      %3053 = vst [vmem:[#allocation9 + $0x64] sm:$0xf] %v2925
      %3054 = vst [vmem:[#allocation9 + $0x68] sm:$0xf] %v2926
      %3055 = vst [vmem:[#allocation9 + $0x6c] sm:$0xf] %v2927
      %3056 = vst [vmem:[#allocation9 + $0x70] sm:$0xf] %v2928
      %3057 = vst [vmem:[#allocation9 + $0x74] sm:$0xf] %v2929
      %3058 = vst [vmem:[#allocation9 + $0x78] sm:$0xf] %v2930
      %3059 = vst [vmem:[#allocation9 + $0x7c] sm:$0xf] %v2931
      %3060 = vst [vmem:[#allocation9 + $0x80] sm:$0xf] %v2932
      %3061 = vst [vmem:[#allocation9 + $0x84] sm:$0xf] %v2933
      %3062 = vst [vmem:[#allocation9 + $0x88] sm:$0xf] %v2934
      %3063 = vst [vmem:[#allocation9 + $0x8c] sm:$0xf] %v2935
      %3064 = vst [vmem:[#allocation9 + $0x90] sm:$0xf] %v2936
      %3065 = vst [vmem:[#allocation9 + $0x94] sm:$0xf] %v2937
      %3066 = vst [vmem:[#allocation9 + $0x98] sm:$0xf] %v2938
      %3067 = vst [vmem:[#allocation9 + $0x9c] sm:$0xf] %v2939
      %3068 = vst [vmem:[#allocation9 + $0xa0] sm:$0xf] %v2940
      %3069 = vst [vmem:[#allocation9 + $0xa4] sm:$0xf] %v2941
      %3070 = vst [vmem:[#allocation9 + $0xa8] sm:$0xf] %v2942
      %3071 = vst [vmem:[#allocation9 + $0xac] sm:$0xf] %v2943
      %3072 = vst [vmem:[#allocation9 + $0xb0] sm:$0xf] %v2944
      %3073 = vst [vmem:[#allocation9 + $0xb4] sm:$0xf] %v2945
      %3074 = vst [vmem:[#allocation9 + $0xb8] sm:$0xf] %v2946
      %3075 = vst [vmem:[#allocation9 + $0xbc] sm:$0xf] %v2947
      %3076 = vst [vmem:[#allocation9 + $0xc0] sm:$0xf] %v2948
      %3077 = vst [vmem:[#allocation9 + $0xc4] sm:$0xf] %v2949
      %3078 = vst [vmem:[#allocation9 + $0xc8] sm:$0xf] %v2950
      %3079 = vst [vmem:[#allocation9 + $0xcc] sm:$0xf] %v2951
      %3080 = vst [vmem:[#allocation9 + $0xd0] sm:$0xf] %v2952
      %3081 = vst [vmem:[#allocation9 + $0xd4] sm:$0xf] %v2953
      %3082 = vst [vmem:[#allocation9 + $0xd8] sm:$0xf] %v2954
      %3083 = vst [vmem:[#allocation9 + $0xdc] sm:$0xf] %v2955
      %3084 = vst [vmem:[#allocation9 + $0xe0] sm:$0xf] %v2956
      %3085 = vst [vmem:[#allocation9 + $0xe4] sm:$0xf] %v2957
      %3086 = vst [vmem:[#allocation9 + $0xe8] sm:$0xf] %v2958
      %3087 = vst [vmem:[#allocation9 + $0xec] sm:$0xf] %v2959
      %3088 = vst [vmem:[#allocation9 + $0xf0] sm:$0xf] %v2960
      %3089 = vst [vmem:[#allocation9 + $0xf4] sm:$0xf] %v2961
      %3090 = vst [vmem:[#allocation9 + $0xf8] sm:$0xf] %v2962
      %3091 = vst [vmem:[#allocation9 + $0xfc] sm:$0xf] %v2963
    $region45: #{tpu_custom_call.1} parent=1 // pred_fallthru
      _
    // Predicated region
    $region46: #{tpu_custom_call.1} parent=1 // pred_check
      _
    $region47: #{tpu_custom_call.1} parent=1 // pred_check_branch
      %3093 = sbr.rel (0) target = $region49
    $region48: #{tpu_custom_call.1} parent=1 // pred_region
      %s3095 = ssub.s32 4096, 4096
      %3096 = vsyncadd [#allocation5], %s3095
      %s3097 = sshll.u32 [#allocation9], 4
      %s3098 = int_to_ptr.vmem [resolvable:$true] %s3097
      %3103 = dma.vmem_to_hbm [thread:$0]  %s3098, 4096, %s6, [#allocation5], 64, 64, 4
    $region49: #{tpu_custom_call.1} parent=1 // pred_fallthru
      _
    // Predicated region
    $region50: #{tpu_custom_call.1} parent=1 // pred_check
      _
    $region51: #{tpu_custom_call.1} parent=1 // pred_check_branch
      %3105 = sbr.rel (0) target = $region53
    $region52: #{tpu_custom_call.1} parent=1 // pred_region
      %3106 = dma.done [#allocation5], 4096
    $region53: #{tpu_custom_call.1} parent=1 // pred_fallthru
      _
    %3107 = vsyncpa [#allocation4], 1
    %3108 = vsyncpa [#allocation7], 1
    %3109 = vsyncpa [#allocation5], 1

</llo_original>
